<compile_context>
chip_gen: v5e
topology: v5e:2x2
jax: 0.10.0
libtpu: 0.0.40
codegen_flags: <defaults>
</compile_context>

<pallas_src>
import functools

import jax
import jax.numpy as jnp
from jax.experimental import pallas as pl
from jax.experimental.pallas import tpu as pltpu

BN_EPS = 1e-5


# --------------------------------------------------------------------------
# Fused pointwise-MLP Pallas kernel (conv1x1 / linear chains, BN pre-folded)
# --------------------------------------------------------------------------
def _act(h, name):
    if name == "relu":
        return jnp.maximum(h, 0.0)
    return h


def _fused_mlp_kernel(*refs, segments, pool_k):
    # refs = (w0, b0, w1, b1, ..., x_ref, o_ref); weights are (Cin_i, Cout_i),
    # biases are (1, Cout_i), x is (TM, Cin0), o is (TM // pool_k, Cout_last).
    x_ref, o_ref = refs[-2], refs[-1]
    wrefs = refs[:-2]
    h = x_ref[...]
    li = 0
    for res, acts, post_act in segments:
        inp = h
        for act in acts:
            wt = wrefs[2 * li][...]
            b = wrefs[2 * li + 1][...]
            h = jnp.dot(h, wt, preferred_element_type=jnp.float32) + b
            h = _act(h, act)
            li += 1
        if res:
            h = h + inp            # ConvBNReLURes1D residual add
        h = _act(h, post_act)
    if pool_k > 1:                 # fused adaptive_max_pool1d over k neighbours
        tm, c = h.shape
        h = jnp.max(h.reshape(tm // pool_k, pool_k, c), axis=1)
    o_ref[...] = h


def _round_up(x, m):
    return ((x + m - 1) // m) * m


def fused_mlp(x_rows, layers, *, pool_k=1, target_rows=None):
    """Run a fused chain of pointwise layers on (M, Cin) rows.

    layers: list of segments (res: bool, [(wt, b, act), ...], post_act) with
            wt (Cin_i, Cout_i) already transposed & BN-folded, b (1, Cout_i).
    pool_k: if > 1, max-pool groups of pool_k consecutive rows inside the kernel.
    Returns (M // pool_k, Cout_last) float32.
    """
    m, cin = x_rows.shape
    cout = layers[-1][1][-1][0].shape[1]

    # Adaptive row tile: keep each activation tile around <=1 MiB so the
    # double-buffered input, the intermediates and the resident weights fit
    # comfortably in scoped VMEM on v5e/v6e/v7x while tiles stay large.
    widths = [cin]
    for _, lyrs, _ in layers:
        for wt, _, _ in lyrs:
            widths.append(wt.shape[1])
    max_c = max(widths)
    if target_rows is None:
        target_rows = max(256, min(2048, ((1 << 20) // (4 * max_c)) // 8 * 8))

    base = 8 * pool_k if pool_k > 1 else 8          # tm multiple of 8 and pool_k
    tm = min(_round_up(m, base), _round_up(target_rows, base))
    mp = _round_up(m, tm)
    xp = jnp.pad(x_rows, ((0, mp - m), (0, 0))) if mp != m else x_rows

    flat, in_specs, segments = [], [], []
    for res, lyrs, post_act in layers:
        acts = []
        for wt, b, act in lyrs:
            flat += [wt, b]
            in_specs += [pl.BlockSpec(wt.shape, lambda j: (0, 0)),
                         pl.BlockSpec(b.shape, lambda j: (0, 0))]
            acts.append(act)
        segments.append((res, tuple(acts), post_act))
    in_specs.append(pl.BlockSpec((tm, cin), lambda j: (j, 0)))

    out = pl.pallas_call(
        functools.partial(_fused_mlp_kernel,
                          segments=tuple(segments), pool_k=pool_k),
        out_shape=jax.ShapeDtypeStruct((mp // pool_k, cout), jnp.float32),
        grid=(mp // tm,),
        in_specs=in_specs,
        out_specs=pl.BlockSpec((tm // pool_k, cout), lambda j: (j, 0)),
        compiler_params=pltpu.CompilerParams(dimension_semantics=("parallel",)),
    )(*flat, xp)
    return out[: m // pool_k]


# --------------------------------------------------------------------------
# kNN pairwise squared-distance Pallas kernel (square_distance)
# --------------------------------------------------------------------------
def _sqdist_kernel(qa_ref, pa_ref, o_ref):
    # qa: (TS, 5) = [q, 1, |q|^2]; pa: (N, 5) = [-2p, |p|^2, 1]
    o_ref[...] = jax.lax.dot_general(
        qa_ref[...], pa_ref[...], (((1,), (1,)), ((), ())),
        preferred_element_type=jnp.float32)                       # (TS, N)


def pairwise_sqdist(new_xyz, xyz):
    """Squared distances (B,S,3) x (B,N,3) -> (B,S,N), row-tiled over queries."""
    b, s, _ = new_xyz.shape
    n = xyz.shape[1]
    qa = jnp.concatenate(
        [new_xyz, jnp.ones((b, s, 1), jnp.float32),
         jnp.sum(new_xyz * new_xyz, -1, keepdims=True)], axis=-1)
    pa = jnp.concatenate(
        [-2.0 * xyz, jnp.sum(xyz * xyz, -1, keepdims=True),
         jnp.ones((b, n, 1), jnp.float32)], axis=-1)
    ts = s if s <= 256 else 256
    assert s % ts == 0
    return pl.pallas_call(
        _sqdist_kernel,
        out_shape=jax.ShapeDtypeStruct((b, s, n), jnp.float32),
        grid=(b, s // ts),
        in_specs=[pl.BlockSpec((None, ts, 5), lambda i, j: (i, j, 0)),
                  pl.BlockSpec((None, n, 5), lambda i, j: (i, 0, 0))],
        out_specs=pl.BlockSpec((None, ts, n), lambda i, j: (i, j, 0)),
        compiler_params=pltpu.CompilerParams(
            dimension_semantics=("parallel", "parallel")),
    )(qa, pa)


# --------------------------------------------------------------------------
# LocalGrouper pieces (FPS / kNN / gather / normalize) — XLA glue
# --------------------------------------------------------------------------
def farthest_point_sample(xyz, npoint):
    # TODO(synk): sequential data-dependent argmax selection (pointnet2 FPS,
    # deterministic start at index 0) kept in an XLA fori_loop, not Pallas.
    b, n, _ = xyz.shape

    def body(i, state):
        dist, far, idxs = state
        idxs = idxs.at[:, i].set(far)
        centroid = jnp.take_along_axis(xyz, far[:, None, None], axis=1)  # (B,1,3)
        d = jnp.sum((xyz - centroid) ** 2, axis=-1)                      # (B,N)
        dist = jnp.minimum(dist, d)
        far = jnp.argmax(dist, axis=-1).astype(jnp.int32)
        return dist, far, idxs

    state = (jnp.full((b, n), 1e10, jnp.float32),
             jnp.zeros((b,), jnp.int32),
             jnp.zeros((b, npoint), jnp.int32))
    _, _, idxs = jax.lax.fori_loop(0, npoint, body, state)
    return idxs


def knn_point(k, xyz, new_xyz):
    sqr = pairwise_sqdist(new_xyz, xyz)          # Pallas MXU kernel
    # TODO(synk): top-k neighbour selection stays in XLA (lax.top_k); fusing
    # selection into the distance kernel is a further optimization.
    _, idx = jax.lax.top_k(-sqr, k)
    return idx


def local_grouper(xyz, points, groups, k, alpha, beta):
    """xyz (B,N,3), points (B,N,D) -> new_xyz (B,S,3), new_points (B,S,k,2D+3)."""
    b = xyz.shape[0]
    d = points.shape[-1]
    fps_idx = farthest_point_sample(xyz, groups)                          # (B,S)
    new_xyz = jnp.take_along_axis(xyz, fps_idx[:, :, None], axis=1)       # (B,S,3)
    new_points = jnp.take_along_axis(points, fps_idx[:, :, None], axis=1)  # (B,S,D)
    idx = knn_point(k, xyz, new_xyz)                                      # (B,S,k)
    bidx = jnp.arange(b)[:, None, None]
    # TODO(synk): neighbour gathers left to XLA; a one-hot MXU matmul or a
    # scalar-prefetch Pallas DMA gather would avoid serialized gathers at large N.
    grouped_xyz = xyz[bidx, idx]                                          # (B,S,k,3)
    grouped_points = points[bidx, idx]                                    # (B,S,k,D)
    grouped_points = jnp.concatenate([grouped_points, grouped_xyz], axis=-1)  # use_xyz
    # normalize='center'
    mean = jnp.mean(grouped_points, axis=2, keepdims=True)
    diff = grouped_points - mean
    std = jnp.std(diff.reshape(b, -1), axis=-1, ddof=1)                   # torch.std (unbiased)
    grouped_points = diff / (std[:, None, None, None] + 1e-5)
    grouped_points = alpha * grouped_points + beta
    new_points = jnp.concatenate(
        [grouped_points,
         jnp.broadcast_to(new_points[:, :, None, :], (b, groups, k, d))], axis=-1)
    return new_xyz, new_points


# --------------------------------------------------------------------------
# BN folding + full forward pass
# --------------------------------------------------------------------------
def fold_layer(layer, act):
    """Fold inference-mode BatchNorm into (W, b); return (W^T, b, act) for x @ W^T + b."""
    w = layer["w"]                                 # (Cout, Cin)
    b = layer["b"]
    bn = layer.get("bn")
    if bn is not None:
        s = bn["gamma"] * jax.lax.rsqrt(bn["var"] + BN_EPS)
        w = w * s[:, None]
        b = (b - bn["mean"]) * s + bn["beta"]
    return jnp.transpose(w), b.reshape(1, -1), act


def model_forward(params, x, cfg):
    b, _, n = x.shape
    xyz = jnp.transpose(x, (0, 2, 1))              # (B,N,3) — the only layout shuffle

    # embedding: ConvBNReLU1D(3, embed_dim)
    feats = fused_mlp(
        xyz.reshape(b * n, 3),
        [(False, [fold_layer(params["embedding"], "relu")], "none")],
    ).reshape(b, n, -1)

    for si, stage in enumerate(params["stages"]):
        s_groups = cfg["anchor_points"][si]
        k = cfg["k_neighbors"][si]
        xyz, grouped = local_grouper(xyz, feats, s_groups, k,
                                     stage["alpha"], stage["beta"])
        d_in = grouped.shape[-1]

        # PreExtraction: transfer conv + residual blocks + max over k, one kernel
        pre_layers = [(False, [fold_layer(stage["transfer"], "relu")], "none")]
        for blk in stage["pre"]:
            pre_layers.append((True, [fold_layer(blk["conv1"], "relu"),
                                      fold_layer(blk["conv2"], "none")], "relu"))
        rows = grouped.reshape(b * s_groups * k, d_in)
        feats = fused_mlp(rows, pre_layers, pool_k=k).reshape(b, s_groups, -1)
        c_out = feats.shape[-1]

        # PosExtraction: residual blocks, one kernel
        pos_layers = [(True, [fold_layer(blk["conv1"], "relu"),
                              fold_layer(blk["conv2"], "none")], "relu")
                      for blk in stage["pos"]]
        feats = fused_mlp(feats.reshape(b * s_groups, c_out),
                          pos_layers).reshape(b, s_groups, c_out)

    # adaptive_max_pool1d over remaining points + classifier (Dropout = identity)
    pooled = jnp.max(feats, axis=1)                # (B, C_last)
    head = [(False, [fold_layer(params["cls1"], "relu"),
                     fold_layer(params["cls2"], "relu"),
                     fold_layer(params["cls3"], "none")], "none")]
    return fused_mlp(pooled, head)


# --------------------------------------------------------------------------
# Config + deterministic parameter initialization
# --------------------------------------------------------------------------
def make_config(points, class_num, embed_dim, dim_expansion, pre_blocks,
                pos_blocks, k_neighbors, reducers):
    anchor, anchors, channels, last = points, [], [], embed_dim
    prev_n = points
    for i, (de, r) in enumerate(zip(dim_expansion, reducers)):
        assert k_neighbors[i] <= prev_n
        anchor = anchor // r
        anchors.append(anchor)
        prev_n = anchor
        last = last * de
        channels.append(last)
    return dict(points=points, class_num=class_num, embed_dim=embed_dim,
                pre_blocks=list(pre_blocks), pos_blocks=list(pos_blocks),
                k_neighbors=list(k_neighbors), anchor_points=anchors,
                stage_channels=channels)


def init_params(key, cfg):
    keys = iter(jax.random.split(key, 512))

    def dense(cout, cin, with_bn=True):
        layer = {
            "w": jax.random.normal(next(keys), (cout, cin), jnp.float32) / jnp.sqrt(cin),
            "b": 0.02 * jax.random.normal(next(keys), (cout,), jnp.float32),
        }
        if with_bn:
            layer["bn"] = {
                "gamma": 1.0 + 0.05 * jax.random.normal(next(keys), (cout,), jnp.float32),
                "beta": 0.02 * jax.random.normal(next(keys), (cout,), jnp.float32),
                "mean": 0.02 * jax.random.normal(next(keys), (cout,), jnp.float32),
                "var": 1.0 + 0.05 * jax.random.uniform(next(keys), (cout,), jnp.float32),
            }
        return layer

    def res_block(c):
        return {"conv1": dense(c, c), "conv2": dense(c, c)}

    params = {"embedding": dense(cfg["embed_dim"], 3), "stages": []}
    last = cfg["embed_dim"]
    for i, c_out in enumerate(cfg["stage_channels"]):
        params["stages"].append({
            "alpha": jnp.ones((1, 1, 1, last + 3), jnp.float32),   # LocalGrouper affine
            "beta": jnp.zeros((1, 1, 1, last + 3), jnp.float32),
            "transfer": dense(c_out, 2 * last + 3),
            "pre": [res_block(c_out) for _ in range(cfg["pre_blocks"][i])],
            "pos": [res_block(c_out) for _ in range(cfg["pos_blocks"][i])],
        })
        last = c_out
    params["cls1"] = dense(512, last)
    params["cls2"] = dense(256, 512)
    params["cls3"] = dense(cfg["class_num"], 256, with_bn=False)
    return params


if __name__ == "__main__":
    # Small config consistent with the module: 64 points, 2 stages of
    # (LocalGrouper -> PreExtraction -> PosExtraction), k=8 neighbours,
    # dim_expansion 2 per stage, 40 classes.
    cfg = make_config(points=64, class_num=40, embed_dim=32,
                      dim_expansion=(2, 2), pre_blocks=(1, 1), pos_blocks=(1, 1),
                      k_neighbors=(8, 8), reducers=(2, 2))
    key = jax.random.PRNGKey(0)
    pkey, xkey = jax.random.split(key)
    params = init_params(pkey, cfg)
    x = jax.random.normal(xkey, (2, 3, cfg["points"]), jnp.float32)   # (B, 3, N)

    fwd = jax.jit(functools.partial(model_forward, cfg=cfg))
    out = jax.block_until_ready(fwd(params, x))
    assert out.shape == (2, cfg["class_num"]), out.shape
    assert bool(jnp.all(jnp.isfinite(out)))
    print("KERNEL_OK")
</pallas_src>

<mosaic_0001>
module attributes {stable_mosaic.version = 11 : i64} {
  func.func @_sqdist_kernel(%arg0: i32, %arg1: i32, %arg2: memref<1x32x5xf32, #tpu.memory_space<vmem>>, %arg3: memref<1x64x5xf32, #tpu.memory_space<vmem>>, %arg4: memref<1x32x64xf32, #tpu.memory_space<vmem>>) attributes {dimension_semantics = [#tpu.dimension_semantics<parallel>, #tpu.dimension_semantics<parallel>], iteration_bounds = array<i64: 2, 1>, scalar_prefetch = 0 : i64, scratch_operands = 0 : i64, tpu.core_type = #tpu.core_type<tc>, window_params = [{transform_indices = @transform_0, window_bounds = array<i64: 1, 32, 5>}, {transform_indices = @transform_1, window_bounds = array<i64: 1, 64, 5>}, {transform_indices = @transform_2, window_bounds = array<i64: 1, 32, 64>}]} {
    %c0 = arith.constant 0 : index
    %c0_0 = arith.constant 0 : index
    %c0_1 = arith.constant 0 : index
    %0 = vector.load %arg2[%c0, %c0_0, %c0_1] : memref<1x32x5xf32, #tpu.memory_space<vmem>>, vector<1x32x5xf32>
    %1 = vector.shape_cast %0 : vector<1x32x5xf32> to vector<32x5xf32>
    %c0_2 = arith.constant 0 : index
    %c0_3 = arith.constant 0 : index
    %c0_4 = arith.constant 0 : index
    %2 = vector.load %arg3[%c0_2, %c0_3, %c0_4] : memref<1x64x5xf32, #tpu.memory_space<vmem>>, vector<1x64x5xf32>
    %3 = vector.shape_cast %2 : vector<1x64x5xf32> to vector<64x5xf32>
    %cst = arith.constant dense<0.000000e+00> : vector<32x64xf32>
    %4 = tpu.matmul %1, %3, %cst {dimension_numbers = #tpu.dot_dimension_numbers<[1], [1], [0], [0], [0, 0, 1, 0], [], []>} : vector<32x5xf32>, vector<64x5xf32>, vector<32x64xf32> -> vector<32x64xf32>
    %c0_5 = arith.constant 0 : index
    %c0_6 = arith.constant 0 : index
    %c0_7 = arith.constant 0 : index
    %5 = vector.load %arg4[%c0_5, %c0_6, %c0_7] : memref<1x32x64xf32, #tpu.memory_space<vmem>>, vector<1x32x64xf32>
    %6 = vector.shape_cast %5 : vector<1x32x64xf32> to vector<32x64xf32>
    %7 = vector.shape_cast %4 : vector<32x64xf32> to vector<1x32x64xf32>
    tpu.vector_store %arg4[%c0_5, %c0_6, %c0_7], %7 {strides = array<i32>} : memref<1x32x64xf32, #tpu.memory_space<vmem>>, vector<1x32x64xf32>,
    return
  }
  func.func @transform_0(%arg0: i32, %arg1: i32) -> (i32, i32, i32) {
    %c0_i32 = arith.constant 0 : i32
    %c0_i32_0 = arith.constant 0 : i32
    return %arg0, %arg1, %c0_i32 : i32, i32, i32
  }
  func.func @transform_1(%arg0: i32, %arg1: i32) -> (i32, i32, i32) {
    %c0_i32 = arith.constant 0 : i32
    %c0_i32_0 = arith.constant 0 : i32
    %c0_i32_1 = arith.constant 0 : i32
    return %arg0, %c0_i32, %c0_i32_0 : i32, i32, i32
  }
  func.func @transform_2(%arg0: i32, %arg1: i32) -> (i32, i32, i32) {
    %c0_i32 = arith.constant 0 : i32
    %c0_i32_0 = arith.constant 0 : i32
    return %arg0, %arg1, %c0_i32 : i32, i32, i32
  }
}

module attributes {stable_mosaic.version = 11 : i64} {
  func.func @_fused_mlp_kernel(%arg0: i32, %arg1: memref<3x32xf32, #tpu.memory_space<vmem>>, %arg2: memref<1x32xf32, #tpu.memory_space<vmem>>, %arg3: memref<128x3xf32, #tpu.memory_space<vmem>>, %arg4: memref<128x32xf32, #tpu.memory_space<vmem>>) attributes {dimension_semantics = [#tpu.dimension_semantics<parallel>], iteration_bounds = array<i64: 1>, scalar_prefetch = 0 : i64, scratch_operands = 0 : i64, tpu.core_type = #tpu.core_type<tc>, window_params = [{pipeline_mode = #tpu.pipeline_mode<synchronous>, transform_indices = @transform_0, window_bounds = array<i64: 3, 32>}, {pipeline_mode = #tpu.pipeline_mode<synchronous>, transform_indices = @transform_1, window_bounds = array<i64: 1, 32>}, {transform_indices = @transform_2, window_bounds = array<i64: 128, 3>}, {transform_indices = @transform_3, window_bounds = array<i64: 128, 32>}]} {
    %c0 = arith.constant 0 : index
    %c0_0 = arith.constant 0 : index
    %0 = vector.load %arg3[%c0, %c0_0] : memref<128x3xf32, #tpu.memory_space<vmem>>, vector<128x3xf32>
    %c0_1 = arith.constant 0 : index
    %c0_2 = arith.constant 0 : index
    %1 = vector.load %arg1[%c0_1, %c0_2] : memref<3x32xf32, #tpu.memory_space<vmem>>, vector<3x32xf32>
    %c0_3 = arith.constant 0 : index
    %c0_4 = arith.constant 0 : index
    %2 = vector.load %arg2[%c0_3, %c0_4] : memref<1x32xf32, #tpu.memory_space<vmem>>, vector<1x32xf32>
    %cst = arith.constant dense<0.000000e+00> : vector<128x32xf32>
    %3 = tpu.matmul %0, %1, %cst {dimension_numbers = #tpu.dot_dimension_numbers<[1], [0], [0], [1], [0, 0, 1, 1], [], []>} : vector<128x3xf32>, vector<3x32xf32>, vector<128x32xf32> -> vector<128x32xf32>
    %4 = vector.broadcast %2 : vector<1x32xf32> to vector<128x32xf32>
    %5 = arith.addf %3, %4 : vector<128x32xf32>
    %cst_5 = arith.constant 0.000000e+00 : f32
    %6 = vector.broadcast %cst_5 : f32 to vector<128x32xf32>
    %7 = arith.maximumf %5, %6 : vector<128x32xf32>
    %c0_6 = arith.constant 0 : index
    %c0_7 = arith.constant 0 : index
    %8 = vector.load %arg4[%c0_6, %c0_7] : memref<128x32xf32, #tpu.memory_space<vmem>>, vector<128x32xf32>
    tpu.vector_store %arg4[%c0_6, %c0_7], %7 {strides = array<i32>} : memref<128x32xf32, #tpu.memory_space<vmem>>, vector<128x32xf32>,
    return
  }
  func.func @transform_0(%arg0: i32) -> (i32, i32) {
    %c0_i32 = arith.constant 0 : i32
    %c0_i32_0 = arith.constant 0 : i32
    %c0_i32_1 = arith.constant 0 : i32
    return %c0_i32, %c0_i32_0 : i32, i32
  }
  func.func @transform_1(%arg0: i32) -> (i32, i32) {
    %c0_i32 = arith.constant 0 : i32
    %c0_i32_0 = arith.constant 0 : i32
    %c0_i32_1 = arith.constant 0 : i32
    return %c0_i32, %c0_i32_0 : i32, i32
  }
  func.func @transform_2(%arg0: i32) -> (i32, i32) {
    %c0_i32 = arith.constant 0 : i32
    %c0_i32_0 = arith.constant 0 : i32
    return %arg0, %c0_i32 : i32, i32
  }
  func.func @transform_3(%arg0: i32) -> (i32, i32) {
    %c0_i32 = arith.constant 0 : i32
    %c0_i32_0 = arith.constant 0 : i32
    return %arg0, %c0_i32 : i32, i32
  }
}

module attributes {stable_mosaic.version = 11 : i64} {
  func.func @_fused_mlp_kernel(%arg0: i32, %arg1: memref<67x64xf32, #tpu.memory_space<vmem>>, %arg2: memref<1x64xf32, #tpu.memory_space<vmem>>, %arg3: memref<64x64xf32, #tpu.memory_space<vmem>>, %arg4: memref<1x64xf32, #tpu.memory_space<vmem>>, %arg5: memref<64x64xf32, #tpu.memory_space<vmem>>, %arg6: memref<1x64xf32, #tpu.memory_space<vmem>>, %arg7: memref<512x67xf32, #tpu.memory_space<vmem>>, %arg8: memref<64x64xf32, #tpu.memory_space<vmem>>) attributes {dimension_semantics = [#tpu.dimension_semantics<parallel>], iteration_bounds = array<i64: 1>, scalar_prefetch = 0 : i64, scratch_operands = 0 : i64, tpu.core_type = #tpu.core_type<tc>, window_params = [{pipeline_mode = #tpu.pipeline_mode<synchronous>, transform_indices = @transform_0, window_bounds = array<i64: 67, 64>}, {pipeline_mode = #tpu.pipeline_mode<synchronous>, transform_indices = @transform_1, window_bounds = array<i64: 1, 64>}, {pipeline_mode = #tpu.pipeline_mode<synchronous>, transform_indices = @transform_2, window_bounds = array<i64: 64, 64>}, {pipeline_mode = #tpu.pipeline_mode<synchronous>, transform_indices = @transform_3, window_bounds = array<i64: 1, 64>}, {pipeline_mode = #tpu.pipeline_mode<synchronous>, transform_indices = @transform_4, window_bounds = array<i64: 64, 64>}, {pipeline_mode = #tpu.pipeline_mode<synchronous>, transform_indices = @transform_5, window_bounds = array<i64: 1, 64>}, {transform_indices = @transform_6, window_bounds = array<i64: 512, 67>}, {transform_indices = @transform_7, window_bounds = array<i64: 64, 64>}]} {
    %c0 = arith.constant 0 : index
    %c0_0 = arith.constant 0 : index
    %0 = vector.load %arg7[%c0, %c0_0] : memref<512x67xf32, #tpu.memory_space<vmem>>, vector<512x67xf32>
    %c0_1 = arith.constant 0 : index
    %c0_2 = arith.constant 0 : index
    %1 = vector.load %arg1[%c0_1, %c0_2] : memref<67x64xf32, #tpu.memory_space<vmem>>, vector<67x64xf32>
    %c0_3 = arith.constant 0 : index
    %c0_4 = arith.constant 0 : index
    %2 = vector.load %arg2[%c0_3, %c0_4] : memref<1x64xf32, #tpu.memory_space<vmem>>, vector<1x64xf32>
    %cst = arith.constant dense<0.000000e+00> : vector<512x64xf32>
    %3 = tpu.matmul %0, %1, %cst {dimension_numbers = #tpu.dot_dimension_numbers<[1], [0], [0], [1], [0, 0, 1, 1], [], []>} : vector<512x67xf32>, vector<67x64xf32>, vector<512x64xf32> -> vector<512x64xf32>
    %4 = vector.broadcast %2 : vector<1x64xf32> to vector<512x64xf32>
    %5 = arith.addf %3, %4 : vector<512x64xf32>
    %cst_5 = arith.constant 0.000000e+00 : f32
    %6 = vector.broadcast %cst_5 : f32 to vector<512x64xf32>
    %7 = arith.maximumf %5, %6 : vector<512x64xf32>
    %c0_6 = arith.constant 0 : index
    %c0_7 = arith.constant 0 : index
    %8 = vector.load %arg3[%c0_6, %c0_7] : memref<64x64xf32, #tpu.memory_space<vmem>>, vector<64x64xf32>
    %c0_8 = arith.constant 0 : index
    %c0_9 = arith.constant 0 : index
    %9 = vector.load %arg4[%c0_8, %c0_9] : memref<1x64xf32, #tpu.memory_space<vmem>>, vector<1x64xf32>
    %cst_10 = arith.constant dense<0.000000e+00> : vector<512x64xf32>
    %10 = tpu.matmul %7, %8, %cst_10 {dimension_numbers = #tpu.dot_dimension_numbers<[1], [0], [0], [1], [0, 0, 1, 1], [], []>} : vector<512x64xf32>, vector<64x64xf32>, vector<512x64xf32> -> vector<512x64xf32>
    %11 = vector.broadcast %9 : vector<1x64xf32> to vector<512x64xf32>
    %12 = arith.addf %10, %11 : vector<512x64xf32>
    %cst_11 = arith.constant 0.000000e+00 : f32
    %13 = vector.broadcast %cst_11 : f32 to vector<512x64xf32>
    %14 = arith.maximumf %12, %13 : vector<512x64xf32>
    %c0_12 = arith.constant 0 : index
    %c0_13 = arith.constant 0 : index
    %15 = vector.load %arg5[%c0_12, %c0_13] : memref<64x64xf32, #tpu.memory_space<vmem>>, vector<64x64xf32>
    %c0_14 = arith.constant 0 : index
    %c0_15 = arith.constant 0 : index
    %16 = vector.load %arg6[%c0_14, %c0_15] : memref<1x64xf32, #tpu.memory_space<vmem>>, vector<1x64xf32>
    %cst_16 = arith.constant dense<0.000000e+00> : vector<512x64xf32>
    %17 = tpu.matmul %14, %15, %cst_16 {dimension_numbers = #tpu.dot_dimension_numbers<[1], [0], [0], [1], [0, 0, 1, 1], [], []>} : vector<512x64xf32>, vector<64x64xf32>, vector<512x64xf32> -> vector<512x64xf32>
    %18 = vector.broadcast %16 : vector<1x64xf32> to vector<512x64xf32>
    %19 = arith.addf %17, %18 : vector<512x64xf32>
    %20 = arith.addf %19, %7 : vector<512x64xf32>
    %cst_17 = arith.constant 0.000000e+00 : f32
    %21 = vector.broadcast %cst_17 : f32 to vector<512x64xf32>
    %22 = arith.maximumf %20, %21 : vector<512x64xf32>
    %23 = vector.shape_cast %22 : vector<512x64xf32> to vector<64x8x64xf32>
    %cst_18 = arith.constant dense<0xFF800000> : vector<64x64xf32>
    %24 = vector.multi_reduction <maximumf>, %23, %cst_18 [1] : vector<64x8x64xf32> to vector<64x64xf32>
    %c0_19 = arith.constant 0 : index
    %c0_20 = arith.constant 0 : index
    %25 = vector.load %arg8[%c0_19, %c0_20] : memref<64x64xf32, #tpu.memory_space<vmem>>, vector<64x64xf32>
    tpu.vector_store %arg8[%c0_19, %c0_20], %24 {strides = array<i32>} : memref<64x64xf32, #tpu.memory_space<vmem>>, vector<64x64xf32>,
    return
  }
  func.func @transform_0(%arg0: i32) -> (i32, i32) {
    %c0_i32 = arith.constant 0 : i32
    %c0_i32_0 = arith.constant 0 : i32
    %c0_i32_1 = arith.constant 0 : i32
    return %c0_i32, %c0_i32_0 : i32, i32
  }
  func.func @transform_1(%arg0: i32) -> (i32, i32) {
    %c0_i32 = arith.constant 0 : i32
    %c0_i32_0 = arith.constant 0 : i32
    %c0_i32_1 = arith.constant 0 : i32
    return %c0_i32, %c0_i32_0 : i32, i32
  }
  func.func @transform_2(%arg0: i32) -> (i32, i32) {
    %c0_i32 = arith.constant 0 : i32
    %c0_i32_0 = arith.constant 0 : i32
    %c0_i32_1 = arith.constant 0 : i32
    return %c0_i32, %c0_i32_0 : i32, i32
  }
  func.func @transform_3(%arg0: i32) -> (i32, i32) {
    %c0_i32 = arith.constant 0 : i32
    %c0_i32_0 = arith.constant 0 : i32
    %c0_i32_1 = arith.constant 0 : i32
    return %c0_i32, %c0_i32_0 : i32, i32
  }
  func.func @transform_4(%arg0: i32) -> (i32, i32) {
    %c0_i32 = arith.constant 0 : i32
    %c0_i32_0 = arith.constant 0 : i32
    %c0_i32_1 = arith.constant 0 : i32
    return %c0_i32, %c0_i32_0 : i32, i32
  }
  func.func @transform_5(%arg0: i32) -> (i32, i32) {
    %c0_i32 = arith.constant 0 : i32
    %c0_i32_0 = arith.constant 0 : i32
    %c0_i32_1 = arith.constant 0 : i32
    return %c0_i32, %c0_i32_0 : i32, i32
  }
  func.func @transform_6(%arg0: i32) -> (i32, i32) {
    %c0_i32 = arith.constant 0 : i32
    %c0_i32_0 = arith.constant 0 : i32
    return %arg0, %c0_i32 : i32, i32
  }
  func.func @transform_7(%arg0: i32) -> (i32, i32) {
    %c0_i32 = arith.constant 0 : i32
    %c0_i32_0 = arith.constant 0 : i32
    return %arg0, %c0_i32 : i32, i32
  }
}

module attributes {stable_mosaic.version = 11 : i64} {
  func.func @_fused_mlp_kernel(%arg0: i32, %arg1: memref<64x64xf32, #tpu.memory_space<vmem>>, %arg2: memref<1x64xf32, #tpu.memory_space<vmem>>, %arg3: memref<64x64xf32, #tpu.memory_space<vmem>>, %arg4: memref<1x64xf32, #tpu.memory_space<vmem>>, %arg5: memref<64x64xf32, #tpu.memory_space<vmem>>, %arg6: memref<64x64xf32, #tpu.memory_space<vmem>>) attributes {dimension_semantics = [#tpu.dimension_semantics<parallel>], iteration_bounds = array<i64: 1>, scalar_prefetch = 0 : i64, scratch_operands = 0 : i64, tpu.core_type = #tpu.core_type<tc>, window_params = [{pipeline_mode = #tpu.pipeline_mode<synchronous>, transform_indices = @transform_0, window_bounds = array<i64: 64, 64>}, {pipeline_mode = #tpu.pipeline_mode<synchronous>, transform_indices = @transform_1, window_bounds = array<i64: 1, 64>}, {pipeline_mode = #tpu.pipeline_mode<synchronous>, transform_indices = @transform_2, window_bounds = array<i64: 64, 64>}, {pipeline_mode = #tpu.pipeline_mode<synchronous>, transform_indices = @transform_3, window_bounds = array<i64: 1, 64>}, {transform_indices = @transform_4, window_bounds = array<i64: 64, 64>}, {transform_indices = @transform_5, window_bounds = array<i64: 64, 64>}]} {
    %c0 = arith.constant 0 : index
    %c0_0 = arith.constant 0 : index
    %0 = vector.load %arg5[%c0, %c0_0] : memref<64x64xf32, #tpu.memory_space<vmem>>, vector<64x64xf32>
    %c0_1 = arith.constant 0 : index
    %c0_2 = arith.constant 0 : index
    %1 = vector.load %arg1[%c0_1, %c0_2] : memref<64x64xf32, #tpu.memory_space<vmem>>, vector<64x64xf32>
    %c0_3 = arith.constant 0 : index
    %c0_4 = arith.constant 0 : index
    %2 = vector.load %arg2[%c0_3, %c0_4] : memref<1x64xf32, #tpu.memory_space<vmem>>, vector<1x64xf32>
    %cst = arith.constant dense<0.000000e+00> : vector<64x64xf32>
    %3 = tpu.matmul %0, %1, %cst {dimension_numbers = #tpu.dot_dimension_numbers<[1], [0], [0], [1], [0, 0, 1, 1], [], []>} : vector<64x64xf32>, vector<64x64xf32>, vector<64x64xf32> -> vector<64x64xf32>
    %4 = vector.broadcast %2 : vector<1x64xf32> to vector<64x64xf32>
    %5 = arith.addf %3, %4 : vector<64x64xf32>
    %cst_5 = arith.constant 0.000000e+00 : f32
    %6 = vector.broadcast %cst_5 : f32 to vector<64x64xf32>
    %7 = arith.maximumf %5, %6 : vector<64x64xf32>
    %c0_6 = arith.constant 0 : index
    %c0_7 = arith.constant 0 : index
    %8 = vector.load %arg3[%c0_6, %c0_7] : memref<64x64xf32, #tpu.memory_space<vmem>>, vector<64x64xf32>
    %c0_8 = arith.constant 0 : index
    %c0_9 = arith.constant 0 : index
    %9 = vector.load %arg4[%c0_8, %c0_9] : memref<1x64xf32, #tpu.memory_space<vmem>>, vector<1x64xf32>
    %cst_10 = arith.constant dense<0.000000e+00> : vector<64x64xf32>
    %10 = tpu.matmul %7, %8, %cst_10 {dimension_numbers = #tpu.dot_dimension_numbers<[1], [0], [0], [1], [0, 0, 1, 1], [], []>} : vector<64x64xf32>, vector<64x64xf32>, vector<64x64xf32> -> vector<64x64xf32>
    %11 = vector.broadcast %9 : vector<1x64xf32> to vector<64x64xf32>
    %12 = arith.addf %10, %11 : vector<64x64xf32>
    %13 = arith.addf %12, %0 : vector<64x64xf32>
    %cst_11 = arith.constant 0.000000e+00 : f32
    %14 = vector.broadcast %cst_11 : f32 to vector<64x64xf32>
    %15 = arith.maximumf %13, %14 : vector<64x64xf32>
    %c0_12 = arith.constant 0 : index
    %c0_13 = arith.constant 0 : index
    %16 = vector.load %arg6[%c0_12, %c0_13] : memref<64x64xf32, #tpu.memory_space<vmem>>, vector<64x64xf32>
    tpu.vector_store %arg6[%c0_12, %c0_13], %15 {strides = array<i32>} : memref<64x64xf32, #tpu.memory_space<vmem>>, vector<64x64xf32>,
    return
  }
  func.func @transform_0(%arg0: i32) -> (i32, i32) {
    %c0_i32 = arith.constant 0 : i32
    %c0_i32_0 = arith.constant 0 : i32
    %c0_i32_1 = arith.constant 0 : i32
    return %c0_i32, %c0_i32_0 : i32, i32
  }
  func.func @transform_1(%arg0: i32) -> (i32, i32) {
    %c0_i32 = arith.constant 0 : i32
    %c0_i32_0 = arith.constant 0 : i32
    %c0_i32_1 = arith.constant 0 : i32
    return %c0_i32, %c0_i32_0 : i32, i32
  }
  func.func @transform_2(%arg0: i32) -> (i32, i32) {
    %c0_i32 = arith.constant 0 : i32
    %c0_i32_0 = arith.constant 0 : i32
    %c0_i32_1 = arith.constant 0 : i32
    return %c0_i32, %c0_i32_0 : i32, i32
  }
  func.func @transform_3(%arg0: i32) -> (i32, i32) {
    %c0_i32 = arith.constant 0 : i32
    %c0_i32_0 = arith.constant 0 : i32
    %c0_i32_1 = arith.constant 0 : i32
    return %c0_i32, %c0_i32_0 : i32, i32
  }
  func.func @transform_4(%arg0: i32) -> (i32, i32) {
    %c0_i32 = arith.constant 0 : i32
    %c0_i32_0 = arith.constant 0 : i32
    return %arg0, %c0_i32 : i32, i32
  }
  func.func @transform_5(%arg0: i32) -> (i32, i32) {
    %c0_i32 = arith.constant 0 : i32
    %c0_i32_0 = arith.constant 0 : i32
    return %arg0, %c0_i32 : i32, i32
  }
}

module attributes {stable_mosaic.version = 11 : i64} {
  func.func @_sqdist_kernel(%arg0: i32, %arg1: i32, %arg2: memref<1x16x5xf32, #tpu.memory_space<vmem>>, %arg3: memref<1x32x5xf32, #tpu.memory_space<vmem>>, %arg4: memref<1x16x32xf32, #tpu.memory_space<vmem>>) attributes {dimension_semantics = [#tpu.dimension_semantics<parallel>, #tpu.dimension_semantics<parallel>], iteration_bounds = array<i64: 2, 1>, scalar_prefetch = 0 : i64, scratch_operands = 0 : i64, tpu.core_type = #tpu.core_type<tc>, window_params = [{transform_indices = @transform_0, window_bounds = array<i64: 1, 16, 5>}, {transform_indices = @transform_1, window_bounds = array<i64: 1, 32, 5>}, {transform_indices = @transform_2, window_bounds = array<i64: 1, 16, 32>}]} {
    %c0 = arith.constant 0 : index
    %c0_0 = arith.constant 0 : index
    %c0_1 = arith.constant 0 : index
    %0 = vector.load %arg2[%c0, %c0_0, %c0_1] : memref<1x16x5xf32, #tpu.memory_space<vmem>>, vector<1x16x5xf32>
    %1 = vector.shape_cast %0 : vector<1x16x5xf32> to vector<16x5xf32>
    %c0_2 = arith.constant 0 : index
    %c0_3 = arith.constant 0 : index
    %c0_4 = arith.constant 0 : index
    %2 = vector.load %arg3[%c0_2, %c0_3, %c0_4] : memref<1x32x5xf32, #tpu.memory_space<vmem>>, vector<1x32x5xf32>
    %3 = vector.shape_cast %2 : vector<1x32x5xf32> to vector<32x5xf32>
    %cst = arith.constant dense<0.000000e+00> : vector<16x32xf32>
    %4 = tpu.matmul %1, %3, %cst {dimension_numbers = #tpu.dot_dimension_numbers<[1], [1], [0], [0], [0, 0, 1, 0], [], []>} : vector<16x5xf32>, vector<32x5xf32>, vector<16x32xf32> -> vector<16x32xf32>
    %c0_5 = arith.constant 0 : index
    %c0_6 = arith.constant 0 : index
    %c0_7 = arith.constant 0 : index
    %5 = vector.load %arg4[%c0_5, %c0_6, %c0_7] : memref<1x16x32xf32, #tpu.memory_space<vmem>>, vector<1x16x32xf32>
    %6 = vector.shape_cast %5 : vector<1x16x32xf32> to vector<16x32xf32>
    %7 = vector.shape_cast %4 : vector<16x32xf32> to vector<1x16x32xf32>
    tpu.vector_store %arg4[%c0_5, %c0_6, %c0_7], %7 {strides = array<i32>} : memref<1x16x32xf32, #tpu.memory_space<vmem>>, vector<1x16x32xf32>,
    return
  }
  func.func @transform_0(%arg0: i32, %arg1: i32) -> (i32, i32, i32) {
    %c0_i32 = arith.constant 0 : i32
    %c0_i32_0 = arith.constant 0 : i32
    return %arg0, %arg1, %c0_i32 : i32, i32, i32
  }
  func.func @transform_1(%arg0: i32, %arg1: i32) -> (i32, i32, i32) {
    %c0_i32 = arith.constant 0 : i32
    %c0_i32_0 = arith.constant 0 : i32
    %c0_i32_1 = arith.constant 0 : i32
    return %arg0, %c0_i32, %c0_i32_0 : i32, i32, i32
  }
  func.func @transform_2(%arg0: i32, %arg1: i32) -> (i32, i32, i32) {
    %c0_i32 = arith.constant 0 : i32
    %c0_i32_0 = arith.constant 0 : i32
    return %arg0, %arg1, %c0_i32 : i32, i32, i32
  }
}

module attributes {stable_mosaic.version = 11 : i64} {
  func.func @_fused_mlp_kernel(%arg0: i32, %arg1: memref<128x128xf32, #tpu.memory_space<vmem>>, %arg2: memref<1x128xf32, #tpu.memory_space<vmem>>, %arg3: memref<128x128xf32, #tpu.memory_space<vmem>>, %arg4: memref<1x128xf32, #tpu.memory_space<vmem>>, %arg5: memref<32x128xf32, #tpu.memory_space<vmem>>, %arg6: memref<32x128xf32, #tpu.memory_space<vmem>>) attributes {dimension_semantics = [#tpu.dimension_semantics<parallel>], iteration_bounds = array<i64: 1>, scalar_prefetch = 0 : i64, scratch_operands = 0 : i64, tpu.core_type = #tpu.core_type<tc>, window_params = [{pipeline_mode = #tpu.pipeline_mode<synchronous>, transform_indices = @transform_0, window_bounds = array<i64: 128, 128>}, {pipeline_mode = #tpu.pipeline_mode<synchronous>, transform_indices = @transform_1, window_bounds = array<i64: 1, 128>}, {pipeline_mode = #tpu.pipeline_mode<synchronous>, transform_indices = @transform_2, window_bounds = array<i64: 128, 128>}, {pipeline_mode = #tpu.pipeline_mode<synchronous>, transform_indices = @transform_3, window_bounds = array<i64: 1, 128>}, {transform_indices = @transform_4, window_bounds = array<i64: 32, 128>}, {transform_indices = @transform_5, window_bounds = array<i64: 32, 128>}]} {
    %c0 = arith.constant 0 : index
    %c0_0 = arith.constant 0 : index
    %0 = vector.load %arg5[%c0, %c0_0] : memref<32x128xf32, #tpu.memory_space<vmem>>, vector<32x128xf32>
    %c0_1 = arith.constant 0 : index
    %c0_2 = arith.constant 0 : index
    %1 = vector.load %arg1[%c0_1, %c0_2] : memref<128x128xf32, #tpu.memory_space<vmem>>, vector<128x128xf32>
    %c0_3 = arith.constant 0 : index
    %c0_4 = arith.constant 0 : index
    %2 = vector.load %arg2[%c0_3, %c0_4] : memref<1x128xf32, #tpu.memory_space<vmem>>, vector<1x128xf32>
    %cst = arith.constant dense<0.000000e+00> : vector<32x128xf32>
    %3 = tpu.matmul %0, %1, %cst {dimension_numbers = #tpu.dot_dimension_numbers<[1], [0], [0], [1], [0, 0, 1, 1], [], []>} : vector<32x128xf32>, vector<128x128xf32>, vector<32x128xf32> -> vector<32x128xf32>
    %4 = vector.broadcast %2 : vector<1x128xf32> to vector<32x128xf32>
    %5 = arith.addf %3, %4 : vector<32x128xf32>
    %cst_5 = arith.constant 0.000000e+00 : f32
    %6 = vector.broadcast %cst_5 : f32 to vector<32x128xf32>
    %7 = arith.maximumf %5, %6 : vector<32x128xf32>
    %c0_6 = arith.constant 0 : index
    %c0_7 = arith.constant 0 : index
    %8 = vector.load %arg3[%c0_6, %c0_7] : memref<128x128xf32, #tpu.memory_space<vmem>>, vector<128x128xf32>
    %c0_8 = arith.constant 0 : index
    %c0_9 = arith.constant 0 : index
    %9 = vector.load %arg4[%c0_8, %c0_9] : memref<1x128xf32, #tpu.memory_space<vmem>>, vector<1x128xf32>
    %cst_10 = arith.constant dense<0.000000e+00> : vector<32x128xf32>
    %10 = tpu.matmul %7, %8, %cst_10 {dimension_numbers = #tpu.dot_dimension_numbers<[1], [0], [0], [1], [0, 0, 1, 1], [], []>} : vector<32x128xf32>, vector<128x128xf32>, vector<32x128xf32> -> vector<32x128xf32>
    %11 = vector.broadcast %9 : vector<1x128xf32> to vector<32x128xf32>
    %12 = arith.addf %10, %11 : vector<32x128xf32>
    %13 = arith.addf %12, %0 : vector<32x128xf32>
    %cst_11 = arith.constant 0.000000e+00 : f32
    %14 = vector.broadcast %cst_11 : f32 to vector<32x128xf32>
    %15 = arith.maximumf %13, %14 : vector<32x128xf32>
    %c0_12 = arith.constant 0 : index
    %c0_13 = arith.constant 0 : index
    %16 = vector.load %arg6[%c0_12, %c0_13] : memref<32x128xf32, #tpu.memory_space<vmem>>, vector<32x128xf32>
    tpu.vector_store %arg6[%c0_12, %c0_13], %15 {strides = array<i32>} : memref<32x128xf32, #tpu.memory_space<vmem>>, vector<32x128xf32>,
    return
  }
  func.func @transform_0(%arg0: i32) -> (i32, i32) {
    %c0_i32 = arith.constant 0 : i32
    %c0_i32_0 = arith.constant 0 : i32
    %c0_i32_1 = arith.constant 0 : i32
    return %c0_i32, %c0_i32_0 : i32, i32
  }
  func.func @transform_1(%arg0: i32) -> (i32, i32) {
    %c0_i32 = arith.constant 0 : i32
    %c0_i32_0 = arith.constant 0 : i32
    %c0_i32_1 = arith.constant 0 : i32
    return %c0_i32, %c0_i32_0 : i32, i32
  }
  func.func @transform_2(%arg0: i32) -> (i32, i32) {
    %c0_i32 = arith.constant 0 : i32
    %c0_i32_0 = arith.constant 0 : i32
    %c0_i32_1 = arith.constant 0 : i32
    return %c0_i32, %c0_i32_0 : i32, i32
  }
  func.func @transform_3(%arg0: i32) -> (i32, i32) {
    %c0_i32 = arith.constant 0 : i32
    %c0_i32_0 = arith.constant 0 : i32
    %c0_i32_1 = arith.constant 0 : i32
    return %c0_i32, %c0_i32_0 : i32, i32
  }
  func.func @transform_4(%arg0: i32) -> (i32, i32) {
    %c0_i32 = arith.constant 0 : i32
    %c0_i32_0 = arith.constant 0 : i32
    return %arg0, %c0_i32 : i32, i32
  }
  func.func @transform_5(%arg0: i32) -> (i32, i32) {
    %c0_i32 = arith.constant 0 : i32
    %c0_i32_0 = arith.constant 0 : i32
    return %arg0, %c0_i32 : i32, i32
  }
}

module attributes {stable_mosaic.version = 11 : i64} {
  func.func @_fused_mlp_kernel(%arg0: i32, %arg1: memref<131x128xf32, #tpu.memory_space<vmem>>, %arg2: memref<1x128xf32, #tpu.memory_space<vmem>>, %arg3: memref<128x128xf32, #tpu.memory_space<vmem>>, %arg4: memref<1x128xf32, #tpu.memory_space<vmem>>, %arg5: memref<128x128xf32, #tpu.memory_space<vmem>>, %arg6: memref<1x128xf32, #tpu.memory_space<vmem>>, %arg7: memref<256x131xf32, #tpu.memory_space<vmem>>, %arg8: memref<32x128xf32, #tpu.memory_space<vmem>>) attributes {dimension_semantics = [#tpu.dimension_semantics<parallel>], iteration_bounds = array<i64: 1>, scalar_prefetch = 0 : i64, scratch_operands = 0 : i64, tpu.core_type = #tpu.core_type<tc>, window_params = [{pipeline_mode = #tpu.pipeline_mode<synchronous>, transform_indices = @transform_0, window_bounds = array<i64: 131, 128>}, {pipeline_mode = #tpu.pipeline_mode<synchronous>, transform_indices = @transform_1, window_bounds = array<i64: 1, 128>}, {pipeline_mode = #tpu.pipeline_mode<synchronous>, transform_indices = @transform_2, window_bounds = array<i64: 128, 128>}, {pipeline_mode = #tpu.pipeline_mode<synchronous>, transform_indices = @transform_3, window_bounds = array<i64: 1, 128>}, {pipeline_mode = #tpu.pipeline_mode<synchronous>, transform_indices = @transform_4, window_bounds = array<i64: 128, 128>}, {pipeline_mode = #tpu.pipeline_mode<synchronous>, transform_indices = @transform_5, window_bounds = array<i64: 1, 128>}, {transform_indices = @transform_6, window_bounds = array<i64: 256, 131>}, {transform_indices = @transform_7, window_bounds = array<i64: 32, 128>}]} {
    %c0 = arith.constant 0 : index
    %c0_0 = arith.constant 0 : index
    %0 = vector.load %arg7[%c0, %c0_0] : memref<256x131xf32, #tpu.memory_space<vmem>>, vector<256x131xf32>
    %c0_1 = arith.constant 0 : index
    %c0_2 = arith.constant 0 : index
    %1 = vector.load %arg1[%c0_1, %c0_2] : memref<131x128xf32, #tpu.memory_space<vmem>>, vector<131x128xf32>
    %c0_3 = arith.constant 0 : index
    %c0_4 = arith.constant 0 : index
    %2 = vector.load %arg2[%c0_3, %c0_4] : memref<1x128xf32, #tpu.memory_space<vmem>>, vector<1x128xf32>
    %cst = arith.constant dense<0.000000e+00> : vector<256x128xf32>
    %3 = tpu.matmul %0, %1, %cst {dimension_numbers = #tpu.dot_dimension_numbers<[1], [0], [0], [1], [0, 0, 1, 1], [], []>} : vector<256x131xf32>, vector<131x128xf32>, vector<256x128xf32> -> vector<256x128xf32>
    %4 = vector.broadcast %2 : vector<1x128xf32> to vector<256x128xf32>
    %5 = arith.addf %3, %4 : vector<256x128xf32>
    %cst_5 = arith.constant 0.000000e+00 : f32
    %6 = vector.broadcast %cst_5 : f32 to vector<256x128xf32>
    %7 = arith.maximumf %5, %6 : vector<256x128xf32>
    %c0_6 = arith.constant 0 : index
    %c0_7 = arith.constant 0 : index
    %8 = vector.load %arg3[%c0_6, %c0_7] : memref<128x128xf32, #tpu.memory_space<vmem>>, vector<128x128xf32>
    %c0_8 = arith.constant 0 : index
    %c0_9 = arith.constant 0 : index
    %9 = vector.load %arg4[%c0_8, %c0_9] : memref<1x128xf32, #tpu.memory_space<vmem>>, vector<1x128xf32>
    %cst_10 = arith.constant dense<0.000000e+00> : vector<256x128xf32>
    %10 = tpu.matmul %7, %8, %cst_10 {dimension_numbers = #tpu.dot_dimension_numbers<[1], [0], [0], [1], [0, 0, 1, 1], [], []>} : vector<256x128xf32>, vector<128x128xf32>, vector<256x128xf32> -> vector<256x128xf32>
    %11 = vector.broadcast %9 : vector<1x128xf32> to vector<256x128xf32>
    %12 = arith.addf %10, %11 : vector<256x128xf32>
    %cst_11 = arith.constant 0.000000e+00 : f32
    %13 = vector.broadcast %cst_11 : f32 to vector<256x128xf32>
    %14 = arith.maximumf %12, %13 : vector<256x128xf32>
    %c0_12 = arith.constant 0 : index
    %c0_13 = arith.constant 0 : index
    %15 = vector.load %arg5[%c0_12, %c0_13] : memref<128x128xf32, #tpu.memory_space<vmem>>, vector<128x128xf32>
    %c0_14 = arith.constant 0 : index
    %c0_15 = arith.constant 0 : index
    %16 = vector.load %arg6[%c0_14, %c0_15] : memref<1x128xf32, #tpu.memory_space<vmem>>, vector<1x128xf32>
    %cst_16 = arith.constant dense<0.000000e+00> : vector<256x128xf32>
    %17 = tpu.matmul %14, %15, %cst_16 {dimension_numbers = #tpu.dot_dimension_numbers<[1], [0], [0], [1], [0, 0, 1, 1], [], []>} : vector<256x128xf32>, vector<128x128xf32>, vector<256x128xf32> -> vector<256x128xf32>
    %18 = vector.broadcast %16 : vector<1x128xf32> to vector<256x128xf32>
    %19 = arith.addf %17, %18 : vector<256x128xf32>
    %20 = arith.addf %19, %7 : vector<256x128xf32>
    %cst_17 = arith.constant 0.000000e+00 : f32
    %21 = vector.broadcast %cst_17 : f32 to vector<256x128xf32>
    %22 = arith.maximumf %20, %21 : vector<256x128xf32>
    %23 = vector.shape_cast %22 : vector<256x128xf32> to vector<32x8x128xf32>
    %cst_18 = arith.constant dense<0xFF800000> : vector<32x128xf32>
    %24 = vector.multi_reduction <maximumf>, %23, %cst_18 [1] : vector<32x8x128xf32> to vector<32x128xf32>
    %c0_19 = arith.constant 0 : index
    %c0_20 = arith.constant 0 : index
    %25 = vector.load %arg8[%c0_19, %c0_20] : memref<32x128xf32, #tpu.memory_space<vmem>>, vector<32x128xf32>
    tpu.vector_store %arg8[%c0_19, %c0_20], %24 {strides = array<i32>} : memref<32x128xf32, #tpu.memory_space<vmem>>, vector<32x128xf32>,
    return
  }
  func.func @transform_0(%arg0: i32) -> (i32, i32) {
    %c0_i32 = arith.constant 0 : i32
    %c0_i32_0 = arith.constant 0 : i32
    %c0_i32_1 = arith.constant 0 : i32
    return %c0_i32, %c0_i32_0 : i32, i32
  }
  func.func @transform_1(%arg0: i32) -> (i32, i32) {
    %c0_i32 = arith.constant 0 : i32
    %c0_i32_0 = arith.constant 0 : i32
    %c0_i32_1 = arith.constant 0 : i32
    return %c0_i32, %c0_i32_0 : i32, i32
  }
  func.func @transform_2(%arg0: i32) -> (i32, i32) {
    %c0_i32 = arith.constant 0 : i32
    %c0_i32_0 = arith.constant 0 : i32
    %c0_i32_1 = arith.constant 0 : i32
    return %c0_i32, %c0_i32_0 : i32, i32
  }
  func.func @transform_3(%arg0: i32) -> (i32, i32) {
    %c0_i32 = arith.constant 0 : i32
    %c0_i32_0 = arith.constant 0 : i32
    %c0_i32_1 = arith.constant 0 : i32
    return %c0_i32, %c0_i32_0 : i32, i32
  }
  func.func @transform_4(%arg0: i32) -> (i32, i32) {
    %c0_i32 = arith.constant 0 : i32
    %c0_i32_0 = arith.constant 0 : i32
    %c0_i32_1 = arith.constant 0 : i32
    return %c0_i32, %c0_i32_0 : i32, i32
  }
  func.func @transform_5(%arg0: i32) -> (i32, i32) {
    %c0_i32 = arith.constant 0 : i32
    %c0_i32_0 = arith.constant 0 : i32
    %c0_i32_1 = arith.constant 0 : i32
    return %c0_i32, %c0_i32_0 : i32, i32
  }
  func.func @transform_6(%arg0: i32) -> (i32, i32) {
    %c0_i32 = arith.constant 0 : i32
    %c0_i32_0 = arith.constant 0 : i32
    return %arg0, %c0_i32 : i32, i32
  }
  func.func @transform_7(%arg0: i32) -> (i32, i32) {
    %c0_i32 = arith.constant 0 : i32
    %c0_i32_0 = arith.constant 0 : i32
    return %arg0, %c0_i32 : i32, i32
  }
}

module attributes {stable_mosaic.version = 11 : i64} {
  func.func @_fused_mlp_kernel(%arg0: i32, %arg1: memref<128x512xf32, #tpu.memory_space<vmem>>, %arg2: memref<1x512xf32, #tpu.memory_space<vmem>>, %arg3: memref<512x256xf32, #tpu.memory_space<vmem>>, %arg4: memref<1x256xf32, #tpu.memory_space<vmem>>, %arg5: memref<256x40xf32, #tpu.memory_space<vmem>>, %arg6: memref<1x40xf32, #tpu.memory_space<vmem>>, %arg7: memref<8x128xf32, #tpu.memory_space<vmem>>, %arg8: memref<8x40xf32, #tpu.memory_space<vmem>>) attributes {dimension_semantics = [#tpu.dimension_semantics<parallel>], iteration_bounds = array<i64: 1>, scalar_prefetch = 0 : i64, scratch_operands = 0 : i64, tpu.core_type = #tpu.core_type<tc>, window_params = [{pipeline_mode = #tpu.pipeline_mode<synchronous>, transform_indices = @transform_0, window_bounds = array<i64: 128, 512>}, {pipeline_mode = #tpu.pipeline_mode<synchronous>, transform_indices = @transform_1, window_bounds = array<i64: 1, 512>}, {pipeline_mode = #tpu.pipeline_mode<synchronous>, transform_indices = @transform_2, window_bounds = array<i64: 512, 256>}, {pipeline_mode = #tpu.pipeline_mode<synchronous>, transform_indices = @transform_3, window_bounds = array<i64: 1, 256>}, {pipeline_mode = #tpu.pipeline_mode<synchronous>, transform_indices = @transform_4, window_bounds = array<i64: 256, 40>}, {pipeline_mode = #tpu.pipeline_mode<synchronous>, transform_indices = @transform_5, window_bounds = array<i64: 1, 40>}, {transform_indices = @transform_6, window_bounds = array<i64: 8, 128>}, {transform_indices = @transform_7, window_bounds = array<i64: 8, 40>}]} {
    %c0 = arith.constant 0 : index
    %c0_0 = arith.constant 0 : index
    %0 = vector.load %arg7[%c0, %c0_0] : memref<8x128xf32, #tpu.memory_space<vmem>>, vector<8x128xf32>
    %c0_1 = arith.constant 0 : index
    %c0_2 = arith.constant 0 : index
    %1 = vector.load %arg1[%c0_1, %c0_2] : memref<128x512xf32, #tpu.memory_space<vmem>>, vector<128x512xf32>
    %c0_3 = arith.constant 0 : index
    %c0_4 = arith.constant 0 : index
    %2 = vector.load %arg2[%c0_3, %c0_4] : memref<1x512xf32, #tpu.memory_space<vmem>>, vector<1x512xf32>
    %cst = arith.constant dense<0.000000e+00> : vector<8x512xf32>
    %3 = tpu.matmul %0, %1, %cst {dimension_numbers = #tpu.dot_dimension_numbers<[1], [0], [0], [1], [0, 0, 1, 1], [], []>} : vector<8x128xf32>, vector<128x512xf32>, vector<8x512xf32> -> vector<8x512xf32>
    %4 = vector.broadcast %2 : vector<1x512xf32> to vector<8x512xf32>
    %5 = arith.addf %3, %4 : vector<8x512xf32>
    %cst_5 = arith.constant 0.000000e+00 : f32
    %6 = vector.broadcast %cst_5 : f32 to vector<8x512xf32>
    %7 = arith.maximumf %5, %6 : vector<8x512xf32>
    %c0_6 = arith.constant 0 : index
    %c0_7 = arith.constant 0 : index
    %8 = vector.load %arg3[%c0_6, %c0_7] : memref<512x256xf32, #tpu.memory_space<vmem>>, vector<512x256xf32>
    %c0_8 = arith.constant 0 : index
    %c0_9 = arith.constant 0 : index
    %9 = vector.load %arg4[%c0_8, %c0_9] : memref<1x256xf32, #tpu.memory_space<vmem>>, vector<1x256xf32>
    %cst_10 = arith.constant dense<0.000000e+00> : vector<8x256xf32>
    %10 = tpu.matmul %7, %8, %cst_10 {dimension_numbers = #tpu.dot_dimension_numbers<[1], [0], [0], [1], [0, 0, 1, 1], [], []>} : vector<8x512xf32>, vector<512x256xf32>, vector<8x256xf32> -> vector<8x256xf32>
    %11 = vector.broadcast %9 : vector<1x256xf32> to vector<8x256xf32>
    %12 = arith.addf %10, %11 : vector<8x256xf32>
    %cst_11 = arith.constant 0.000000e+00 : f32
    %13 = vector.broadcast %cst_11 : f32 to vector<8x256xf32>
    %14 = arith.maximumf %12, %13 : vector<8x256xf32>
    %c0_12 = arith.constant 0 : index
    %c0_13 = arith.constant 0 : index
    %15 = vector.load %arg5[%c0_12, %c0_13] : memref<256x40xf32, #tpu.memory_space<vmem>>, vector<256x40xf32>
    %c0_14 = arith.constant 0 : index
    %c0_15 = arith.constant 0 : index
    %16 = vector.load %arg6[%c0_14, %c0_15] : memref<1x40xf32, #tpu.memory_space<vmem>>, vector<1x40xf32>
    %cst_16 = arith.constant dense<0.000000e+00> : vector<8x40xf32>
    %17 = tpu.matmul %14, %15, %cst_16 {dimension_numbers = #tpu.dot_dimension_numbers<[1], [0], [0], [1], [0, 0, 1, 1], [], []>} : vector<8x256xf32>, vector<256x40xf32>, vector<8x40xf32> -> vector<8x40xf32>
    %18 = vector.broadcast %16 : vector<1x40xf32> to vector<8x40xf32>
    %19 = arith.addf %17, %18 : vector<8x40xf32>
    %c0_17 = arith.constant 0 : index
    %c0_18 = arith.constant 0 : index
    %20 = vector.load %arg8[%c0_17, %c0_18] : memref<8x40xf32, #tpu.memory_space<vmem>>, vector<8x40xf32>
    tpu.vector_store %arg8[%c0_17, %c0_18], %19 {strides = array<i32>} : memref<8x40xf32, #tpu.memory_space<vmem>>, vector<8x40xf32>,
    return
  }
  func.func @transform_0(%arg0: i32) -> (i32, i32) {
    %c0_i32 = arith.constant 0 : i32
    %c0_i32_0 = arith.constant 0 : i32
    %c0_i32_1 = arith.constant 0 : i32
    return %c0_i32, %c0_i32_0 : i32, i32
  }
  func.func @transform_1(%arg0: i32) -> (i32, i32) {
    %c0_i32 = arith.constant 0 : i32
    %c0_i32_0 = arith.constant 0 : i32
    %c0_i32_1 = arith.constant 0 : i32
    return %c0_i32, %c0_i32_0 : i32, i32
  }
  func.func @transform_2(%arg0: i32) -> (i32, i32) {
    %c0_i32 = arith.constant 0 : i32
    %c0_i32_0 = arith.constant 0 : i32
    %c0_i32_1 = arith.constant 0 : i32
    return %c0_i32, %c0_i32_0 : i32, i32
  }
  func.func @transform_3(%arg0: i32) -> (i32, i32) {
    %c0_i32 = arith.constant 0 : i32
    %c0_i32_0 = arith.constant 0 : i32
    %c0_i32_1 = arith.constant 0 : i32
    return %c0_i32, %c0_i32_0 : i32, i32
  }
  func.func @transform_4(%arg0: i32) -> (i32, i32) {
    %c0_i32 = arith.constant 0 : i32
    %c0_i32_0 = arith.constant 0 : i32
    %c0_i32_1 = arith.constant 0 : i32
    return %c0_i32, %c0_i32_0 : i32, i32
  }
  func.func @transform_5(%arg0: i32) -> (i32, i32) {
    %c0_i32 = arith.constant 0 : i32
    %c0_i32_0 = arith.constant 0 : i32
    %c0_i32_1 = arith.constant 0 : i32
    return %c0_i32, %c0_i32_0 : i32, i32
  }
  func.func @transform_6(%arg0: i32) -> (i32, i32) {
    %c0_i32 = arith.constant 0 : i32
    %c0_i32_0 = arith.constant 0 : i32
    return %arg0, %c0_i32 : i32, i32
  }
  func.func @transform_7(%arg0: i32) -> (i32, i32) {
    %c0_i32 = arith.constant 0 : i32
    %c0_i32_0 = arith.constant 0 : i32
    return %arg0, %c0_i32 : i32, i32
  }
}

</mosaic_0001>

<llo_original>
// kernel: custom-call.20
$region0: #{custom-call.20}
  %s0 = inlined_call_operand.vmem [shape: f32[2,64], index: 0, kind: output, shape index: {}]

// kernel: neg.2
$region0: #{neg.2}
  #allocation0 [shape = 's32[1]{0}', space=sflag, size = 0x4, scoped, tag = 'scoped memory for neg.2']
  %s0 = inlined_call_operand.vmem [shape: f32[2,32,64], index: 0, kind: input, shape index: {}]
  %s1 = inlined_call_operand.vmem [shape: f32[2,32,64], index: 1, kind: output, shape index: {}]
  %v2 = vld [vmem:[%s0] sm:$0xff]
  %3 = xla_tuple %v2
  %4 = xla_tuple %3
  %v5 = vxor.u32 %v2, 2147483648
  %6 = xla_tuple %v5
  %7 = vst [vmem:[%s1] sm:$0xff] %v5
  %s8 = scalar_lea.vmem %s0, 32
  %v9 = vld [vmem:[%s8] sm:$0xff]
  %10 = xla_tuple %v9
  %11 = xla_tuple %10
  %v12 = vxor.u32 %v9, 2147483648
  %13 = xla_tuple %v12
  %s14 = scalar_lea.vmem %s1, 32
  %15 = vst [vmem:[%s14] sm:$0xff] %v12
  %s16 = scalar_lea.vmem %s0, 8
  %v17 = vld [vmem:[%s16] sm:$0xff]
  %18 = xla_tuple %v17
  %19 = xla_tuple %18
  %v20 = vxor.u32 %v17, 2147483648
  %21 = xla_tuple %v20
  %s22 = scalar_lea.vmem %s1, 8
  %23 = vst [vmem:[%s22] sm:$0xff] %v20
  %s24 = scalar_lea.vmem %s0, 40
  %v25 = vld [vmem:[%s24] sm:$0xff]
  %26 = xla_tuple %v25
  %27 = xla_tuple %26
  %v28 = vxor.u32 %v25, 2147483648
  %29 = xla_tuple %v28
  %s30 = scalar_lea.vmem %s1, 40
  %31 = vst [vmem:[%s30] sm:$0xff] %v28
  %s32 = scalar_lea.vmem %s0, 16
  %v33 = vld [vmem:[%s32] sm:$0xff]
  %34 = xla_tuple %v33
  %35 = xla_tuple %34
  %v36 = vxor.u32 %v33, 2147483648
  %37 = xla_tuple %v36
  %s38 = scalar_lea.vmem %s1, 16
  %39 = vst [vmem:[%s38] sm:$0xff] %v36
  %s40 = scalar_lea.vmem %s0, 48
  %v41 = vld [vmem:[%s40] sm:$0xff]
  %42 = xla_tuple %v41
  %43 = xla_tuple %42
  %v44 = vxor.u32 %v41, 2147483648
  %45 = xla_tuple %v44
  %s46 = scalar_lea.vmem %s1, 48
  %47 = vst [vmem:[%s46] sm:$0xff] %v44
  %s48 = scalar_lea.vmem %s0, 24
  %v49 = vld [vmem:[%s48] sm:$0xff]
  %50 = xla_tuple %v49
  %51 = xla_tuple %50
  %v52 = vxor.u32 %v49, 2147483648
  %53 = xla_tuple %v52
  %s54 = scalar_lea.vmem %s1, 24
  %55 = vst [vmem:[%s54] sm:$0xff] %v52
  %s56 = scalar_lea.vmem %s0, 56
  %v57 = vld [vmem:[%s56] sm:$0xff]
  %58 = xla_tuple %v57
  %59 = xla_tuple %58
  %v60 = vxor.u32 %v57, 2147483648
  %61 = xla_tuple %v60
  %s62 = scalar_lea.vmem %s1, 56
  %63 = vst [vmem:[%s62] sm:$0xff] %v60

// kernel: model_forward.9
$region0: #{model_forward.9}
  #allocation0 [shape = 'u32[]', space=smem, size = 0x4, offset = 0x4, fixed_abs, tag = 'smem constant byte address 0x4 - core index']
  #allocation1 [shape = 'u32[72,128]{1,0:T(1,128)}', space=vmem, size = 0x9000, scoped, tag = 'internal scratch']
  %s0 = inlined_call_operand.vmem [shape: f32[2,32,5], index: 0, kind: input, shape index: {}]
  %s1 = inlined_call_operand.vmem [shape: f32[2,64,5], index: 1, kind: input, shape index: {}]
  %s2 = inlined_call_operand.vmem [shape: f32[2,32,64], index: 2, kind: output, shape index: {}]
  %s3 = sld [smem:[#allocation0]]
  $region41: #{model_forward.9} parent=0
    _
  %s5 = ssub.s32 1, %s3
  %s6 = scalar_select 0, %s5, %s3
  loop: start=0, step=1, limit=4
  $region2: #{model_forward.9} parent=0 // loop_pre_header
    _
  $region3: #{model_forward.9} parent=0 // loop_header
    %s8 = sphi 0, %s12
    %p9 = scmp.ge.s32.totalorder %s8, 4
    %s15 = sphi 0, %s27
    %s16 = sphi 0, %s23
    %s17 = sphi 0, %s15
    %s18 = sphi 0, %s16
    %s19 = sphi 0, %s17
    %s20 = sphi 0, %s18
    %s32 = sphi 0, %s34
    %s35 = sphi 0, %s32
    %s36 = sphi 0, %s35
    %s52 = sphi 0, %s36
    %s58 = sphi 0, %s60
    %s61 = sphi 0, %s58
    %s62 = sphi 0, %s61
    %s78 = sphi 0, %s62
    %s86 = sphi 0, %s88
    %s89 = sphi 0, %s86
    %s90 = sphi 0, %s89
    %s106 = sphi 0, %s90
  $region4: #{model_forward.9} parent=0 // loop_header_branch
    %11 = sbr.rel (%p9) target = $region8
  $region5: #{model_forward.9} parent=0 // loop_body
    %s13 = ssub.s32 %s8, 1
    %s14 = ssub.s32 %s8, 2
    %s21 = sadd.s32 1, %s16
    %p22 = scmp.ge.s32.totalorder %s21, 1
    %s23 = scalar_select %p22, 0, %s21
    %s24 = sadd.s32 1, %s15
    %s25 = scalar_select %p22, %s24, %s15
    %p26 = scmp.ge.s32.totalorder %s25, 2
    %s27 = scalar_select %p26, 0, %s25
    %s28 = ssub.s32 %s15, %s27
    %s29 = ssub.s32 %s16, %s23
    %s30 = sor.u32 %s28, %s29
    %p31 = scmp.eq.s32.totalorder %s30, 0
    %s33 = sadd.s32 %s32, 1
    %s34 = scalar_select %p31, %s32, %s33
    %p37 = pneg %p31
    %p38 = scmp.eq.s32.totalorder %s8, 1
    %p39 = por %p37, %p38
    %p40 = scmp.ne.s32.totalorder %s32, %s35
    %p41 = scmp.eq.s32.totalorder %s8, 0
    %p42 = por %p40, %p41
    %p43 = scmp.ne.s32.totalorder %s32, %s35
    %p44 = scmp.eq.s32.totalorder %s13, 1
    %p45 = por %p43, %p44
    %p46 = scmp.ne.s32.totalorder %s35, %s36
    %p47 = scmp.eq.s32.totalorder %s13, 0
    %p48 = por %p46, %p47
    %p49 = scmp.ne.s32.totalorder %s35, %s36
    %p50 = scmp.eq.s32.totalorder %s14, 1
    %p51 = por %p49, %p50
    %p53 = scmp.ne.s32.totalorder %s36, %s52
    %p54 = scmp.eq.s32.totalorder %s14, 0
    %p55 = por %p53, %p54
    %s56 = ssub.s32 %s15, %s27
    %p57 = scmp.eq.s32.totalorder %s56, 0
    %s59 = sadd.s32 %s58, 1
    %s60 = scalar_select %p57, %s58, %s59
    %p63 = pneg %p57
    %p64 = scmp.eq.s32.totalorder %s8, 1
    %p65 = por %p63, %p64
    %p66 = scmp.ne.s32.totalorder %s58, %s61
    %p67 = scmp.eq.s32.totalorder %s8, 0
    %p68 = por %p66, %p67
    %p69 = scmp.ne.s32.totalorder %s58, %s61
    %p70 = scmp.eq.s32.totalorder %s13, 1
    %p71 = por %p69, %p70
    %p72 = scmp.ne.s32.totalorder %s61, %s62
    %p73 = scmp.eq.s32.totalorder %s13, 0
    %p74 = por %p72, %p73
    %p75 = scmp.ne.s32.totalorder %s61, %s62
    %p76 = scmp.eq.s32.totalorder %s14, 1
    %p77 = por %p75, %p76
    %p79 = scmp.ne.s32.totalorder %s62, %s78
    %p80 = scmp.eq.s32.totalorder %s14, 0
    %p81 = por %p79, %p80
    %s82 = ssub.s32 %s15, %s27
    %s83 = ssub.s32 %s16, %s23
    %s84 = sor.u32 %s82, %s83
    %p85 = scmp.eq.s32.totalorder %s84, 0
    %s87 = sadd.s32 %s86, 1
    %s88 = scalar_select %p85, %s86, %s87
    %p91 = pneg %p85
    %p92 = scmp.eq.s32.totalorder %s8, 1
    %p93 = por %p91, %p92
    %p94 = scmp.ne.s32.totalorder %s86, %s89
    %p95 = scmp.eq.s32.totalorder %s8, 0
    %p96 = por %p94, %p95
    %p97 = scmp.ne.s32.totalorder %s86, %s89
    %p98 = scmp.eq.s32.totalorder %s13, 1
    %p99 = por %p97, %p98
    %p100 = scmp.ne.s32.totalorder %s89, %s90
    %p101 = scmp.eq.s32.totalorder %s13, 0
    %p102 = por %p100, %p101
    %p103 = scmp.ne.s32.totalorder %s89, %s90
    %p104 = scmp.eq.s32.totalorder %s14, 1
    %p105 = por %p103, %p104
    %p107 = scmp.ne.s32.totalorder %s90, %s106
    %p108 = scmp.eq.s32.totalorder %s14, 0
    %p109 = por %p107, %p108
    %p110 = scmp.le.s32.totalorder 1, %s8
    %p111 = scmp.lt.s32.totalorder %s8, 3
    %p112 = pnand %p110, %p111
    %p113 = pneg %p112
    // Predicated region
    $region9: #{model_forward.9} parent=5 // pred_check
      _
    $region10: #{model_forward.9} parent=5 // pred_check_branch
      %115 = sbr.rel (%p112) target = $region12
    $region11: #{model_forward.9} parent=5 // pred_region
      %s116 = ssub.s32 %s8, 1
    $region12: #{model_forward.9} parent=5 // pred_fallthru
      _
    %p117 = scmp.lt.s32.totalorder %s8, 2
    // Predicated region
    $region13: #{model_forward.9} parent=5 // pred_check
      %p118 = pneg %p117
    $region14: #{model_forward.9} parent=5 // pred_check_branch
      %120 = sbr.rel (%p118) target = $region16
    $region15: #{model_forward.9} parent=5 // pred_region
      // Predicated region
      $region17: #{model_forward.9} parent=15 // pred_check
        %p121 = pneg %p42
      $region18: #{model_forward.9} parent=15 // pred_check_branch
        %123 = sbr.rel (%p121) target = $region20
      $region19: #{model_forward.9} parent=15 // pred_region
        %s124 = smul.u32 4, %s16
        %p125 = scmp.lt.s32.totalorder %s15, 1
        %s126 = scalar_select %p125, %s15, 1
        %p127 = scmp.lt.s32.totalorder %s124, 3
        %s128 = scalar_select %p127, %s124, 3
        %s129 = smul.addr %s126, 4
        %s130 = sadd.s32 %s128, %s129
        %s131 = smul.addr %s130, 8
        %s132 = scalar_lea.vmem %s0, %s131
        %s133 = smul.u32 4, %s16
      $region20: #{model_forward.9} parent=15 // pred_fallthru
        _
      // Predicated region
      $region21: #{model_forward.9} parent=15 // pred_check
        %p134 = pneg %p68
      $region22: #{model_forward.9} parent=15 // pred_check_branch
        %136 = sbr.rel (%p134) target = $region24
      $region23: #{model_forward.9} parent=15 // pred_region
        %p137 = scmp.lt.s32.totalorder %s15, 1
        %s138 = scalar_select %p137, %s15, 1
        %s139 = smul.addr %s138, 8
        %s140 = smul.addr %s139, 8
        %s141 = scalar_lea.vmem %s1, %s140
      $region24: #{model_forward.9} parent=15 // pred_fallthru
        _
    $region16: #{model_forward.9} parent=5 // pred_fallthru
      _
    %p142 = scmp.le.s32.totalorder 1, %s8
    %p143 = scmp.lt.s32.totalorder %s8, 3
    %p144 = pnand %p142, %p143
    %p145 = pneg %p144
    // Predicated region
    $region25: #{model_forward.9} parent=5 // pred_check
      _
    $region26: #{model_forward.9} parent=5 // pred_check_branch
      %147 = sbr.rel (%p144) target = $region28
    $region27: #{model_forward.9} parent=5 // pred_region
      %s148 = ssub.s32 %s8, 1
      %s149 = smul.u32 4, %s18
      %p150 = scmp.lt.s32.totalorder %s17, 1
      %s151 = scalar_select %p150, %s17, 1
      %p152 = scmp.lt.s32.totalorder %s149, 3
      %s153 = scalar_select %p152, %s149, 3
      %s154 = smul.addr %s151, 4
      %s155 = sadd.s32 %s153, %s154
      %s156 = smul.addr %s155, 8
      %s157 = scalar_lea.vmem %s0, %s156
      %p158 = pneg %p48
      %p159 = pneg %p45
      %p160 = scmp.lt.s32.totalorder %s17, 1
      %s161 = scalar_select %p160, %s17, 1
      %s162 = smul.addr %s161, 8
      %s163 = smul.addr %s162, 8
      %s164 = scalar_lea.vmem %s1, %s163
      %p165 = pneg %p74
      %p166 = pneg %p71
      %p167 = pneg %p102
      %p168 = pneg %p99
      %s169 = smul.u32 4, %s18
      %p170 = scmp.lt.s32.totalorder %s17, 1
      %s171 = scalar_select %p170, %s17, 1
      %p172 = scmp.lt.s32.totalorder %s169, 3
      %s173 = scalar_select %p172, %s169, 3
      %s174 = smul.addr %s171, 4
      %s175 = sadd.s32 %s173, %s174
      %s176 = smul.addr %s175, 8
      %s177 = scalar_lea.vmem %s2, %s176
      %s178 = smul.u32 4, %s18
      %p179 = scmp.lt.s32.totalorder %s17, 1
      %s180 = scalar_select %p179, %s17, 1
      %p181 = scmp.lt.s32.totalorder %s178, 3
      %s182 = scalar_select %p181, %s178, 3
      %s183 = smul.addr %s180, 4
      %s184 = sadd.s32 %s182, %s183
      %s185 = smul.addr %s184, 8
      %s186 = scalar_lea.vmem %s0, %s185
      %s187 = smul.u32 4, %s18
      %p188 = scmp.lt.s32.totalorder %s17, 1
      %s189 = scalar_select %p188, %s17, 1
      %s190 = smul.addr %s189, 8
      %s191 = smul.addr %s190, 8
      %s192 = scalar_lea.vmem %s1, %s191
      %s193 = smul.u32 4, %s18
      %p194 = scmp.lt.s32.totalorder %s17, 1
      %s195 = scalar_select %p194, %s17, 1
      %p196 = scmp.lt.s32.totalorder %s193, 3
      %s197 = scalar_select %p196, %s193, 3
      %s198 = smul.addr %s195, 4
      %s199 = sadd.s32 %s197, %s198
      %s200 = smul.addr %s199, 8
      %s201 = scalar_lea.vmem %s2, %s200
      %s202 = smul.u32 4, %s18
      %v203 = vld [vmem:[%s186] sm:$0xff]
      %v204 = vld [vmem:[%s186 + $0x8] sm:$0xff]
      %v205 = vld [vmem:[%s186 + $0x10] sm:$0xff]
      %v206 = vld [vmem:[%s186 + $0x18] sm:$0xff]
      %v207 = vld [vmem:[%s192] sm:$0xff]
      %v208 = vld [vmem:[%s192 + $0x8] sm:$0xff]
      %v209 = vld [vmem:[%s192 + $0x10] sm:$0xff]
      %v210 = vld [vmem:[%s192 + $0x18] sm:$0xff]
      %v211 = vld [vmem:[%s192 + $0x20] sm:$0xff]
      %v212 = vld [vmem:[%s192 + $0x28] sm:$0xff]
      %v213 = vld [vmem:[%s192 + $0x30] sm:$0xff]
      %v214 = vld [vmem:[%s192 + $0x38] sm:$0xff]
      %vm215 = vcmask 39936
      %v217 = vsel %vm215, %v203, 0
      %v220 = vsel %vm215, %v204, 0
      %v223 = vsel %vm215, %v205, 0
      %v226 = vsel %vm215, %v206, 0
      %v229 = vsel %vm215, %v207, 0
      %v232 = vsel %vm215, %v208, 0
      %v235 = vsel %vm215, %v209, 0
      %v238 = vsel %vm215, %v210, 0
      %v241 = vsel %vm215, %v211, 0
      %v244 = vsel %vm215, %v212, 0
      %v247 = vsel %vm215, %v213, 0
      %v250 = vsel %vm215, %v214, 0
      %252 = vmatpush.xpose.msra.mxu0 0.0
      %253 = vmatpush.xpose.msra.mxu0 0.0
      %254 = vmatpush.xpose.msra.mxu0 0.0
      %255 = vmatpush.xpose.msra.mxu0 0.0
      %256 = vmatpush.xpose.msra.mxu0 0.0
      %257 = vmatpush.xpose.msra.mxu0 0.0
      %258 = vmatpush.xpose.msra.mxu0 0.0
      %259 = vmatpush.xpose.msra.mxu0 0.0
      %260 = vmatpush.xpose.msra.mxu0 %v250
      %261 = vmatpush.xpose.msra.mxu0 %v247
      %262 = vmatpush.xpose.msra.mxu0 %v244
      %263 = vmatpush.xpose.msra.mxu0 %v241
      %264 = vmatpush.xpose.msra.mxu0 %v238
      %265 = vmatpush.xpose.msra.mxu0 %v235
      %266 = vmatpush.xpose.msra.mxu0 %v232
      %267 = vmatpush.xpose.msra.mxu0 %v229
      %268 = vmatmul.f32.gmra.mxu0 %v217
      %v269 = vpop.f32.mrf.mxu0
      %v270 = vadd.f32 0.0, %v269
      %271 = vmatmul.f32.gmra.mxu0 %v220
      %v272 = vpop.f32.mrf.mxu0
      %v273 = vadd.f32 0.0, %v272
      %274 = vmatmul.f32.gmra.mxu0 %v223
      %v275 = vpop.f32.mrf.mxu0
      %v276 = vadd.f32 0.0, %v275
      %277 = vmatmul.f32.gmra.mxu0 %v226
      %v278 = vpop.f32.mrf.mxu0
      %v279 = vadd.f32 0.0, %v278
      %280 = vdwg.mxu0
      %vm281 = vcmask 523264
      %282 = vst.msk [vmem:[%s201] sm:$0xff] %vm281, %v270
      %283 = vst.msk [vmem:[%s201 + $0x8] sm:$0xff] %vm281, %v273
      %284 = vst.msk [vmem:[%s201 + $0x10] sm:$0xff] %vm281, %v276
      %285 = vst.msk [vmem:[%s201 + $0x18] sm:$0xff] %vm281, %v279
      %s286 = smul.u32 4, %s18
      %p287 = scmp.lt.s32.totalorder %s17, 1
      %s288 = scalar_select %p287, %s17, 1
      %p289 = scmp.lt.s32.totalorder %s286, 3
      %s290 = scalar_select %p289, %s286, 3
      %s291 = smul.addr %s288, 4
      %s292 = sadd.s32 %s290, %s291
      %s293 = smul.addr %s292, 8
      %s294 = scalar_lea.vmem %s2, %s293
      // Predicated region
      $region29: #{model_forward.9} parent=27 // pred_check
        %p295 = pneg %p99
      $region30: #{model_forward.9} parent=27 // pred_check_branch
        %297 = sbr.rel (%p295) target = $region32
      $region31: #{model_forward.9} parent=27 // pred_region
        %s298 = smul.u32 4, %s18
      $region32: #{model_forward.9} parent=27 // pred_fallthru
        _
    $region28: #{model_forward.9} parent=5 // pred_fallthru
      _
    %p299 = scmp.le.s32.totalorder 2, %s8
    // Predicated region
    $region33: #{model_forward.9} parent=5 // pred_check
      %p300 = pneg %p299
    $region34: #{model_forward.9} parent=5 // pred_check_branch
      %302 = sbr.rel (%p300) target = $region36
    $region35: #{model_forward.9} parent=5 // pred_region
      %s303 = ssub.s32 %s8, 2
      // Predicated region
      $region37: #{model_forward.9} parent=35 // pred_check
        %p304 = pneg %p105
      $region38: #{model_forward.9} parent=35 // pred_check_branch
        %306 = sbr.rel (%p304) target = $region40
      $region39: #{model_forward.9} parent=35 // pred_region
        %s307 = smul.u32 4, %s20
        %p308 = scmp.lt.s32.totalorder %s19, 1
        %s309 = scalar_select %p308, %s19, 1
        %p310 = scmp.lt.s32.totalorder %s307, 3
        %s311 = scalar_select %p310, %s307, 3
        %s312 = smul.addr %s309, 4
        %s313 = sadd.s32 %s311, %s312
        %s314 = smul.addr %s313, 8
        %s315 = scalar_lea.vmem %s2, %s314
      $region40: #{model_forward.9} parent=35 // pred_fallthru
        _
    $region36: #{model_forward.9} parent=5 // pred_fallthru
      _
  $region6: #{model_forward.9} parent=0 // loop_footer
    %s12 = sadd.s32 1, %s8
  $region7: #{model_forward.9} parent=0 // loop_footer_branch
    %7 = sbr.rel target = $region3
  $region8: #{model_forward.9} parent=0 // loop_exit
    _

// kernel: model_forward.8
$region0: #{model_forward.8}
  #allocation0 [shape = 'u32[]', space=smem, size = 0x4, offset = 0x4, fixed_abs, tag = 'smem constant byte address 0x4 - core index']
  #allocation1 [shape = 'u32[72,128]{1,0:T(1,128)}', space=vmem, size = 0x9000, scoped, tag = 'internal scratch']
  %s0 = inlined_call_operand.vmem [shape: f32[3,32], index: 0, kind: input, shape index: {}]
  %s1 = inlined_call_operand.vmem [shape: f32[1,32], index: 1, kind: input, shape index: {}]
  %s2 = inlined_call_operand.vmem [shape: f32[128,3], index: 2, kind: input, shape index: {}]
  %s3 = inlined_call_operand.vmem [shape: f32[128,32], index: 3, kind: output, shape index: {}]
  %s4 = sld [smem:[#allocation0]]
  $region22: #{model_forward.8} parent=0
    _
  %s6 = ssub.s32 1, %s4
  %s7 = scalar_select 0, %s6, %s4
  // Predicated region
  $region2: #{model_forward.8} parent=0 // pred_check
    _
  $region3: #{model_forward.8} parent=0 // pred_check_branch
    %9 = sbr.rel (0) target = $region5
  $region4: #{model_forward.8} parent=0 // pred_region
    _
  $region5: #{model_forward.8} parent=0 // pred_fallthru
    _
  // Predicated region
  $region6: #{model_forward.8} parent=0 // pred_check
    _
  $region7: #{model_forward.8} parent=0 // pred_check_branch
    %11 = sbr.rel (0) target = $region9
  $region8: #{model_forward.8} parent=0 // pred_region
    _
  $region9: #{model_forward.8} parent=0 // pred_fallthru
    _
  // Predicated region
  $region10: #{model_forward.8} parent=0 // pred_check
    _
  $region11: #{model_forward.8} parent=0 // pred_check_branch
    %13 = sbr.rel (0) target = $region13
  $region12: #{model_forward.8} parent=0 // pred_region
    _
  $region13: #{model_forward.8} parent=0 // pred_fallthru
    _
  %v14 = vld [vmem:[%s2] sm:$0xff]
  %v15 = vld [vmem:[%s2 + $0x8] sm:$0xff]
  %v16 = vld [vmem:[%s2 + $0x10] sm:$0xff]
  %v17 = vld [vmem:[%s2 + $0x18] sm:$0xff]
  %v18 = vld [vmem:[%s2 + $0x20] sm:$0xff]
  %v19 = vld [vmem:[%s2 + $0x28] sm:$0xff]
  %v20 = vld [vmem:[%s2 + $0x30] sm:$0xff]
  %v21 = vld [vmem:[%s2 + $0x38] sm:$0xff]
  %v22 = vld [vmem:[%s2 + $0x40] sm:$0xff]
  %v23 = vld [vmem:[%s2 + $0x48] sm:$0xff]
  %v24 = vld [vmem:[%s2 + $0x50] sm:$0xff]
  %v25 = vld [vmem:[%s2 + $0x58] sm:$0xff]
  %v26 = vld [vmem:[%s2 + $0x60] sm:$0xff]
  %v27 = vld [vmem:[%s2 + $0x68] sm:$0xff]
  %v28 = vld [vmem:[%s2 + $0x70] sm:$0xff]
  %v29 = vld [vmem:[%s2 + $0x78] sm:$0xff]
  %v30 = vld [vmem:[%s0] sm:$0x7]
  %v31 = vld [vmem:[%s1] sm:$0x1]
  %v33 = vperm.slane %v31, 0
  %vm35 = vcmask 23552
  %v37 = vsel %vm35, %v14, 0
  %v40 = vsel %vm35, %v15, 0
  %v43 = vsel %vm35, %v16, 0
  %v46 = vsel %vm35, %v17, 0
  %v49 = vsel %vm35, %v18, 0
  %v52 = vsel %vm35, %v19, 0
  %v55 = vsel %vm35, %v20, 0
  %v58 = vsel %vm35, %v21, 0
  %v61 = vsel %vm35, %v22, 0
  %v64 = vsel %vm35, %v23, 0
  %v67 = vsel %vm35, %v24, 0
  %v70 = vsel %vm35, %v25, 0
  %v73 = vsel %vm35, %v26, 0
  %v76 = vsel %vm35, %v27, 0
  %v79 = vsel %vm35, %v28, 0
  %v82 = vsel %vm35, %v29, 0
  %vm84 = vcmask 1042432
  %v86 = vsel %vm84, %v30, 0
  %88 = vmatpush.msra.mxu0 0.0
  %89 = vmatpush.msra.mxu0 0.0
  %90 = vmatpush.msra.mxu0 0.0
  %91 = vmatpush.msra.mxu0 0.0
  %92 = vmatpush.msra.mxu0 0.0
  %93 = vmatpush.msra.mxu0 0.0
  %94 = vmatpush.msra.mxu0 0.0
  %95 = vmatpush.msra.mxu0 0.0
  %96 = vmatpush.msra.mxu0 0.0
  %97 = vmatpush.msra.mxu0 0.0
  %98 = vmatpush.msra.mxu0 0.0
  %99 = vmatpush.msra.mxu0 0.0
  %100 = vmatpush.msra.mxu0 0.0
  %101 = vmatpush.msra.mxu0 0.0
  %102 = vmatpush.msra.mxu0 0.0
  %103 = vmatpush.msra.mxu0 %v86
  %104 = vmatmul.f32.gmra.mxu0 %v37
  %v105 = vpop.f32.mrf.mxu0
  %v106 = vadd.f32 %v33, %v105
  %107 = vmatmul.f32.gmra.mxu0 %v40
  %v108 = vpop.f32.mrf.mxu0
  %v109 = vadd.f32 %v33, %v108
  %110 = vmatmul.f32.gmra.mxu0 %v43
  %v111 = vpop.f32.mrf.mxu0
  %v112 = vadd.f32 %v33, %v111
  %113 = vmatmul.f32.gmra.mxu0 %v46
  %v114 = vpop.f32.mrf.mxu0
  %v115 = vadd.f32 %v33, %v114
  %116 = vmatmul.f32.gmra.mxu0 %v49
  %v117 = vpop.f32.mrf.mxu0
  %v118 = vadd.f32 %v33, %v117
  %119 = vmatmul.f32.gmra.mxu0 %v52
  %v120 = vpop.f32.mrf.mxu0
  %v121 = vadd.f32 %v33, %v120
  %122 = vmatmul.f32.gmra.mxu0 %v55
  %v123 = vpop.f32.mrf.mxu0
  %v124 = vadd.f32 %v33, %v123
  %125 = vmatmul.f32.gmra.mxu0 %v58
  %v126 = vpop.f32.mrf.mxu0
  %v127 = vadd.f32 %v33, %v126
  %128 = vmatmul.f32.gmra.mxu0 %v61
  %v129 = vpop.f32.mrf.mxu0
  %v130 = vadd.f32 %v33, %v129
  %131 = vmatmul.f32.gmra.mxu0 %v64
  %v132 = vpop.f32.mrf.mxu0
  %v133 = vadd.f32 %v33, %v132
  %134 = vmatmul.f32.gmra.mxu0 %v67
  %v135 = vpop.f32.mrf.mxu0
  %v136 = vadd.f32 %v33, %v135
  %137 = vmatmul.f32.gmra.mxu0 %v70
  %v138 = vpop.f32.mrf.mxu0
  %v139 = vadd.f32 %v33, %v138
  %140 = vmatmul.f32.gmra.mxu0 %v73
  %v141 = vpop.f32.mrf.mxu0
  %v142 = vadd.f32 %v33, %v141
  %143 = vmatmul.f32.gmra.mxu0 %v76
  %v144 = vpop.f32.mrf.mxu0
  %v145 = vadd.f32 %v33, %v144
  %146 = vmatmul.f32.gmra.mxu0 %v79
  %v147 = vpop.f32.mrf.mxu0
  %v148 = vadd.f32 %v33, %v147
  %149 = vmatmul.f32.gmra.mxu0 %v82
  %v150 = vpop.f32.mrf.mxu0
  %v151 = vadd.f32 %v33, %v150
  %152 = vdwg.mxu0
  %v153 = vmax.f32 %v106, 0.0
  %v154 = vmax.f32 %v109, 0.0
  %v155 = vmax.f32 %v112, 0.0
  %v156 = vmax.f32 %v115, 0.0
  %v157 = vmax.f32 %v118, 0.0
  %v158 = vmax.f32 %v121, 0.0
  %v159 = vmax.f32 %v124, 0.0
  %v160 = vmax.f32 %v127, 0.0
  %v161 = vmax.f32 %v130, 0.0
  %v162 = vmax.f32 %v133, 0.0
  %v163 = vmax.f32 %v136, 0.0
  %v164 = vmax.f32 %v139, 0.0
  %v165 = vmax.f32 %v142, 0.0
  %v166 = vmax.f32 %v145, 0.0
  %v167 = vmax.f32 %v148, 0.0
  %v168 = vmax.f32 %v151, 0.0
  %vm169 = vcmask 261120
  %170 = vst.msk [vmem:[%s3] sm:$0xff] %vm169, %v153
  %171 = vst.msk [vmem:[%s3 + $0x8] sm:$0xff] %vm169, %v154
  %172 = vst.msk [vmem:[%s3 + $0x10] sm:$0xff] %vm169, %v155
  %173 = vst.msk [vmem:[%s3 + $0x18] sm:$0xff] %vm169, %v156
  %174 = vst.msk [vmem:[%s3 + $0x20] sm:$0xff] %vm169, %v157
  %175 = vst.msk [vmem:[%s3 + $0x28] sm:$0xff] %vm169, %v158
  %176 = vst.msk [vmem:[%s3 + $0x30] sm:$0xff] %vm169, %v159
  %177 = vst.msk [vmem:[%s3 + $0x38] sm:$0xff] %vm169, %v160
  %178 = vst.msk [vmem:[%s3 + $0x40] sm:$0xff] %vm169, %v161
  %179 = vst.msk [vmem:[%s3 + $0x48] sm:$0xff] %vm169, %v162
  %180 = vst.msk [vmem:[%s3 + $0x50] sm:$0xff] %vm169, %v163
  %181 = vst.msk [vmem:[%s3 + $0x58] sm:$0xff] %vm169, %v164
  %182 = vst.msk [vmem:[%s3 + $0x60] sm:$0xff] %vm169, %v165
  %183 = vst.msk [vmem:[%s3 + $0x68] sm:$0xff] %vm169, %v166
  %184 = vst.msk [vmem:[%s3 + $0x70] sm:$0xff] %vm169, %v167
  %185 = vst.msk [vmem:[%s3 + $0x78] sm:$0xff] %vm169, %v168
  // Predicated region
  $region14: #{model_forward.8} parent=0 // pred_check
    _
  $region15: #{model_forward.8} parent=0 // pred_check_branch
    %187 = sbr.rel (0) target = $region17
  $region16: #{model_forward.8} parent=0 // pred_region
    _
  $region17: #{model_forward.8} parent=0 // pred_fallthru
    _
  // Predicated region
  $region18: #{model_forward.8} parent=0 // pred_check
    _
  $region19: #{model_forward.8} parent=0 // pred_check_branch
    %189 = sbr.rel (0) target = $region21
  $region20: #{model_forward.8} parent=0 // pred_region
    _
  $region21: #{model_forward.8} parent=0 // pred_fallthru
    _

// kernel: custom-call.21
$region0: #{custom-call.21}
  %s0 = inlined_call_operand.vmem [shape: f32[2,32], index: 0, kind: output, shape index: {}]

// kernel: model_forward.11
$region0: #{model_forward.11}
  #allocation0 [shape = 'u32[]', space=smem, size = 0x4, offset = 0x4, fixed_abs, tag = 'smem constant byte address 0x4 - core index']
  #allocation1 [shape = 'u32[72,128]{1,0:T(1,128)}', space=vmem, size = 0x9000, scoped, tag = 'internal scratch']
  %s0 = inlined_call_operand.vmem [shape: f32[64,64], index: 0, kind: input, shape index: {}]
  %s1 = inlined_call_operand.vmem [shape: f32[1,64], index: 1, kind: input, shape index: {}]
  %s2 = inlined_call_operand.vmem [shape: f32[64,64], index: 2, kind: input, shape index: {}]
  %s3 = inlined_call_operand.vmem [shape: f32[1,64], index: 3, kind: input, shape index: {}]
  %s4 = inlined_call_operand.vmem [shape: f32[64,64], index: 4, kind: input, shape index: {}]
  %s5 = inlined_call_operand.vmem [shape: f32[64,64], index: 5, kind: output, shape index: {}]
  %s6 = sld [smem:[#allocation0]]
  $region30: #{model_forward.11} parent=0
    _
  %s8 = ssub.s32 1, %s6
  %s9 = scalar_select 0, %s8, %s6
  // Predicated region
  $region2: #{model_forward.11} parent=0 // pred_check
    _
  $region3: #{model_forward.11} parent=0 // pred_check_branch
    %11 = sbr.rel (0) target = $region5
  $region4: #{model_forward.11} parent=0 // pred_region
    _
  $region5: #{model_forward.11} parent=0 // pred_fallthru
    _
  // Predicated region
  $region6: #{model_forward.11} parent=0 // pred_check
    _
  $region7: #{model_forward.11} parent=0 // pred_check_branch
    %13 = sbr.rel (0) target = $region9
  $region8: #{model_forward.11} parent=0 // pred_region
    _
  $region9: #{model_forward.11} parent=0 // pred_fallthru
    _
  // Predicated region
  $region10: #{model_forward.11} parent=0 // pred_check
    _
  $region11: #{model_forward.11} parent=0 // pred_check_branch
    %15 = sbr.rel (0) target = $region13
  $region12: #{model_forward.11} parent=0 // pred_region
    _
  $region13: #{model_forward.11} parent=0 // pred_fallthru
    _
  // Predicated region
  $region14: #{model_forward.11} parent=0 // pred_check
    _
  $region15: #{model_forward.11} parent=0 // pred_check_branch
    %17 = sbr.rel (0) target = $region17
  $region16: #{model_forward.11} parent=0 // pred_region
    _
  $region17: #{model_forward.11} parent=0 // pred_fallthru
    _
  // Predicated region
  $region18: #{model_forward.11} parent=0 // pred_check
    _
  $region19: #{model_forward.11} parent=0 // pred_check_branch
    %19 = sbr.rel (0) target = $region21
  $region20: #{model_forward.11} parent=0 // pred_region
    _
  $region21: #{model_forward.11} parent=0 // pred_fallthru
    _
  %v20 = vld [vmem:[%s4] sm:$0xff]
  %v21 = vld [vmem:[%s4 + $0x8] sm:$0xff]
  %v22 = vld [vmem:[%s4 + $0x10] sm:$0xff]
  %v23 = vld [vmem:[%s4 + $0x18] sm:$0xff]
  %v24 = vld [vmem:[%s4 + $0x20] sm:$0xff]
  %v25 = vld [vmem:[%s4 + $0x28] sm:$0xff]
  %v26 = vld [vmem:[%s4 + $0x30] sm:$0xff]
  %v27 = vld [vmem:[%s4 + $0x38] sm:$0xff]
  %v28 = vld [vmem:[%s0] sm:$0xff]
  %v29 = vld [vmem:[%s0 + $0x8] sm:$0xff]
  %v30 = vld [vmem:[%s0 + $0x10] sm:$0xff]
  %v31 = vld [vmem:[%s0 + $0x18] sm:$0xff]
  %v32 = vld [vmem:[%s0 + $0x20] sm:$0xff]
  %v33 = vld [vmem:[%s0 + $0x28] sm:$0xff]
  %v34 = vld [vmem:[%s0 + $0x30] sm:$0xff]
  %v35 = vld [vmem:[%s0 + $0x38] sm:$0xff]
  %v36 = vld [vmem:[%s1] sm:$0x1]
  %v38 = vperm.slane %v36, 0
  %vm40 = vcmask 523264
  %v42 = vsel %vm40, %v20, 0
  %v45 = vsel %vm40, %v21, 0
  %v48 = vsel %vm40, %v22, 0
  %v51 = vsel %vm40, %v23, 0
  %v54 = vsel %vm40, %v24, 0
  %v57 = vsel %vm40, %v25, 0
  %v60 = vsel %vm40, %v26, 0
  %v63 = vsel %vm40, %v27, 0
  %65 = vmatpush.msra.mxu0 0.0
  %66 = vmatpush.msra.mxu0 0.0
  %67 = vmatpush.msra.mxu0 0.0
  %68 = vmatpush.msra.mxu0 0.0
  %69 = vmatpush.msra.mxu0 0.0
  %70 = vmatpush.msra.mxu0 0.0
  %71 = vmatpush.msra.mxu0 0.0
  %72 = vmatpush.msra.mxu0 0.0
  %73 = vmatpush.msra.mxu0 %v35
  %74 = vmatpush.msra.mxu0 %v34
  %75 = vmatpush.msra.mxu0 %v33
  %76 = vmatpush.msra.mxu0 %v32
  %77 = vmatpush.msra.mxu0 %v31
  %78 = vmatpush.msra.mxu0 %v30
  %79 = vmatpush.msra.mxu0 %v29
  %80 = vmatpush.msra.mxu0 %v28
  %81 = vmatmul.f32.gmra.mxu0 %v42
  %v82 = vpop.f32.mrf.mxu0
  %v83 = vadd.f32 %v38, %v82
  %84 = vmatmul.f32.gmra.mxu0 %v45
  %v85 = vpop.f32.mrf.mxu0
  %v86 = vadd.f32 %v38, %v85
  %87 = vmatmul.f32.gmra.mxu0 %v48
  %v88 = vpop.f32.mrf.mxu0
  %v89 = vadd.f32 %v38, %v88
  %90 = vmatmul.f32.gmra.mxu0 %v51
  %v91 = vpop.f32.mrf.mxu0
  %v92 = vadd.f32 %v38, %v91
  %93 = vmatmul.f32.gmra.mxu0 %v54
  %v94 = vpop.f32.mrf.mxu0
  %v95 = vadd.f32 %v38, %v94
  %96 = vmatmul.f32.gmra.mxu0 %v57
  %v97 = vpop.f32.mrf.mxu0
  %v98 = vadd.f32 %v38, %v97
  %99 = vmatmul.f32.gmra.mxu0 %v60
  %v100 = vpop.f32.mrf.mxu0
  %v101 = vadd.f32 %v38, %v100
  %102 = vmatmul.f32.gmra.mxu0 %v63
  %v103 = vpop.f32.mrf.mxu0
  %v104 = vadd.f32 %v38, %v103
  %105 = vdwg.mxu0
  %v106 = vmax.f32 %v83, 0.0
  %v107 = vmax.f32 %v86, 0.0
  %v108 = vmax.f32 %v89, 0.0
  %v109 = vmax.f32 %v92, 0.0
  %v110 = vmax.f32 %v95, 0.0
  %v111 = vmax.f32 %v98, 0.0
  %v112 = vmax.f32 %v101, 0.0
  %v113 = vmax.f32 %v104, 0.0
  %v114 = vld [vmem:[%s2] sm:$0xff]
  %v115 = vld [vmem:[%s2 + $0x8] sm:$0xff]
  %v116 = vld [vmem:[%s2 + $0x10] sm:$0xff]
  %v117 = vld [vmem:[%s2 + $0x18] sm:$0xff]
  %v118 = vld [vmem:[%s2 + $0x20] sm:$0xff]
  %v119 = vld [vmem:[%s2 + $0x28] sm:$0xff]
  %v120 = vld [vmem:[%s2 + $0x30] sm:$0xff]
  %v121 = vld [vmem:[%s2 + $0x38] sm:$0xff]
  %v122 = vld [vmem:[%s3] sm:$0x1]
  %v124 = vperm.slane %v122, 0
  %v127 = vsel %vm40, %v106, 0
  %v130 = vsel %vm40, %v107, 0
  %v133 = vsel %vm40, %v108, 0
  %v136 = vsel %vm40, %v109, 0
  %v139 = vsel %vm40, %v110, 0
  %v142 = vsel %vm40, %v111, 0
  %v145 = vsel %vm40, %v112, 0
  %v148 = vsel %vm40, %v113, 0
  %150 = vmatpush.msra.mxu0 0.0
  %151 = vmatpush.msra.mxu0 0.0
  %152 = vmatpush.msra.mxu0 0.0
  %153 = vmatpush.msra.mxu0 0.0
  %154 = vmatpush.msra.mxu0 0.0
  %155 = vmatpush.msra.mxu0 0.0
  %156 = vmatpush.msra.mxu0 0.0
  %157 = vmatpush.msra.mxu0 0.0
  %158 = vmatpush.msra.mxu0 %v121
  %159 = vmatpush.msra.mxu0 %v120
  %160 = vmatpush.msra.mxu0 %v119
  %161 = vmatpush.msra.mxu0 %v118
  %162 = vmatpush.msra.mxu0 %v117
  %163 = vmatpush.msra.mxu0 %v116
  %164 = vmatpush.msra.mxu0 %v115
  %165 = vmatpush.msra.mxu0 %v114
  %166 = vmatmul.f32.gmra.mxu0 %v127
  %v167 = vpop.f32.mrf.mxu0
  %v168 = vadd.f32 %v124, %v167
  %169 = vmatmul.f32.gmra.mxu0 %v130
  %v170 = vpop.f32.mrf.mxu0
  %v171 = vadd.f32 %v124, %v170
  %172 = vmatmul.f32.gmra.mxu0 %v133
  %v173 = vpop.f32.mrf.mxu0
  %v174 = vadd.f32 %v124, %v173
  %175 = vmatmul.f32.gmra.mxu0 %v136
  %v176 = vpop.f32.mrf.mxu0
  %v177 = vadd.f32 %v124, %v176
  %178 = vmatmul.f32.gmra.mxu0 %v139
  %v179 = vpop.f32.mrf.mxu0
  %v180 = vadd.f32 %v124, %v179
  %181 = vmatmul.f32.gmra.mxu0 %v142
  %v182 = vpop.f32.mrf.mxu0
  %v183 = vadd.f32 %v124, %v182
  %184 = vmatmul.f32.gmra.mxu0 %v145
  %v185 = vpop.f32.mrf.mxu0
  %v186 = vadd.f32 %v124, %v185
  %187 = vmatmul.f32.gmra.mxu0 %v148
  %v188 = vpop.f32.mrf.mxu0
  %v189 = vadd.f32 %v124, %v188
  %190 = vdwg.mxu0
  %v191 = vadd.f32 %v168, %v20
  %v192 = vadd.f32 %v171, %v21
  %v193 = vadd.f32 %v174, %v22
  %v194 = vadd.f32 %v177, %v23
  %v195 = vadd.f32 %v180, %v24
  %v196 = vadd.f32 %v183, %v25
  %v197 = vadd.f32 %v186, %v26
  %v198 = vadd.f32 %v189, %v27
  %v199 = vmax.f32 %v191, 0.0
  %v200 = vmax.f32 %v192, 0.0
  %v201 = vmax.f32 %v193, 0.0
  %v202 = vmax.f32 %v194, 0.0
  %v203 = vmax.f32 %v195, 0.0
  %v204 = vmax.f32 %v196, 0.0
  %v205 = vmax.f32 %v197, 0.0
  %v206 = vmax.f32 %v198, 0.0
  %207 = vst.msk [vmem:[%s5] sm:$0xff] %vm40, %v199
  %208 = vst.msk [vmem:[%s5 + $0x8] sm:$0xff] %vm40, %v200
  %209 = vst.msk [vmem:[%s5 + $0x10] sm:$0xff] %vm40, %v201
  %210 = vst.msk [vmem:[%s5 + $0x18] sm:$0xff] %vm40, %v202
  %211 = vst.msk [vmem:[%s5 + $0x20] sm:$0xff] %vm40, %v203
  %212 = vst.msk [vmem:[%s5 + $0x28] sm:$0xff] %vm40, %v204
  %213 = vst.msk [vmem:[%s5 + $0x30] sm:$0xff] %vm40, %v205
  %214 = vst.msk [vmem:[%s5 + $0x38] sm:$0xff] %vm40, %v206
  // Predicated region
  $region22: #{model_forward.11} parent=0 // pred_check
    _
  $region23: #{model_forward.11} parent=0 // pred_check_branch
    %216 = sbr.rel (0) target = $region25
  $region24: #{model_forward.11} parent=0 // pred_region
    _
  $region25: #{model_forward.11} parent=0 // pred_fallthru
    _
  // Predicated region
  $region26: #{model_forward.11} parent=0 // pred_check
    _
  $region27: #{model_forward.11} parent=0 // pred_check_branch
    %218 = sbr.rel (0) target = $region29
  $region28: #{model_forward.11} parent=0 // pred_region
    _
  $region29: #{model_forward.11} parent=0 // pred_fallthru
    _

// kernel: neg.3
$region0: #{neg.3}
  #allocation0 [shape = 's32[1]{0}', space=sflag, size = 0x4, scoped, tag = 'scoped memory for neg.3']
  %s0 = inlined_call_operand.vmem [shape: f32[2,16,32], index: 0, kind: input, shape index: {}]
  %s1 = inlined_call_operand.vmem [shape: f32[2,16,32], index: 1, kind: output, shape index: {}]
  %v2 = vld [vmem:[%s0] sm:$0xff]
  %3 = xla_tuple %v2
  %4 = xla_tuple %3
  %v5 = vxor.u32 %v2, 2147483648
  %6 = xla_tuple %v5
  %7 = vst [vmem:[%s1] sm:$0xff] %v5
  %s8 = scalar_lea.vmem %s0, 16
  %v9 = vld [vmem:[%s8] sm:$0xff]
  %10 = xla_tuple %v9
  %11 = xla_tuple %10
  %v12 = vxor.u32 %v9, 2147483648
  %13 = xla_tuple %v12
  %s14 = scalar_lea.vmem %s1, 16
  %15 = vst [vmem:[%s14] sm:$0xff] %v12
  %s16 = scalar_lea.vmem %s0, 8
  %v17 = vld [vmem:[%s16] sm:$0xff]
  %18 = xla_tuple %v17
  %19 = xla_tuple %18
  %v20 = vxor.u32 %v17, 2147483648
  %21 = xla_tuple %v20
  %s22 = scalar_lea.vmem %s1, 8
  %23 = vst [vmem:[%s22] sm:$0xff] %v20
  %s24 = scalar_lea.vmem %s0, 24
  %v25 = vld [vmem:[%s24] sm:$0xff]
  %26 = xla_tuple %v25
  %27 = xla_tuple %26
  %v28 = vxor.u32 %v25, 2147483648
  %29 = xla_tuple %v28
  %s30 = scalar_lea.vmem %s1, 24
  %31 = vst [vmem:[%s30] sm:$0xff] %v28

// kernel: model_forward.12
$region0: #{model_forward.12}
  #allocation0 [shape = 'u32[]', space=smem, size = 0x4, offset = 0x4, fixed_abs, tag = 'smem constant byte address 0x4 - core index']
  #allocation1 [shape = 'u32[72,128]{1,0:T(1,128)}', space=vmem, size = 0x9000, scoped, tag = 'internal scratch']
  %s0 = inlined_call_operand.vmem [shape: f32[2,16,5], index: 0, kind: input, shape index: {}]
  %s1 = inlined_call_operand.vmem [shape: f32[2,32,5], index: 1, kind: input, shape index: {}]
  %s2 = inlined_call_operand.vmem [shape: f32[2,16,32], index: 2, kind: output, shape index: {}]
  %s3 = sld [smem:[#allocation0]]
  $region41: #{model_forward.12} parent=0
    _
  %s5 = ssub.s32 1, %s3
  %s6 = scalar_select 0, %s5, %s3
  loop: start=0, step=1, limit=4
  $region2: #{model_forward.12} parent=0 // loop_pre_header
    _
  $region3: #{model_forward.12} parent=0 // loop_header
    %s8 = sphi 0, %s12
    %p9 = scmp.ge.s32.totalorder %s8, 4
    %s15 = sphi 0, %s27
    %s16 = sphi 0, %s23
    %s17 = sphi 0, %s15
    %s18 = sphi 0, %s16
    %s19 = sphi 0, %s17
    %s20 = sphi 0, %s18
    %s32 = sphi 0, %s34
    %s35 = sphi 0, %s32
    %s36 = sphi 0, %s35
    %s52 = sphi 0, %s36
    %s58 = sphi 0, %s60
    %s61 = sphi 0, %s58
    %s62 = sphi 0, %s61
    %s78 = sphi 0, %s62
    %s86 = sphi 0, %s88
    %s89 = sphi 0, %s86
    %s90 = sphi 0, %s89
    %s106 = sphi 0, %s90
  $region4: #{model_forward.12} parent=0 // loop_header_branch
    %11 = sbr.rel (%p9) target = $region8
  $region5: #{model_forward.12} parent=0 // loop_body
    %s13 = ssub.s32 %s8, 1
    %s14 = ssub.s32 %s8, 2
    %s21 = sadd.s32 1, %s16
    %p22 = scmp.ge.s32.totalorder %s21, 1
    %s23 = scalar_select %p22, 0, %s21
    %s24 = sadd.s32 1, %s15
    %s25 = scalar_select %p22, %s24, %s15
    %p26 = scmp.ge.s32.totalorder %s25, 2
    %s27 = scalar_select %p26, 0, %s25
    %s28 = ssub.s32 %s15, %s27
    %s29 = ssub.s32 %s16, %s23
    %s30 = sor.u32 %s28, %s29
    %p31 = scmp.eq.s32.totalorder %s30, 0
    %s33 = sadd.s32 %s32, 1
    %s34 = scalar_select %p31, %s32, %s33
    %p37 = pneg %p31
    %p38 = scmp.eq.s32.totalorder %s8, 1
    %p39 = por %p37, %p38
    %p40 = scmp.ne.s32.totalorder %s32, %s35
    %p41 = scmp.eq.s32.totalorder %s8, 0
    %p42 = por %p40, %p41
    %p43 = scmp.ne.s32.totalorder %s32, %s35
    %p44 = scmp.eq.s32.totalorder %s13, 1
    %p45 = por %p43, %p44
    %p46 = scmp.ne.s32.totalorder %s35, %s36
    %p47 = scmp.eq.s32.totalorder %s13, 0
    %p48 = por %p46, %p47
    %p49 = scmp.ne.s32.totalorder %s35, %s36
    %p50 = scmp.eq.s32.totalorder %s14, 1
    %p51 = por %p49, %p50
    %p53 = scmp.ne.s32.totalorder %s36, %s52
    %p54 = scmp.eq.s32.totalorder %s14, 0
    %p55 = por %p53, %p54
    %s56 = ssub.s32 %s15, %s27
    %p57 = scmp.eq.s32.totalorder %s56, 0
    %s59 = sadd.s32 %s58, 1
    %s60 = scalar_select %p57, %s58, %s59
    %p63 = pneg %p57
    %p64 = scmp.eq.s32.totalorder %s8, 1
    %p65 = por %p63, %p64
    %p66 = scmp.ne.s32.totalorder %s58, %s61
    %p67 = scmp.eq.s32.totalorder %s8, 0
    %p68 = por %p66, %p67
    %p69 = scmp.ne.s32.totalorder %s58, %s61
    %p70 = scmp.eq.s32.totalorder %s13, 1
    %p71 = por %p69, %p70
    %p72 = scmp.ne.s32.totalorder %s61, %s62
    %p73 = scmp.eq.s32.totalorder %s13, 0
    %p74 = por %p72, %p73
    %p75 = scmp.ne.s32.totalorder %s61, %s62
    %p76 = scmp.eq.s32.totalorder %s14, 1
    %p77 = por %p75, %p76
    %p79 = scmp.ne.s32.totalorder %s62, %s78
    %p80 = scmp.eq.s32.totalorder %s14, 0
    %p81 = por %p79, %p80
    %s82 = ssub.s32 %s15, %s27
    %s83 = ssub.s32 %s16, %s23
    %s84 = sor.u32 %s82, %s83
    %p85 = scmp.eq.s32.totalorder %s84, 0
    %s87 = sadd.s32 %s86, 1
    %s88 = scalar_select %p85, %s86, %s87
    %p91 = pneg %p85
    %p92 = scmp.eq.s32.totalorder %s8, 1
    %p93 = por %p91, %p92
    %p94 = scmp.ne.s32.totalorder %s86, %s89
    %p95 = scmp.eq.s32.totalorder %s8, 0
    %p96 = por %p94, %p95
    %p97 = scmp.ne.s32.totalorder %s86, %s89
    %p98 = scmp.eq.s32.totalorder %s13, 1
    %p99 = por %p97, %p98
    %p100 = scmp.ne.s32.totalorder %s89, %s90
    %p101 = scmp.eq.s32.totalorder %s13, 0
    %p102 = por %p100, %p101
    %p103 = scmp.ne.s32.totalorder %s89, %s90
    %p104 = scmp.eq.s32.totalorder %s14, 1
    %p105 = por %p103, %p104
    %p107 = scmp.ne.s32.totalorder %s90, %s106
    %p108 = scmp.eq.s32.totalorder %s14, 0
    %p109 = por %p107, %p108
    %p110 = scmp.le.s32.totalorder 1, %s8
    %p111 = scmp.lt.s32.totalorder %s8, 3
    %p112 = pnand %p110, %p111
    %p113 = pneg %p112
    // Predicated region
    $region9: #{model_forward.12} parent=5 // pred_check
      _
    $region10: #{model_forward.12} parent=5 // pred_check_branch
      %115 = sbr.rel (%p112) target = $region12
    $region11: #{model_forward.12} parent=5 // pred_region
      %s116 = ssub.s32 %s8, 1
    $region12: #{model_forward.12} parent=5 // pred_fallthru
      _
    %p117 = scmp.lt.s32.totalorder %s8, 2
    // Predicated region
    $region13: #{model_forward.12} parent=5 // pred_check
      %p118 = pneg %p117
    $region14: #{model_forward.12} parent=5 // pred_check_branch
      %120 = sbr.rel (%p118) target = $region16
    $region15: #{model_forward.12} parent=5 // pred_region
      // Predicated region
      $region17: #{model_forward.12} parent=15 // pred_check
        %p121 = pneg %p42
      $region18: #{model_forward.12} parent=15 // pred_check_branch
        %123 = sbr.rel (%p121) target = $region20
      $region19: #{model_forward.12} parent=15 // pred_region
        %s124 = smul.u32 2, %s16
        %p125 = scmp.lt.s32.totalorder %s15, 1
        %s126 = scalar_select %p125, %s15, 1
        %p127 = scmp.lt.s32.totalorder %s124, 1
        %s128 = scalar_select %p127, %s124, 1
        %s129 = smul.addr %s126, 2
        %s130 = sadd.s32 %s128, %s129
        %s131 = smul.addr %s130, 8
        %s132 = scalar_lea.vmem %s0, %s131
        %s133 = smul.u32 2, %s16
      $region20: #{model_forward.12} parent=15 // pred_fallthru
        _
      // Predicated region
      $region21: #{model_forward.12} parent=15 // pred_check
        %p134 = pneg %p68
      $region22: #{model_forward.12} parent=15 // pred_check_branch
        %136 = sbr.rel (%p134) target = $region24
      $region23: #{model_forward.12} parent=15 // pred_region
        %p137 = scmp.lt.s32.totalorder %s15, 1
        %s138 = scalar_select %p137, %s15, 1
        %s139 = smul.addr %s138, 4
        %s140 = smul.addr %s139, 8
        %s141 = scalar_lea.vmem %s1, %s140
      $region24: #{model_forward.12} parent=15 // pred_fallthru
        _
    $region16: #{model_forward.12} parent=5 // pred_fallthru
      _
    %p142 = scmp.le.s32.totalorder 1, %s8
    %p143 = scmp.lt.s32.totalorder %s8, 3
    %p144 = pnand %p142, %p143
    %p145 = pneg %p144
    // Predicated region
    $region25: #{model_forward.12} parent=5 // pred_check
      _
    $region26: #{model_forward.12} parent=5 // pred_check_branch
      %147 = sbr.rel (%p144) target = $region28
    $region27: #{model_forward.12} parent=5 // pred_region
      %s148 = ssub.s32 %s8, 1
      %s149 = smul.u32 2, %s18
      %p150 = scmp.lt.s32.totalorder %s17, 1
      %s151 = scalar_select %p150, %s17, 1
      %p152 = scmp.lt.s32.totalorder %s149, 1
      %s153 = scalar_select %p152, %s149, 1
      %s154 = smul.addr %s151, 2
      %s155 = sadd.s32 %s153, %s154
      %s156 = smul.addr %s155, 8
      %s157 = scalar_lea.vmem %s0, %s156
      %p158 = pneg %p48
      %p159 = pneg %p45
      %p160 = scmp.lt.s32.totalorder %s17, 1
      %s161 = scalar_select %p160, %s17, 1
      %s162 = smul.addr %s161, 4
      %s163 = smul.addr %s162, 8
      %s164 = scalar_lea.vmem %s1, %s163
      %p165 = pneg %p74
      %p166 = pneg %p71
      %p167 = pneg %p102
      %p168 = pneg %p99
      %s169 = smul.u32 2, %s18
      %p170 = scmp.lt.s32.totalorder %s17, 1
      %s171 = scalar_select %p170, %s17, 1
      %p172 = scmp.lt.s32.totalorder %s169, 1
      %s173 = scalar_select %p172, %s169, 1
      %s174 = smul.addr %s171, 2
      %s175 = sadd.s32 %s173, %s174
      %s176 = smul.addr %s175, 8
      %s177 = scalar_lea.vmem %s2, %s176
      %s178 = smul.u32 2, %s18
      %p179 = scmp.lt.s32.totalorder %s17, 1
      %s180 = scalar_select %p179, %s17, 1
      %p181 = scmp.lt.s32.totalorder %s178, 1
      %s182 = scalar_select %p181, %s178, 1
      %s183 = smul.addr %s180, 2
      %s184 = sadd.s32 %s182, %s183
      %s185 = smul.addr %s184, 8
      %s186 = scalar_lea.vmem %s0, %s185
      %s187 = smul.u32 2, %s18
      %p188 = scmp.lt.s32.totalorder %s17, 1
      %s189 = scalar_select %p188, %s17, 1
      %s190 = smul.addr %s189, 4
      %s191 = smul.addr %s190, 8
      %s192 = scalar_lea.vmem %s1, %s191
      %s193 = smul.u32 2, %s18
      %p194 = scmp.lt.s32.totalorder %s17, 1
      %s195 = scalar_select %p194, %s17, 1
      %p196 = scmp.lt.s32.totalorder %s193, 1
      %s197 = scalar_select %p196, %s193, 1
      %s198 = smul.addr %s195, 2
      %s199 = sadd.s32 %s197, %s198
      %s200 = smul.addr %s199, 8
      %s201 = scalar_lea.vmem %s2, %s200
      %s202 = smul.u32 2, %s18
      %v203 = vld [vmem:[%s186] sm:$0xff]
      %v204 = vld [vmem:[%s186 + $0x8] sm:$0xff]
      %v205 = vld [vmem:[%s192] sm:$0xff]
      %v206 = vld [vmem:[%s192 + $0x8] sm:$0xff]
      %v207 = vld [vmem:[%s192 + $0x10] sm:$0xff]
      %v208 = vld [vmem:[%s192 + $0x18] sm:$0xff]
      %vm209 = vcmask 39936
      %v211 = vsel %vm209, %v203, 0
      %v214 = vsel %vm209, %v204, 0
      %v217 = vsel %vm209, %v205, 0
      %v220 = vsel %vm209, %v206, 0
      %v223 = vsel %vm209, %v207, 0
      %v226 = vsel %vm209, %v208, 0
      %228 = vmatpush.xpose.msra.mxu0 0.0
      %229 = vmatpush.xpose.msra.mxu0 0.0
      %230 = vmatpush.xpose.msra.mxu0 0.0
      %231 = vmatpush.xpose.msra.mxu0 0.0
      %232 = vmatpush.xpose.msra.mxu0 0.0
      %233 = vmatpush.xpose.msra.mxu0 0.0
      %234 = vmatpush.xpose.msra.mxu0 0.0
      %235 = vmatpush.xpose.msra.mxu0 0.0
      %236 = vmatpush.xpose.msra.mxu0 0.0
      %237 = vmatpush.xpose.msra.mxu0 0.0
      %238 = vmatpush.xpose.msra.mxu0 0.0
      %239 = vmatpush.xpose.msra.mxu0 0.0
      %240 = vmatpush.xpose.msra.mxu0 %v226
      %241 = vmatpush.xpose.msra.mxu0 %v223
      %242 = vmatpush.xpose.msra.mxu0 %v220
      %243 = vmatpush.xpose.msra.mxu0 %v217
      %244 = vmatmul.f32.gmra.mxu0 %v211
      %v245 = vpop.f32.mrf.mxu0
      %v246 = vadd.f32 0.0, %v245
      %247 = vmatmul.f32.gmra.mxu0 %v214
      %v248 = vpop.f32.mrf.mxu0
      %v249 = vadd.f32 0.0, %v248
      %250 = vdwg.mxu0
      %vm251 = vcmask 261120
      %252 = vst.msk [vmem:[%s201] sm:$0xff] %vm251, %v246
      %253 = vst.msk [vmem:[%s201 + $0x8] sm:$0xff] %vm251, %v249
      %s254 = smul.u32 2, %s18
      %p255 = scmp.lt.s32.totalorder %s17, 1
      %s256 = scalar_select %p255, %s17, 1
      %p257 = scmp.lt.s32.totalorder %s254, 1
      %s258 = scalar_select %p257, %s254, 1
      %s259 = smul.addr %s256, 2
      %s260 = sadd.s32 %s258, %s259
      %s261 = smul.addr %s260, 8
      %s262 = scalar_lea.vmem %s2, %s261
      // Predicated region
      $region29: #{model_forward.12} parent=27 // pred_check
        %p263 = pneg %p99
      $region30: #{model_forward.12} parent=27 // pred_check_branch
        %265 = sbr.rel (%p263) target = $region32
      $region31: #{model_forward.12} parent=27 // pred_region
        %s266 = smul.u32 2, %s18
      $region32: #{model_forward.12} parent=27 // pred_fallthru
        _
    $region28: #{model_forward.12} parent=5 // pred_fallthru
      _
    %p267 = scmp.le.s32.totalorder 2, %s8
    // Predicated region
    $region33: #{model_forward.12} parent=5 // pred_check
      %p268 = pneg %p267
    $region34: #{model_forward.12} parent=5 // pred_check_branch
      %270 = sbr.rel (%p268) target = $region36
    $region35: #{model_forward.12} parent=5 // pred_region
      %s271 = ssub.s32 %s8, 2
      // Predicated region
      $region37: #{model_forward.12} parent=35 // pred_check
        %p272 = pneg %p105
      $region38: #{model_forward.12} parent=35 // pred_check_branch
        %274 = sbr.rel (%p272) target = $region40
      $region39: #{model_forward.12} parent=35 // pred_region
        %s275 = smul.u32 2, %s20
        %p276 = scmp.lt.s32.totalorder %s19, 1
        %s277 = scalar_select %p276, %s19, 1
        %p278 = scmp.lt.s32.totalorder %s275, 1
        %s279 = scalar_select %p278, %s275, 1
        %s280 = smul.addr %s277, 2
        %s281 = sadd.s32 %s279, %s280
        %s282 = smul.addr %s281, 8
        %s283 = scalar_lea.vmem %s2, %s282
      $region40: #{model_forward.12} parent=35 // pred_fallthru
        _
    $region36: #{model_forward.12} parent=5 // pred_fallthru
      _
  $region6: #{model_forward.12} parent=0 // loop_footer
    %s12 = sadd.s32 1, %s8
  $region7: #{model_forward.12} parent=0 // loop_footer_branch
    %7 = sbr.rel target = $region3
  $region8: #{model_forward.12} parent=0 // loop_exit
    _

// kernel: model_forward.10
$region0: #{model_forward.10}
  #allocation0 [shape = 'u32[]', space=smem, size = 0x4, offset = 0x4, fixed_abs, tag = 'smem constant byte address 0x4 - core index']
  #allocation1 [shape = 'u32[72,128]{1,0:T(1,128)}', space=vmem, size = 0x9000, scoped, tag = 'internal scratch']
  %s0 = inlined_call_operand.vmem [shape: f32[67,64], index: 0, kind: input, shape index: {}]
  %s1 = inlined_call_operand.vmem [shape: f32[1,64], index: 1, kind: input, shape index: {}]
  %s2 = inlined_call_operand.vmem [shape: f32[64,64], index: 2, kind: input, shape index: {}]
  %s3 = inlined_call_operand.vmem [shape: f32[1,64], index: 3, kind: input, shape index: {}]
  %s4 = inlined_call_operand.vmem [shape: f32[64,64], index: 4, kind: input, shape index: {}]
  %s5 = inlined_call_operand.vmem [shape: f32[1,64], index: 5, kind: input, shape index: {}]
  %s6 = inlined_call_operand.vmem [shape: f32[512,67], index: 6, kind: input, shape index: {}]
  %s7 = inlined_call_operand.vmem [shape: f32[64,64], index: 7, kind: output, shape index: {}]
  %s8 = sld [smem:[#allocation0]]
  $region38: #{model_forward.10} parent=0
    _
  %s10 = ssub.s32 1, %s8
  %s11 = scalar_select 0, %s10, %s8
  // Predicated region
  $region2: #{model_forward.10} parent=0 // pred_check
    _
  $region3: #{model_forward.10} parent=0 // pred_check_branch
    %13 = sbr.rel (0) target = $region5
  $region4: #{model_forward.10} parent=0 // pred_region
    _
  $region5: #{model_forward.10} parent=0 // pred_fallthru
    _
  // Predicated region
  $region6: #{model_forward.10} parent=0 // pred_check
    _
  $region7: #{model_forward.10} parent=0 // pred_check_branch
    %15 = sbr.rel (0) target = $region9
  $region8: #{model_forward.10} parent=0 // pred_region
    _
  $region9: #{model_forward.10} parent=0 // pred_fallthru
    _
  // Predicated region
  $region10: #{model_forward.10} parent=0 // pred_check
    _
  $region11: #{model_forward.10} parent=0 // pred_check_branch
    %17 = sbr.rel (0) target = $region13
  $region12: #{model_forward.10} parent=0 // pred_region
    _
  $region13: #{model_forward.10} parent=0 // pred_fallthru
    _
  // Predicated region
  $region14: #{model_forward.10} parent=0 // pred_check
    _
  $region15: #{model_forward.10} parent=0 // pred_check_branch
    %19 = sbr.rel (0) target = $region17
  $region16: #{model_forward.10} parent=0 // pred_region
    _
  $region17: #{model_forward.10} parent=0 // pred_fallthru
    _
  // Predicated region
  $region18: #{model_forward.10} parent=0 // pred_check
    _
  $region19: #{model_forward.10} parent=0 // pred_check_branch
    %21 = sbr.rel (0) target = $region21
  $region20: #{model_forward.10} parent=0 // pred_region
    _
  $region21: #{model_forward.10} parent=0 // pred_fallthru
    _
  // Predicated region
  $region22: #{model_forward.10} parent=0 // pred_check
    _
  $region23: #{model_forward.10} parent=0 // pred_check_branch
    %23 = sbr.rel (0) target = $region25
  $region24: #{model_forward.10} parent=0 // pred_region
    _
  $region25: #{model_forward.10} parent=0 // pred_fallthru
    _
  // Predicated region
  $region26: #{model_forward.10} parent=0 // pred_check
    _
  $region27: #{model_forward.10} parent=0 // pred_check_branch
    %25 = sbr.rel (0) target = $region29
  $region28: #{model_forward.10} parent=0 // pred_region
    _
  $region29: #{model_forward.10} parent=0 // pred_fallthru
    _
  %v26 = vld [vmem:[%s6] sm:$0xff]
  %v27 = vld [vmem:[%s6 + $0x8] sm:$0xff]
  %v28 = vld [vmem:[%s6 + $0x10] sm:$0xff]
  %v29 = vld [vmem:[%s6 + $0x18] sm:$0xff]
  %v30 = vld [vmem:[%s6 + $0x20] sm:$0xff]
  %v31 = vld [vmem:[%s6 + $0x28] sm:$0xff]
  %v32 = vld [vmem:[%s6 + $0x30] sm:$0xff]
  %v33 = vld [vmem:[%s6 + $0x38] sm:$0xff]
  %v34 = vld [vmem:[%s6 + $0x40] sm:$0xff]
  %v35 = vld [vmem:[%s6 + $0x48] sm:$0xff]
  %v36 = vld [vmem:[%s6 + $0x50] sm:$0xff]
  %v37 = vld [vmem:[%s6 + $0x58] sm:$0xff]
  %v38 = vld [vmem:[%s6 + $0x60] sm:$0xff]
  %v39 = vld [vmem:[%s6 + $0x68] sm:$0xff]
  %v40 = vld [vmem:[%s6 + $0x70] sm:$0xff]
  %v41 = vld [vmem:[%s6 + $0x78] sm:$0xff]
  %v42 = vld [vmem:[%s6 + $0x80] sm:$0xff]
  %v43 = vld [vmem:[%s6 + $0x88] sm:$0xff]
  %v44 = vld [vmem:[%s6 + $0x90] sm:$0xff]
  %v45 = vld [vmem:[%s6 + $0x98] sm:$0xff]
  %v46 = vld [vmem:[%s6 + $0xa0] sm:$0xff]
  %v47 = vld [vmem:[%s6 + $0xa8] sm:$0xff]
  %v48 = vld [vmem:[%s6 + $0xb0] sm:$0xff]
  %v49 = vld [vmem:[%s6 + $0xb8] sm:$0xff]
  %v50 = vld [vmem:[%s6 + $0xc0] sm:$0xff]
  %v51 = vld [vmem:[%s6 + $0xc8] sm:$0xff]
  %v52 = vld [vmem:[%s6 + $0xd0] sm:$0xff]
  %v53 = vld [vmem:[%s6 + $0xd8] sm:$0xff]
  %v54 = vld [vmem:[%s6 + $0xe0] sm:$0xff]
  %v55 = vld [vmem:[%s6 + $0xe8] sm:$0xff]
  %v56 = vld [vmem:[%s6 + $0xf0] sm:$0xff]
  %v57 = vld [vmem:[%s6 + $0xf8] sm:$0xff]
  %v58 = vld [vmem:[%s6 + $0x100] sm:$0xff]
  %v59 = vld [vmem:[%s6 + $0x108] sm:$0xff]
  %v60 = vld [vmem:[%s6 + $0x110] sm:$0xff]
  %v61 = vld [vmem:[%s6 + $0x118] sm:$0xff]
  %v62 = vld [vmem:[%s6 + $0x120] sm:$0xff]
  %v63 = vld [vmem:[%s6 + $0x128] sm:$0xff]
  %v64 = vld [vmem:[%s6 + $0x130] sm:$0xff]
  %v65 = vld [vmem:[%s6 + $0x138] sm:$0xff]
  %v66 = vld [vmem:[%s6 + $0x140] sm:$0xff]
  %v67 = vld [vmem:[%s6 + $0x148] sm:$0xff]
  %v68 = vld [vmem:[%s6 + $0x150] sm:$0xff]
  %v69 = vld [vmem:[%s6 + $0x158] sm:$0xff]
  %v70 = vld [vmem:[%s6 + $0x160] sm:$0xff]
  %v71 = vld [vmem:[%s6 + $0x168] sm:$0xff]
  %v72 = vld [vmem:[%s6 + $0x170] sm:$0xff]
  %v73 = vld [vmem:[%s6 + $0x178] sm:$0xff]
  %v74 = vld [vmem:[%s6 + $0x180] sm:$0xff]
  %v75 = vld [vmem:[%s6 + $0x188] sm:$0xff]
  %v76 = vld [vmem:[%s6 + $0x190] sm:$0xff]
  %v77 = vld [vmem:[%s6 + $0x198] sm:$0xff]
  %v78 = vld [vmem:[%s6 + $0x1a0] sm:$0xff]
  %v79 = vld [vmem:[%s6 + $0x1a8] sm:$0xff]
  %v80 = vld [vmem:[%s6 + $0x1b0] sm:$0xff]
  %v81 = vld [vmem:[%s6 + $0x1b8] sm:$0xff]
  %v82 = vld [vmem:[%s6 + $0x1c0] sm:$0xff]
  %v83 = vld [vmem:[%s6 + $0x1c8] sm:$0xff]
  %v84 = vld [vmem:[%s6 + $0x1d0] sm:$0xff]
  %v85 = vld [vmem:[%s6 + $0x1d8] sm:$0xff]
  %v86 = vld [vmem:[%s6 + $0x1e0] sm:$0xff]
  %v87 = vld [vmem:[%s6 + $0x1e8] sm:$0xff]
  %v88 = vld [vmem:[%s6 + $0x1f0] sm:$0xff]
  %v89 = vld [vmem:[%s6 + $0x1f8] sm:$0xff]
  %v90 = vld [vmem:[%s0] sm:$0xff]
  %v91 = vld [vmem:[%s0 + $0x8] sm:$0xff]
  %v92 = vld [vmem:[%s0 + $0x10] sm:$0xff]
  %v93 = vld [vmem:[%s0 + $0x18] sm:$0xff]
  %v94 = vld [vmem:[%s0 + $0x20] sm:$0xff]
  %v95 = vld [vmem:[%s0 + $0x28] sm:$0xff]
  %v96 = vld [vmem:[%s0 + $0x30] sm:$0xff]
  %v97 = vld [vmem:[%s0 + $0x38] sm:$0xff]
  %v98 = vld [vmem:[%s0 + $0x40] sm:$0x7]
  %v99 = vld [vmem:[%s1] sm:$0x1]
  %v101 = vperm.slane %v99, 0
  %vm103 = vcmask 547840
  %v105 = vsel %vm103, %v26, 0
  %v108 = vsel %vm103, %v27, 0
  %v111 = vsel %vm103, %v28, 0
  %v114 = vsel %vm103, %v29, 0
  %v117 = vsel %vm103, %v30, 0
  %v120 = vsel %vm103, %v31, 0
  %v123 = vsel %vm103, %v32, 0
  %v126 = vsel %vm103, %v33, 0
  %v129 = vsel %vm103, %v34, 0
  %v132 = vsel %vm103, %v35, 0
  %v135 = vsel %vm103, %v36, 0
  %v138 = vsel %vm103, %v37, 0
  %v141 = vsel %vm103, %v38, 0
  %v144 = vsel %vm103, %v39, 0
  %v147 = vsel %vm103, %v40, 0
  %v150 = vsel %vm103, %v41, 0
  %v153 = vsel %vm103, %v42, 0
  %v156 = vsel %vm103, %v43, 0
  %v159 = vsel %vm103, %v44, 0
  %v162 = vsel %vm103, %v45, 0
  %v165 = vsel %vm103, %v46, 0
  %v168 = vsel %vm103, %v47, 0
  %v171 = vsel %vm103, %v48, 0
  %v174 = vsel %vm103, %v49, 0
  %v177 = vsel %vm103, %v50, 0
  %v180 = vsel %vm103, %v51, 0
  %v183 = vsel %vm103, %v52, 0
  %v186 = vsel %vm103, %v53, 0
  %v189 = vsel %vm103, %v54, 0
  %v192 = vsel %vm103, %v55, 0
  %v195 = vsel %vm103, %v56, 0
  %v198 = vsel %vm103, %v57, 0
  %v201 = vsel %vm103, %v58, 0
  %v204 = vsel %vm103, %v59, 0
  %v207 = vsel %vm103, %v60, 0
  %v210 = vsel %vm103, %v61, 0
  %v213 = vsel %vm103, %v62, 0
  %v216 = vsel %vm103, %v63, 0
  %v219 = vsel %vm103, %v64, 0
  %v222 = vsel %vm103, %v65, 0
  %v225 = vsel %vm103, %v66, 0
  %v228 = vsel %vm103, %v67, 0
  %v231 = vsel %vm103, %v68, 0
  %v234 = vsel %vm103, %v69, 0
  %v237 = vsel %vm103, %v70, 0
  %v240 = vsel %vm103, %v71, 0
  %v243 = vsel %vm103, %v72, 0
  %v246 = vsel %vm103, %v73, 0
  %v249 = vsel %vm103, %v74, 0
  %v252 = vsel %vm103, %v75, 0
  %v255 = vsel %vm103, %v76, 0
  %v258 = vsel %vm103, %v77, 0
  %v261 = vsel %vm103, %v78, 0
  %v264 = vsel %vm103, %v79, 0
  %v267 = vsel %vm103, %v80, 0
  %v270 = vsel %vm103, %v81, 0
  %v273 = vsel %vm103, %v82, 0
  %v276 = vsel %vm103, %v83, 0
  %v279 = vsel %vm103, %v84, 0
  %v282 = vsel %vm103, %v85, 0
  %v285 = vsel %vm103, %v86, 0
  %v288 = vsel %vm103, %v87, 0
  %v291 = vsel %vm103, %v88, 0
  %v294 = vsel %vm103, %v89, 0
  %vm296 = vcmask 1042432
  %v298 = vsel %vm296, %v98, 0
  %300 = vmatpush.msra.mxu0 0.0
  %301 = vmatpush.msra.mxu0 0.0
  %302 = vmatpush.msra.mxu0 0.0
  %303 = vmatpush.msra.mxu0 0.0
  %304 = vmatpush.msra.mxu0 0.0
  %305 = vmatpush.msra.mxu0 0.0
  %306 = vmatpush.msra.mxu0 0.0
  %307 = vmatpush.msra.mxu0 %v298
  %308 = vmatpush.msra.mxu0 %v97
  %309 = vmatpush.msra.mxu0 %v96
  %310 = vmatpush.msra.mxu0 %v95
  %311 = vmatpush.msra.mxu0 %v94
  %312 = vmatpush.msra.mxu0 %v93
  %313 = vmatpush.msra.mxu0 %v92
  %314 = vmatpush.msra.mxu0 %v91
  %315 = vmatpush.msra.mxu0 %v90
  %316 = vmatmul.f32.gmra.mxu0 %v105
  %v317 = vpop.f32.mrf.mxu0
  %v318 = vadd.f32 %v101, %v317
  %319 = vmatmul.f32.gmra.mxu0 %v108
  %v320 = vpop.f32.mrf.mxu0
  %v321 = vadd.f32 %v101, %v320
  %322 = vmatmul.f32.gmra.mxu0 %v111
  %v323 = vpop.f32.mrf.mxu0
  %v324 = vadd.f32 %v101, %v323
  %325 = vmatmul.f32.gmra.mxu0 %v114
  %v326 = vpop.f32.mrf.mxu0
  %v327 = vadd.f32 %v101, %v326
  %328 = vmatmul.f32.gmra.mxu0 %v117
  %v329 = vpop.f32.mrf.mxu0
  %v330 = vadd.f32 %v101, %v329
  %331 = vmatmul.f32.gmra.mxu0 %v120
  %v332 = vpop.f32.mrf.mxu0
  %v333 = vadd.f32 %v101, %v332
  %334 = vmatmul.f32.gmra.mxu0 %v123
  %v335 = vpop.f32.mrf.mxu0
  %v336 = vadd.f32 %v101, %v335
  %337 = vmatmul.f32.gmra.mxu0 %v126
  %v338 = vpop.f32.mrf.mxu0
  %v339 = vadd.f32 %v101, %v338
  %340 = vmatmul.f32.gmra.mxu0 %v129
  %v341 = vpop.f32.mrf.mxu0
  %v342 = vadd.f32 %v101, %v341
  %343 = vmatmul.f32.gmra.mxu0 %v132
  %v344 = vpop.f32.mrf.mxu0
  %v345 = vadd.f32 %v101, %v344
  %346 = vmatmul.f32.gmra.mxu0 %v135
  %v347 = vpop.f32.mrf.mxu0
  %v348 = vadd.f32 %v101, %v347
  %349 = vmatmul.f32.gmra.mxu0 %v138
  %v350 = vpop.f32.mrf.mxu0
  %v351 = vadd.f32 %v101, %v350
  %352 = vmatmul.f32.gmra.mxu0 %v141
  %v353 = vpop.f32.mrf.mxu0
  %v354 = vadd.f32 %v101, %v353
  %355 = vmatmul.f32.gmra.mxu0 %v144
  %v356 = vpop.f32.mrf.mxu0
  %v357 = vadd.f32 %v101, %v356
  %358 = vmatmul.f32.gmra.mxu0 %v147
  %v359 = vpop.f32.mrf.mxu0
  %v360 = vadd.f32 %v101, %v359
  %361 = vmatmul.f32.gmra.mxu0 %v150
  %v362 = vpop.f32.mrf.mxu0
  %v363 = vadd.f32 %v101, %v362
  %364 = vmatmul.f32.gmra.mxu0 %v153
  %v365 = vpop.f32.mrf.mxu0
  %v366 = vadd.f32 %v101, %v365
  %367 = vmatmul.f32.gmra.mxu0 %v156
  %v368 = vpop.f32.mrf.mxu0
  %v369 = vadd.f32 %v101, %v368
  %370 = vmatmul.f32.gmra.mxu0 %v159
  %v371 = vpop.f32.mrf.mxu0
  %v372 = vadd.f32 %v101, %v371
  %373 = vmatmul.f32.gmra.mxu0 %v162
  %v374 = vpop.f32.mrf.mxu0
  %v375 = vadd.f32 %v101, %v374
  %376 = vmatmul.f32.gmra.mxu0 %v165
  %v377 = vpop.f32.mrf.mxu0
  %v378 = vadd.f32 %v101, %v377
  %379 = vmatmul.f32.gmra.mxu0 %v168
  %v380 = vpop.f32.mrf.mxu0
  %v381 = vadd.f32 %v101, %v380
  %382 = vmatmul.f32.gmra.mxu0 %v171
  %v383 = vpop.f32.mrf.mxu0
  %v384 = vadd.f32 %v101, %v383
  %385 = vmatmul.f32.gmra.mxu0 %v174
  %v386 = vpop.f32.mrf.mxu0
  %v387 = vadd.f32 %v101, %v386
  %388 = vmatmul.f32.gmra.mxu0 %v177
  %v389 = vpop.f32.mrf.mxu0
  %v390 = vadd.f32 %v101, %v389
  %391 = vmatmul.f32.gmra.mxu0 %v180
  %v392 = vpop.f32.mrf.mxu0
  %v393 = vadd.f32 %v101, %v392
  %394 = vmatmul.f32.gmra.mxu0 %v183
  %v395 = vpop.f32.mrf.mxu0
  %v396 = vadd.f32 %v101, %v395
  %397 = vmatmul.f32.gmra.mxu0 %v186
  %v398 = vpop.f32.mrf.mxu0
  %v399 = vadd.f32 %v101, %v398
  %400 = vmatmul.f32.gmra.mxu0 %v189
  %v401 = vpop.f32.mrf.mxu0
  %v402 = vadd.f32 %v101, %v401
  %403 = vmatmul.f32.gmra.mxu0 %v192
  %v404 = vpop.f32.mrf.mxu0
  %v405 = vadd.f32 %v101, %v404
  %406 = vmatmul.f32.gmra.mxu0 %v195
  %v407 = vpop.f32.mrf.mxu0
  %v408 = vadd.f32 %v101, %v407
  %409 = vmatmul.f32.gmra.mxu0 %v198
  %v410 = vpop.f32.mrf.mxu0
  %v411 = vadd.f32 %v101, %v410
  %412 = vmatmul.f32.gmra.mxu0 %v201
  %v413 = vpop.f32.mrf.mxu0
  %v414 = vadd.f32 %v101, %v413
  %415 = vmatmul.f32.gmra.mxu0 %v204
  %v416 = vpop.f32.mrf.mxu0
  %v417 = vadd.f32 %v101, %v416
  %418 = vmatmul.f32.gmra.mxu0 %v207
  %v419 = vpop.f32.mrf.mxu0
  %v420 = vadd.f32 %v101, %v419
  %421 = vmatmul.f32.gmra.mxu0 %v210
  %v422 = vpop.f32.mrf.mxu0
  %v423 = vadd.f32 %v101, %v422
  %424 = vmatmul.f32.gmra.mxu0 %v213
  %v425 = vpop.f32.mrf.mxu0
  %v426 = vadd.f32 %v101, %v425
  %427 = vmatmul.f32.gmra.mxu0 %v216
  %v428 = vpop.f32.mrf.mxu0
  %v429 = vadd.f32 %v101, %v428
  %430 = vmatmul.f32.gmra.mxu0 %v219
  %v431 = vpop.f32.mrf.mxu0
  %v432 = vadd.f32 %v101, %v431
  %433 = vmatmul.f32.gmra.mxu0 %v222
  %v434 = vpop.f32.mrf.mxu0
  %v435 = vadd.f32 %v101, %v434
  %436 = vmatmul.f32.gmra.mxu0 %v225
  %v437 = vpop.f32.mrf.mxu0
  %v438 = vadd.f32 %v101, %v437
  %439 = vmatmul.f32.gmra.mxu0 %v228
  %v440 = vpop.f32.mrf.mxu0
  %v441 = vadd.f32 %v101, %v440
  %442 = vmatmul.f32.gmra.mxu0 %v231
  %v443 = vpop.f32.mrf.mxu0
  %v444 = vadd.f32 %v101, %v443
  %445 = vmatmul.f32.gmra.mxu0 %v234
  %v446 = vpop.f32.mrf.mxu0
  %v447 = vadd.f32 %v101, %v446
  %448 = vmatmul.f32.gmra.mxu0 %v237
  %v449 = vpop.f32.mrf.mxu0
  %v450 = vadd.f32 %v101, %v449
  %451 = vmatmul.f32.gmra.mxu0 %v240
  %v452 = vpop.f32.mrf.mxu0
  %v453 = vadd.f32 %v101, %v452
  %454 = vmatmul.f32.gmra.mxu0 %v243
  %v455 = vpop.f32.mrf.mxu0
  %v456 = vadd.f32 %v101, %v455
  %457 = vmatmul.f32.gmra.mxu0 %v246
  %v458 = vpop.f32.mrf.mxu0
  %v459 = vadd.f32 %v101, %v458
  %460 = vmatmul.f32.gmra.mxu0 %v249
  %v461 = vpop.f32.mrf.mxu0
  %v462 = vadd.f32 %v101, %v461
  %463 = vmatmul.f32.gmra.mxu0 %v252
  %v464 = vpop.f32.mrf.mxu0
  %v465 = vadd.f32 %v101, %v464
  %466 = vmatmul.f32.gmra.mxu0 %v255
  %v467 = vpop.f32.mrf.mxu0
  %v468 = vadd.f32 %v101, %v467
  %469 = vmatmul.f32.gmra.mxu0 %v258
  %v470 = vpop.f32.mrf.mxu0
  %v471 = vadd.f32 %v101, %v470
  %472 = vmatmul.f32.gmra.mxu0 %v261
  %v473 = vpop.f32.mrf.mxu0
  %v474 = vadd.f32 %v101, %v473
  %475 = vmatmul.f32.gmra.mxu0 %v264
  %v476 = vpop.f32.mrf.mxu0
  %v477 = vadd.f32 %v101, %v476
  %478 = vmatmul.f32.gmra.mxu0 %v267
  %v479 = vpop.f32.mrf.mxu0
  %v480 = vadd.f32 %v101, %v479
  %481 = vmatmul.f32.gmra.mxu0 %v270
  %v482 = vpop.f32.mrf.mxu0
  %v483 = vadd.f32 %v101, %v482
  %484 = vmatmul.f32.gmra.mxu0 %v273
  %v485 = vpop.f32.mrf.mxu0
  %v486 = vadd.f32 %v101, %v485
  %487 = vmatmul.f32.gmra.mxu0 %v276
  %v488 = vpop.f32.mrf.mxu0
  %v489 = vadd.f32 %v101, %v488
  %490 = vmatmul.f32.gmra.mxu0 %v279
  %v491 = vpop.f32.mrf.mxu0
  %v492 = vadd.f32 %v101, %v491
  %493 = vmatmul.f32.gmra.mxu0 %v282
  %v494 = vpop.f32.mrf.mxu0
  %v495 = vadd.f32 %v101, %v494
  %496 = vmatmul.f32.gmra.mxu0 %v285
  %v497 = vpop.f32.mrf.mxu0
  %v498 = vadd.f32 %v101, %v497
  %499 = vmatmul.f32.gmra.mxu0 %v288
  %v500 = vpop.f32.mrf.mxu0
  %v501 = vadd.f32 %v101, %v500
  %502 = vmatmul.f32.gmra.mxu0 %v291
  %v503 = vpop.f32.mrf.mxu0
  %v504 = vadd.f32 %v101, %v503
  %505 = vmatmul.f32.gmra.mxu0 %v294
  %v506 = vpop.f32.mrf.mxu0
  %v507 = vadd.f32 %v101, %v506
  %508 = vdwg.mxu0
  %v509 = vmax.f32 %v318, 0.0
  %v510 = vmax.f32 %v321, 0.0
  %v511 = vmax.f32 %v324, 0.0
  %v512 = vmax.f32 %v327, 0.0
  %v513 = vmax.f32 %v330, 0.0
  %v514 = vmax.f32 %v333, 0.0
  %v515 = vmax.f32 %v336, 0.0
  %v516 = vmax.f32 %v339, 0.0
  %v517 = vmax.f32 %v342, 0.0
  %v518 = vmax.f32 %v345, 0.0
  %v519 = vmax.f32 %v348, 0.0
  %v520 = vmax.f32 %v351, 0.0
  %v521 = vmax.f32 %v354, 0.0
  %v522 = vmax.f32 %v357, 0.0
  %v523 = vmax.f32 %v360, 0.0
  %v524 = vmax.f32 %v363, 0.0
  %v525 = vmax.f32 %v366, 0.0
  %v526 = vmax.f32 %v369, 0.0
  %v527 = vmax.f32 %v372, 0.0
  %v528 = vmax.f32 %v375, 0.0
  %v529 = vmax.f32 %v378, 0.0
  %v530 = vmax.f32 %v381, 0.0
  %v531 = vmax.f32 %v384, 0.0
  %v532 = vmax.f32 %v387, 0.0
  %v533 = vmax.f32 %v390, 0.0
  %v534 = vmax.f32 %v393, 0.0
  %v535 = vmax.f32 %v396, 0.0
  %v536 = vmax.f32 %v399, 0.0
  %v537 = vmax.f32 %v402, 0.0
  %v538 = vmax.f32 %v405, 0.0
  %v539 = vmax.f32 %v408, 0.0
  %v540 = vmax.f32 %v411, 0.0
  %v541 = vmax.f32 %v414, 0.0
  %v542 = vmax.f32 %v417, 0.0
  %v543 = vmax.f32 %v420, 0.0
  %v544 = vmax.f32 %v423, 0.0
  %v545 = vmax.f32 %v426, 0.0
  %v546 = vmax.f32 %v429, 0.0
  %v547 = vmax.f32 %v432, 0.0
  %v548 = vmax.f32 %v435, 0.0
  %v549 = vmax.f32 %v438, 0.0
  %v550 = vmax.f32 %v441, 0.0
  %v551 = vmax.f32 %v444, 0.0
  %v552 = vmax.f32 %v447, 0.0
  %v553 = vmax.f32 %v450, 0.0
  %v554 = vmax.f32 %v453, 0.0
  %v555 = vmax.f32 %v456, 0.0
  %v556 = vmax.f32 %v459, 0.0
  %v557 = vmax.f32 %v462, 0.0
  %v558 = vmax.f32 %v465, 0.0
  %v559 = vmax.f32 %v468, 0.0
  %v560 = vmax.f32 %v471, 0.0
  %v561 = vmax.f32 %v474, 0.0
  %v562 = vmax.f32 %v477, 0.0
  %v563 = vmax.f32 %v480, 0.0
  %v564 = vmax.f32 %v483, 0.0
  %v565 = vmax.f32 %v486, 0.0
  %v566 = vmax.f32 %v489, 0.0
  %v567 = vmax.f32 %v492, 0.0
  %v568 = vmax.f32 %v495, 0.0
  %v569 = vmax.f32 %v498, 0.0
  %v570 = vmax.f32 %v501, 0.0
  %v571 = vmax.f32 %v504, 0.0
  %v572 = vmax.f32 %v507, 0.0
  %v573 = vld [vmem:[%s2] sm:$0xff]
  %v574 = vld [vmem:[%s2 + $0x8] sm:$0xff]
  %v575 = vld [vmem:[%s2 + $0x10] sm:$0xff]
  %v576 = vld [vmem:[%s2 + $0x18] sm:$0xff]
  %v577 = vld [vmem:[%s2 + $0x20] sm:$0xff]
  %v578 = vld [vmem:[%s2 + $0x28] sm:$0xff]
  %v579 = vld [vmem:[%s2 + $0x30] sm:$0xff]
  %v580 = vld [vmem:[%s2 + $0x38] sm:$0xff]
  %v581 = vld [vmem:[%s3] sm:$0x1]
  %v583 = vperm.slane %v581, 0
  %vm585 = vcmask 523264
  %v587 = vsel %vm585, %v509, 0
  %v590 = vsel %vm585, %v510, 0
  %v593 = vsel %vm585, %v511, 0
  %v596 = vsel %vm585, %v512, 0
  %v599 = vsel %vm585, %v513, 0
  %v602 = vsel %vm585, %v514, 0
  %v605 = vsel %vm585, %v515, 0
  %v608 = vsel %vm585, %v516, 0
  %v611 = vsel %vm585, %v517, 0
  %v614 = vsel %vm585, %v518, 0
  %v617 = vsel %vm585, %v519, 0
  %v620 = vsel %vm585, %v520, 0
  %v623 = vsel %vm585, %v521, 0
  %v626 = vsel %vm585, %v522, 0
  %v629 = vsel %vm585, %v523, 0
  %v632 = vsel %vm585, %v524, 0
  %v635 = vsel %vm585, %v525, 0
  %v638 = vsel %vm585, %v526, 0
  %v641 = vsel %vm585, %v527, 0
  %v644 = vsel %vm585, %v528, 0
  %v647 = vsel %vm585, %v529, 0
  %v650 = vsel %vm585, %v530, 0
  %v653 = vsel %vm585, %v531, 0
  %v656 = vsel %vm585, %v532, 0
  %v659 = vsel %vm585, %v533, 0
  %v662 = vsel %vm585, %v534, 0
  %v665 = vsel %vm585, %v535, 0
  %v668 = vsel %vm585, %v536, 0
  %v671 = vsel %vm585, %v537, 0
  %v674 = vsel %vm585, %v538, 0
  %v677 = vsel %vm585, %v539, 0
  %v680 = vsel %vm585, %v540, 0
  %v683 = vsel %vm585, %v541, 0
  %v686 = vsel %vm585, %v542, 0
  %v689 = vsel %vm585, %v543, 0
  %v692 = vsel %vm585, %v544, 0
  %v695 = vsel %vm585, %v545, 0
  %v698 = vsel %vm585, %v546, 0
  %v701 = vsel %vm585, %v547, 0
  %v704 = vsel %vm585, %v548, 0
  %v707 = vsel %vm585, %v549, 0
  %v710 = vsel %vm585, %v550, 0
  %v713 = vsel %vm585, %v551, 0
  %v716 = vsel %vm585, %v552, 0
  %v719 = vsel %vm585, %v553, 0
  %v722 = vsel %vm585, %v554, 0
  %v725 = vsel %vm585, %v555, 0
  %v728 = vsel %vm585, %v556, 0
  %v731 = vsel %vm585, %v557, 0
  %v734 = vsel %vm585, %v558, 0
  %v737 = vsel %vm585, %v559, 0
  %v740 = vsel %vm585, %v560, 0
  %v743 = vsel %vm585, %v561, 0
  %v746 = vsel %vm585, %v562, 0
  %v749 = vsel %vm585, %v563, 0
  %v752 = vsel %vm585, %v564, 0
  %v755 = vsel %vm585, %v565, 0
  %v758 = vsel %vm585, %v566, 0
  %v761 = vsel %vm585, %v567, 0
  %v764 = vsel %vm585, %v568, 0
  %v767 = vsel %vm585, %v569, 0
  %v770 = vsel %vm585, %v570, 0
  %v773 = vsel %vm585, %v571, 0
  %v776 = vsel %vm585, %v572, 0
  %778 = vmatpush.msra.mxu0 0.0
  %779 = vmatpush.msra.mxu0 0.0
  %780 = vmatpush.msra.mxu0 0.0
  %781 = vmatpush.msra.mxu0 0.0
  %782 = vmatpush.msra.mxu0 0.0
  %783 = vmatpush.msra.mxu0 0.0
  %784 = vmatpush.msra.mxu0 0.0
  %785 = vmatpush.msra.mxu0 0.0
  %786 = vmatpush.msra.mxu0 %v580
  %787 = vmatpush.msra.mxu0 %v579
  %788 = vmatpush.msra.mxu0 %v578
  %789 = vmatpush.msra.mxu0 %v577
  %790 = vmatpush.msra.mxu0 %v576
  %791 = vmatpush.msra.mxu0 %v575
  %792 = vmatpush.msra.mxu0 %v574
  %793 = vmatpush.msra.mxu0 %v573
  %794 = vmatmul.f32.gmra.mxu0 %v587
  %v795 = vpop.f32.mrf.mxu0
  %v796 = vadd.f32 %v583, %v795
  %797 = vmatmul.f32.gmra.mxu0 %v590
  %v798 = vpop.f32.mrf.mxu0
  %v799 = vadd.f32 %v583, %v798
  %800 = vmatmul.f32.gmra.mxu0 %v593
  %v801 = vpop.f32.mrf.mxu0
  %v802 = vadd.f32 %v583, %v801
  %803 = vmatmul.f32.gmra.mxu0 %v596
  %v804 = vpop.f32.mrf.mxu0
  %v805 = vadd.f32 %v583, %v804
  %806 = vmatmul.f32.gmra.mxu0 %v599
  %v807 = vpop.f32.mrf.mxu0
  %v808 = vadd.f32 %v583, %v807
  %809 = vmatmul.f32.gmra.mxu0 %v602
  %v810 = vpop.f32.mrf.mxu0
  %v811 = vadd.f32 %v583, %v810
  %812 = vmatmul.f32.gmra.mxu0 %v605
  %v813 = vpop.f32.mrf.mxu0
  %v814 = vadd.f32 %v583, %v813
  %815 = vmatmul.f32.gmra.mxu0 %v608
  %v816 = vpop.f32.mrf.mxu0
  %v817 = vadd.f32 %v583, %v816
  %818 = vmatmul.f32.gmra.mxu0 %v611
  %v819 = vpop.f32.mrf.mxu0
  %v820 = vadd.f32 %v583, %v819
  %821 = vmatmul.f32.gmra.mxu0 %v614
  %v822 = vpop.f32.mrf.mxu0
  %v823 = vadd.f32 %v583, %v822
  %824 = vmatmul.f32.gmra.mxu0 %v617
  %v825 = vpop.f32.mrf.mxu0
  %v826 = vadd.f32 %v583, %v825
  %827 = vmatmul.f32.gmra.mxu0 %v620
  %v828 = vpop.f32.mrf.mxu0
  %v829 = vadd.f32 %v583, %v828
  %830 = vmatmul.f32.gmra.mxu0 %v623
  %v831 = vpop.f32.mrf.mxu0
  %v832 = vadd.f32 %v583, %v831
  %833 = vmatmul.f32.gmra.mxu0 %v626
  %v834 = vpop.f32.mrf.mxu0
  %v835 = vadd.f32 %v583, %v834
  %836 = vmatmul.f32.gmra.mxu0 %v629
  %v837 = vpop.f32.mrf.mxu0
  %v838 = vadd.f32 %v583, %v837
  %839 = vmatmul.f32.gmra.mxu0 %v632
  %v840 = vpop.f32.mrf.mxu0
  %v841 = vadd.f32 %v583, %v840
  %842 = vmatmul.f32.gmra.mxu0 %v635
  %v843 = vpop.f32.mrf.mxu0
  %v844 = vadd.f32 %v583, %v843
  %845 = vmatmul.f32.gmra.mxu0 %v638
  %v846 = vpop.f32.mrf.mxu0
  %v847 = vadd.f32 %v583, %v846
  %848 = vmatmul.f32.gmra.mxu0 %v641
  %v849 = vpop.f32.mrf.mxu0
  %v850 = vadd.f32 %v583, %v849
  %851 = vmatmul.f32.gmra.mxu0 %v644
  %v852 = vpop.f32.mrf.mxu0
  %v853 = vadd.f32 %v583, %v852
  %854 = vmatmul.f32.gmra.mxu0 %v647
  %v855 = vpop.f32.mrf.mxu0
  %v856 = vadd.f32 %v583, %v855
  %857 = vmatmul.f32.gmra.mxu0 %v650
  %v858 = vpop.f32.mrf.mxu0
  %v859 = vadd.f32 %v583, %v858
  %860 = vmatmul.f32.gmra.mxu0 %v653
  %v861 = vpop.f32.mrf.mxu0
  %v862 = vadd.f32 %v583, %v861
  %863 = vmatmul.f32.gmra.mxu0 %v656
  %v864 = vpop.f32.mrf.mxu0
  %v865 = vadd.f32 %v583, %v864
  %866 = vmatmul.f32.gmra.mxu0 %v659
  %v867 = vpop.f32.mrf.mxu0
  %v868 = vadd.f32 %v583, %v867
  %869 = vmatmul.f32.gmra.mxu0 %v662
  %v870 = vpop.f32.mrf.mxu0
  %v871 = vadd.f32 %v583, %v870
  %872 = vmatmul.f32.gmra.mxu0 %v665
  %v873 = vpop.f32.mrf.mxu0
  %v874 = vadd.f32 %v583, %v873
  %875 = vmatmul.f32.gmra.mxu0 %v668
  %v876 = vpop.f32.mrf.mxu0
  %v877 = vadd.f32 %v583, %v876
  %878 = vmatmul.f32.gmra.mxu0 %v671
  %v879 = vpop.f32.mrf.mxu0
  %v880 = vadd.f32 %v583, %v879
  %881 = vmatmul.f32.gmra.mxu0 %v674
  %v882 = vpop.f32.mrf.mxu0
  %v883 = vadd.f32 %v583, %v882
  %884 = vmatmul.f32.gmra.mxu0 %v677
  %v885 = vpop.f32.mrf.mxu0
  %v886 = vadd.f32 %v583, %v885
  %887 = vmatmul.f32.gmra.mxu0 %v680
  %v888 = vpop.f32.mrf.mxu0
  %v889 = vadd.f32 %v583, %v888
  %890 = vmatmul.f32.gmra.mxu0 %v683
  %v891 = vpop.f32.mrf.mxu0
  %v892 = vadd.f32 %v583, %v891
  %893 = vmatmul.f32.gmra.mxu0 %v686
  %v894 = vpop.f32.mrf.mxu0
  %v895 = vadd.f32 %v583, %v894
  %896 = vmatmul.f32.gmra.mxu0 %v689
  %v897 = vpop.f32.mrf.mxu0
  %v898 = vadd.f32 %v583, %v897
  %899 = vmatmul.f32.gmra.mxu0 %v692
  %v900 = vpop.f32.mrf.mxu0
  %v901 = vadd.f32 %v583, %v900
  %902 = vmatmul.f32.gmra.mxu0 %v695
  %v903 = vpop.f32.mrf.mxu0
  %v904 = vadd.f32 %v583, %v903
  %905 = vmatmul.f32.gmra.mxu0 %v698
  %v906 = vpop.f32.mrf.mxu0
  %v907 = vadd.f32 %v583, %v906
  %908 = vmatmul.f32.gmra.mxu0 %v701
  %v909 = vpop.f32.mrf.mxu0
  %v910 = vadd.f32 %v583, %v909
  %911 = vmatmul.f32.gmra.mxu0 %v704
  %v912 = vpop.f32.mrf.mxu0
  %v913 = vadd.f32 %v583, %v912
  %914 = vmatmul.f32.gmra.mxu0 %v707
  %v915 = vpop.f32.mrf.mxu0
  %v916 = vadd.f32 %v583, %v915
  %917 = vmatmul.f32.gmra.mxu0 %v710
  %v918 = vpop.f32.mrf.mxu0
  %v919 = vadd.f32 %v583, %v918
  %920 = vmatmul.f32.gmra.mxu0 %v713
  %v921 = vpop.f32.mrf.mxu0
  %v922 = vadd.f32 %v583, %v921
  %923 = vmatmul.f32.gmra.mxu0 %v716
  %v924 = vpop.f32.mrf.mxu0
  %v925 = vadd.f32 %v583, %v924
  %926 = vmatmul.f32.gmra.mxu0 %v719
  %v927 = vpop.f32.mrf.mxu0
  %v928 = vadd.f32 %v583, %v927
  %929 = vmatmul.f32.gmra.mxu0 %v722
  %v930 = vpop.f32.mrf.mxu0
  %v931 = vadd.f32 %v583, %v930
  %932 = vmatmul.f32.gmra.mxu0 %v725
  %v933 = vpop.f32.mrf.mxu0
  %v934 = vadd.f32 %v583, %v933
  %935 = vmatmul.f32.gmra.mxu0 %v728
  %v936 = vpop.f32.mrf.mxu0
  %v937 = vadd.f32 %v583, %v936
  %938 = vmatmul.f32.gmra.mxu0 %v731
  %v939 = vpop.f32.mrf.mxu0
  %v940 = vadd.f32 %v583, %v939
  %941 = vmatmul.f32.gmra.mxu0 %v734
  %v942 = vpop.f32.mrf.mxu0
  %v943 = vadd.f32 %v583, %v942
  %944 = vmatmul.f32.gmra.mxu0 %v737
  %v945 = vpop.f32.mrf.mxu0
  %v946 = vadd.f32 %v583, %v945
  %947 = vmatmul.f32.gmra.mxu0 %v740
  %v948 = vpop.f32.mrf.mxu0
  %v949 = vadd.f32 %v583, %v948
  %950 = vmatmul.f32.gmra.mxu0 %v743
  %v951 = vpop.f32.mrf.mxu0
  %v952 = vadd.f32 %v583, %v951
  %953 = vmatmul.f32.gmra.mxu0 %v746
  %v954 = vpop.f32.mrf.mxu0
  %v955 = vadd.f32 %v583, %v954
  %956 = vmatmul.f32.gmra.mxu0 %v749
  %v957 = vpop.f32.mrf.mxu0
  %v958 = vadd.f32 %v583, %v957
  %959 = vmatmul.f32.gmra.mxu0 %v752
  %v960 = vpop.f32.mrf.mxu0
  %v961 = vadd.f32 %v583, %v960
  %962 = vmatmul.f32.gmra.mxu0 %v755
  %v963 = vpop.f32.mrf.mxu0
  %v964 = vadd.f32 %v583, %v963
  %965 = vmatmul.f32.gmra.mxu0 %v758
  %v966 = vpop.f32.mrf.mxu0
  %v967 = vadd.f32 %v583, %v966
  %968 = vmatmul.f32.gmra.mxu0 %v761
  %v969 = vpop.f32.mrf.mxu0
  %v970 = vadd.f32 %v583, %v969
  %971 = vmatmul.f32.gmra.mxu0 %v764
  %v972 = vpop.f32.mrf.mxu0
  %v973 = vadd.f32 %v583, %v972
  %974 = vmatmul.f32.gmra.mxu0 %v767
  %v975 = vpop.f32.mrf.mxu0
  %v976 = vadd.f32 %v583, %v975
  %977 = vmatmul.f32.gmra.mxu0 %v770
  %v978 = vpop.f32.mrf.mxu0
  %v979 = vadd.f32 %v583, %v978
  %980 = vmatmul.f32.gmra.mxu0 %v773
  %v981 = vpop.f32.mrf.mxu0
  %v982 = vadd.f32 %v583, %v981
  %983 = vmatmul.f32.gmra.mxu0 %v776
  %v984 = vpop.f32.mrf.mxu0
  %v985 = vadd.f32 %v583, %v984
  %986 = vdwg.mxu0
  %v987 = vmax.f32 %v796, 0.0
  %v988 = vmax.f32 %v799, 0.0
  %v989 = vmax.f32 %v802, 0.0
  %v990 = vmax.f32 %v805, 0.0
  %v991 = vmax.f32 %v808, 0.0
  %v992 = vmax.f32 %v811, 0.0
  %v993 = vmax.f32 %v814, 0.0
  %v994 = vmax.f32 %v817, 0.0
  %v995 = vmax.f32 %v820, 0.0
  %v996 = vmax.f32 %v823, 0.0
  %v997 = vmax.f32 %v826, 0.0
  %v998 = vmax.f32 %v829, 0.0
  %v999 = vmax.f32 %v832, 0.0
  %v1000 = vmax.f32 %v835, 0.0
  %v1001 = vmax.f32 %v838, 0.0
  %v1002 = vmax.f32 %v841, 0.0
  %v1003 = vmax.f32 %v844, 0.0
  %v1004 = vmax.f32 %v847, 0.0
  %v1005 = vmax.f32 %v850, 0.0
  %v1006 = vmax.f32 %v853, 0.0
  %v1007 = vmax.f32 %v856, 0.0
  %v1008 = vmax.f32 %v859, 0.0
  %v1009 = vmax.f32 %v862, 0.0
  %v1010 = vmax.f32 %v865, 0.0
  %v1011 = vmax.f32 %v868, 0.0
  %v1012 = vmax.f32 %v871, 0.0
  %v1013 = vmax.f32 %v874, 0.0
  %v1014 = vmax.f32 %v877, 0.0
  %v1015 = vmax.f32 %v880, 0.0
  %v1016 = vmax.f32 %v883, 0.0
  %v1017 = vmax.f32 %v886, 0.0
  %v1018 = vmax.f32 %v889, 0.0
  %v1019 = vmax.f32 %v892, 0.0
  %v1020 = vmax.f32 %v895, 0.0
  %v1021 = vmax.f32 %v898, 0.0
  %v1022 = vmax.f32 %v901, 0.0
  %v1023 = vmax.f32 %v904, 0.0
  %v1024 = vmax.f32 %v907, 0.0
  %v1025 = vmax.f32 %v910, 0.0
  %v1026 = vmax.f32 %v913, 0.0
  %v1027 = vmax.f32 %v916, 0.0
  %v1028 = vmax.f32 %v919, 0.0
  %v1029 = vmax.f32 %v922, 0.0
  %v1030 = vmax.f32 %v925, 0.0
  %v1031 = vmax.f32 %v928, 0.0
  %v1032 = vmax.f32 %v931, 0.0
  %v1033 = vmax.f32 %v934, 0.0
  %v1034 = vmax.f32 %v937, 0.0
  %v1035 = vmax.f32 %v940, 0.0
  %v1036 = vmax.f32 %v943, 0.0
  %v1037 = vmax.f32 %v946, 0.0
  %v1038 = vmax.f32 %v949, 0.0
  %v1039 = vmax.f32 %v952, 0.0
  %v1040 = vmax.f32 %v955, 0.0
  %v1041 = vmax.f32 %v958, 0.0
  %v1042 = vmax.f32 %v961, 0.0
  %v1043 = vmax.f32 %v964, 0.0
  %v1044 = vmax.f32 %v967, 0.0
  %v1045 = vmax.f32 %v970, 0.0
  %v1046 = vmax.f32 %v973, 0.0
  %v1047 = vmax.f32 %v976, 0.0
  %v1048 = vmax.f32 %v979, 0.0
  %v1049 = vmax.f32 %v982, 0.0
  %v1050 = vmax.f32 %v985, 0.0
  %v1051 = vld [vmem:[%s4] sm:$0xff]
  %v1052 = vld [vmem:[%s4 + $0x8] sm:$0xff]
  %v1053 = vld [vmem:[%s4 + $0x10] sm:$0xff]
  %v1054 = vld [vmem:[%s4 + $0x18] sm:$0xff]
  %v1055 = vld [vmem:[%s4 + $0x20] sm:$0xff]
  %v1056 = vld [vmem:[%s4 + $0x28] sm:$0xff]
  %v1057 = vld [vmem:[%s4 + $0x30] sm:$0xff]
  %v1058 = vld [vmem:[%s4 + $0x38] sm:$0xff]
  %v1059 = vld [vmem:[%s5] sm:$0x1]
  %v1061 = vperm.slane %v1059, 0
  %v1064 = vsel %vm585, %v987, 0
  %v1067 = vsel %vm585, %v988, 0
  %v1070 = vsel %vm585, %v989, 0
  %v1073 = vsel %vm585, %v990, 0
  %v1076 = vsel %vm585, %v991, 0
  %v1079 = vsel %vm585, %v992, 0
  %v1082 = vsel %vm585, %v993, 0
  %v1085 = vsel %vm585, %v994, 0
  %v1088 = vsel %vm585, %v995, 0
  %v1091 = vsel %vm585, %v996, 0
  %v1094 = vsel %vm585, %v997, 0
  %v1097 = vsel %vm585, %v998, 0
  %v1100 = vsel %vm585, %v999, 0
  %v1103 = vsel %vm585, %v1000, 0
  %v1106 = vsel %vm585, %v1001, 0
  %v1109 = vsel %vm585, %v1002, 0
  %v1112 = vsel %vm585, %v1003, 0
  %v1115 = vsel %vm585, %v1004, 0
  %v1118 = vsel %vm585, %v1005, 0
  %v1121 = vsel %vm585, %v1006, 0
  %v1124 = vsel %vm585, %v1007, 0
  %v1127 = vsel %vm585, %v1008, 0
  %v1130 = vsel %vm585, %v1009, 0
  %v1133 = vsel %vm585, %v1010, 0
  %v1136 = vsel %vm585, %v1011, 0
  %v1139 = vsel %vm585, %v1012, 0
  %v1142 = vsel %vm585, %v1013, 0
  %v1145 = vsel %vm585, %v1014, 0
  %v1148 = vsel %vm585, %v1015, 0
  %v1151 = vsel %vm585, %v1016, 0
  %v1154 = vsel %vm585, %v1017, 0
  %v1157 = vsel %vm585, %v1018, 0
  %v1160 = vsel %vm585, %v1019, 0
  %v1163 = vsel %vm585, %v1020, 0
  %v1166 = vsel %vm585, %v1021, 0
  %v1169 = vsel %vm585, %v1022, 0
  %v1172 = vsel %vm585, %v1023, 0
  %v1175 = vsel %vm585, %v1024, 0
  %v1178 = vsel %vm585, %v1025, 0
  %v1181 = vsel %vm585, %v1026, 0
  %v1184 = vsel %vm585, %v1027, 0
  %v1187 = vsel %vm585, %v1028, 0
  %v1190 = vsel %vm585, %v1029, 0
  %v1193 = vsel %vm585, %v1030, 0
  %v1196 = vsel %vm585, %v1031, 0
  %v1199 = vsel %vm585, %v1032, 0
  %v1202 = vsel %vm585, %v1033, 0
  %v1205 = vsel %vm585, %v1034, 0
  %v1208 = vsel %vm585, %v1035, 0
  %v1211 = vsel %vm585, %v1036, 0
  %v1214 = vsel %vm585, %v1037, 0
  %v1217 = vsel %vm585, %v1038, 0
  %v1220 = vsel %vm585, %v1039, 0
  %v1223 = vsel %vm585, %v1040, 0
  %v1226 = vsel %vm585, %v1041, 0
  %v1229 = vsel %vm585, %v1042, 0
  %v1232 = vsel %vm585, %v1043, 0
  %v1235 = vsel %vm585, %v1044, 0
  %v1238 = vsel %vm585, %v1045, 0
  %v1241 = vsel %vm585, %v1046, 0
  %v1244 = vsel %vm585, %v1047, 0
  %v1247 = vsel %vm585, %v1048, 0
  %v1250 = vsel %vm585, %v1049, 0
  %v1253 = vsel %vm585, %v1050, 0
  %1255 = vmatpush.msra.mxu0 0.0
  %1256 = vmatpush.msra.mxu0 0.0
  %1257 = vmatpush.msra.mxu0 0.0
  %1258 = vmatpush.msra.mxu0 0.0
  %1259 = vmatpush.msra.mxu0 0.0
  %1260 = vmatpush.msra.mxu0 0.0
  %1261 = vmatpush.msra.mxu0 0.0
  %1262 = vmatpush.msra.mxu0 0.0
  %1263 = vmatpush.msra.mxu0 %v1058
  %1264 = vmatpush.msra.mxu0 %v1057
  %1265 = vmatpush.msra.mxu0 %v1056
  %1266 = vmatpush.msra.mxu0 %v1055
  %1267 = vmatpush.msra.mxu0 %v1054
  %1268 = vmatpush.msra.mxu0 %v1053
  %1269 = vmatpush.msra.mxu0 %v1052
  %1270 = vmatpush.msra.mxu0 %v1051
  %1271 = vmatmul.f32.gmra.mxu0 %v1064
  %v1272 = vpop.f32.mrf.mxu0
  %v1273 = vadd.f32 %v1061, %v1272
  %1274 = vmatmul.f32.gmra.mxu0 %v1067
  %v1275 = vpop.f32.mrf.mxu0
  %v1276 = vadd.f32 %v1061, %v1275
  %1277 = vmatmul.f32.gmra.mxu0 %v1070
  %v1278 = vpop.f32.mrf.mxu0
  %v1279 = vadd.f32 %v1061, %v1278
  %1280 = vmatmul.f32.gmra.mxu0 %v1073
  %v1281 = vpop.f32.mrf.mxu0
  %v1282 = vadd.f32 %v1061, %v1281
  %1283 = vmatmul.f32.gmra.mxu0 %v1076
  %v1284 = vpop.f32.mrf.mxu0
  %v1285 = vadd.f32 %v1061, %v1284
  %1286 = vmatmul.f32.gmra.mxu0 %v1079
  %v1287 = vpop.f32.mrf.mxu0
  %v1288 = vadd.f32 %v1061, %v1287
  %1289 = vmatmul.f32.gmra.mxu0 %v1082
  %v1290 = vpop.f32.mrf.mxu0
  %v1291 = vadd.f32 %v1061, %v1290
  %1292 = vmatmul.f32.gmra.mxu0 %v1085
  %v1293 = vpop.f32.mrf.mxu0
  %v1294 = vadd.f32 %v1061, %v1293
  %1295 = vmatmul.f32.gmra.mxu0 %v1088
  %v1296 = vpop.f32.mrf.mxu0
  %v1297 = vadd.f32 %v1061, %v1296
  %1298 = vmatmul.f32.gmra.mxu0 %v1091
  %v1299 = vpop.f32.mrf.mxu0
  %v1300 = vadd.f32 %v1061, %v1299
  %1301 = vmatmul.f32.gmra.mxu0 %v1094
  %v1302 = vpop.f32.mrf.mxu0
  %v1303 = vadd.f32 %v1061, %v1302
  %1304 = vmatmul.f32.gmra.mxu0 %v1097
  %v1305 = vpop.f32.mrf.mxu0
  %v1306 = vadd.f32 %v1061, %v1305
  %1307 = vmatmul.f32.gmra.mxu0 %v1100
  %v1308 = vpop.f32.mrf.mxu0
  %v1309 = vadd.f32 %v1061, %v1308
  %1310 = vmatmul.f32.gmra.mxu0 %v1103
  %v1311 = vpop.f32.mrf.mxu0
  %v1312 = vadd.f32 %v1061, %v1311
  %1313 = vmatmul.f32.gmra.mxu0 %v1106
  %v1314 = vpop.f32.mrf.mxu0
  %v1315 = vadd.f32 %v1061, %v1314
  %1316 = vmatmul.f32.gmra.mxu0 %v1109
  %v1317 = vpop.f32.mrf.mxu0
  %v1318 = vadd.f32 %v1061, %v1317
  %1319 = vmatmul.f32.gmra.mxu0 %v1112
  %v1320 = vpop.f32.mrf.mxu0
  %v1321 = vadd.f32 %v1061, %v1320
  %1322 = vmatmul.f32.gmra.mxu0 %v1115
  %v1323 = vpop.f32.mrf.mxu0
  %v1324 = vadd.f32 %v1061, %v1323
  %1325 = vmatmul.f32.gmra.mxu0 %v1118
  %v1326 = vpop.f32.mrf.mxu0
  %v1327 = vadd.f32 %v1061, %v1326
  %1328 = vmatmul.f32.gmra.mxu0 %v1121
  %v1329 = vpop.f32.mrf.mxu0
  %v1330 = vadd.f32 %v1061, %v1329
  %1331 = vmatmul.f32.gmra.mxu0 %v1124
  %v1332 = vpop.f32.mrf.mxu0
  %v1333 = vadd.f32 %v1061, %v1332
  %1334 = vmatmul.f32.gmra.mxu0 %v1127
  %v1335 = vpop.f32.mrf.mxu0
  %v1336 = vadd.f32 %v1061, %v1335
  %1337 = vmatmul.f32.gmra.mxu0 %v1130
  %v1338 = vpop.f32.mrf.mxu0
  %v1339 = vadd.f32 %v1061, %v1338
  %1340 = vmatmul.f32.gmra.mxu0 %v1133
  %v1341 = vpop.f32.mrf.mxu0
  %v1342 = vadd.f32 %v1061, %v1341
  %1343 = vmatmul.f32.gmra.mxu0 %v1136
  %v1344 = vpop.f32.mrf.mxu0
  %v1345 = vadd.f32 %v1061, %v1344
  %1346 = vmatmul.f32.gmra.mxu0 %v1139
  %v1347 = vpop.f32.mrf.mxu0
  %v1348 = vadd.f32 %v1061, %v1347
  %1349 = vmatmul.f32.gmra.mxu0 %v1142
  %v1350 = vpop.f32.mrf.mxu0
  %v1351 = vadd.f32 %v1061, %v1350
  %1352 = vmatmul.f32.gmra.mxu0 %v1145
  %v1353 = vpop.f32.mrf.mxu0
  %v1354 = vadd.f32 %v1061, %v1353
  %1355 = vmatmul.f32.gmra.mxu0 %v1148
  %v1356 = vpop.f32.mrf.mxu0
  %v1357 = vadd.f32 %v1061, %v1356
  %1358 = vmatmul.f32.gmra.mxu0 %v1151
  %v1359 = vpop.f32.mrf.mxu0
  %v1360 = vadd.f32 %v1061, %v1359
  %1361 = vmatmul.f32.gmra.mxu0 %v1154
  %v1362 = vpop.f32.mrf.mxu0
  %v1363 = vadd.f32 %v1061, %v1362
  %1364 = vmatmul.f32.gmra.mxu0 %v1157
  %v1365 = vpop.f32.mrf.mxu0
  %v1366 = vadd.f32 %v1061, %v1365
  %1367 = vmatmul.f32.gmra.mxu0 %v1160
  %v1368 = vpop.f32.mrf.mxu0
  %v1369 = vadd.f32 %v1061, %v1368
  %1370 = vmatmul.f32.gmra.mxu0 %v1163
  %v1371 = vpop.f32.mrf.mxu0
  %v1372 = vadd.f32 %v1061, %v1371
  %1373 = vmatmul.f32.gmra.mxu0 %v1166
  %v1374 = vpop.f32.mrf.mxu0
  %v1375 = vadd.f32 %v1061, %v1374
  %1376 = vmatmul.f32.gmra.mxu0 %v1169
  %v1377 = vpop.f32.mrf.mxu0
  %v1378 = vadd.f32 %v1061, %v1377
  %1379 = vmatmul.f32.gmra.mxu0 %v1172
  %v1380 = vpop.f32.mrf.mxu0
  %v1381 = vadd.f32 %v1061, %v1380
  %1382 = vmatmul.f32.gmra.mxu0 %v1175
  %v1383 = vpop.f32.mrf.mxu0
  %v1384 = vadd.f32 %v1061, %v1383
  %1385 = vmatmul.f32.gmra.mxu0 %v1178
  %v1386 = vpop.f32.mrf.mxu0
  %v1387 = vadd.f32 %v1061, %v1386
  %1388 = vmatmul.f32.gmra.mxu0 %v1181
  %v1389 = vpop.f32.mrf.mxu0
  %v1390 = vadd.f32 %v1061, %v1389
  %1391 = vmatmul.f32.gmra.mxu0 %v1184
  %v1392 = vpop.f32.mrf.mxu0
  %v1393 = vadd.f32 %v1061, %v1392
  %1394 = vmatmul.f32.gmra.mxu0 %v1187
  %v1395 = vpop.f32.mrf.mxu0
  %v1396 = vadd.f32 %v1061, %v1395
  %1397 = vmatmul.f32.gmra.mxu0 %v1190
  %v1398 = vpop.f32.mrf.mxu0
  %v1399 = vadd.f32 %v1061, %v1398
  %1400 = vmatmul.f32.gmra.mxu0 %v1193
  %v1401 = vpop.f32.mrf.mxu0
  %v1402 = vadd.f32 %v1061, %v1401
  %1403 = vmatmul.f32.gmra.mxu0 %v1196
  %v1404 = vpop.f32.mrf.mxu0
  %v1405 = vadd.f32 %v1061, %v1404
  %1406 = vmatmul.f32.gmra.mxu0 %v1199
  %v1407 = vpop.f32.mrf.mxu0
  %v1408 = vadd.f32 %v1061, %v1407
  %1409 = vmatmul.f32.gmra.mxu0 %v1202
  %v1410 = vpop.f32.mrf.mxu0
  %v1411 = vadd.f32 %v1061, %v1410
  %1412 = vmatmul.f32.gmra.mxu0 %v1205
  %v1413 = vpop.f32.mrf.mxu0
  %v1414 = vadd.f32 %v1061, %v1413
  %1415 = vmatmul.f32.gmra.mxu0 %v1208
  %v1416 = vpop.f32.mrf.mxu0
  %v1417 = vadd.f32 %v1061, %v1416
  %1418 = vmatmul.f32.gmra.mxu0 %v1211
  %v1419 = vpop.f32.mrf.mxu0
  %v1420 = vadd.f32 %v1061, %v1419
  %1421 = vmatmul.f32.gmra.mxu0 %v1214
  %v1422 = vpop.f32.mrf.mxu0
  %v1423 = vadd.f32 %v1061, %v1422
  %1424 = vmatmul.f32.gmra.mxu0 %v1217
  %v1425 = vpop.f32.mrf.mxu0
  %v1426 = vadd.f32 %v1061, %v1425
  %1427 = vmatmul.f32.gmra.mxu0 %v1220
  %v1428 = vpop.f32.mrf.mxu0
  %v1429 = vadd.f32 %v1061, %v1428
  %1430 = vmatmul.f32.gmra.mxu0 %v1223
  %v1431 = vpop.f32.mrf.mxu0
  %v1432 = vadd.f32 %v1061, %v1431
  %1433 = vmatmul.f32.gmra.mxu0 %v1226
  %v1434 = vpop.f32.mrf.mxu0
  %v1435 = vadd.f32 %v1061, %v1434
  %1436 = vmatmul.f32.gmra.mxu0 %v1229
  %v1437 = vpop.f32.mrf.mxu0
  %v1438 = vadd.f32 %v1061, %v1437
  %1439 = vmatmul.f32.gmra.mxu0 %v1232
  %v1440 = vpop.f32.mrf.mxu0
  %v1441 = vadd.f32 %v1061, %v1440
  %1442 = vmatmul.f32.gmra.mxu0 %v1235
  %v1443 = vpop.f32.mrf.mxu0
  %v1444 = vadd.f32 %v1061, %v1443
  %1445 = vmatmul.f32.gmra.mxu0 %v1238
  %v1446 = vpop.f32.mrf.mxu0
  %v1447 = vadd.f32 %v1061, %v1446
  %1448 = vmatmul.f32.gmra.mxu0 %v1241
  %v1449 = vpop.f32.mrf.mxu0
  %v1450 = vadd.f32 %v1061, %v1449
  %1451 = vmatmul.f32.gmra.mxu0 %v1244
  %v1452 = vpop.f32.mrf.mxu0
  %v1453 = vadd.f32 %v1061, %v1452
  %1454 = vmatmul.f32.gmra.mxu0 %v1247
  %v1455 = vpop.f32.mrf.mxu0
  %v1456 = vadd.f32 %v1061, %v1455
  %1457 = vmatmul.f32.gmra.mxu0 %v1250
  %v1458 = vpop.f32.mrf.mxu0
  %v1459 = vadd.f32 %v1061, %v1458
  %1460 = vmatmul.f32.gmra.mxu0 %v1253
  %v1461 = vpop.f32.mrf.mxu0
  %v1462 = vadd.f32 %v1061, %v1461
  %1463 = vdwg.mxu0
  %v1464 = vadd.f32 %v1273, %v509
  %v1465 = vadd.f32 %v1276, %v510
  %v1466 = vadd.f32 %v1279, %v511
  %v1467 = vadd.f32 %v1282, %v512
  %v1468 = vadd.f32 %v1285, %v513
  %v1469 = vadd.f32 %v1288, %v514
  %v1470 = vadd.f32 %v1291, %v515
  %v1471 = vadd.f32 %v1294, %v516
  %v1472 = vadd.f32 %v1297, %v517
  %v1473 = vadd.f32 %v1300, %v518
  %v1474 = vadd.f32 %v1303, %v519
  %v1475 = vadd.f32 %v1306, %v520
  %v1476 = vadd.f32 %v1309, %v521
  %v1477 = vadd.f32 %v1312, %v522
  %v1478 = vadd.f32 %v1315, %v523
  %v1479 = vadd.f32 %v1318, %v524
  %v1480 = vadd.f32 %v1321, %v525
  %v1481 = vadd.f32 %v1324, %v526
  %v1482 = vadd.f32 %v1327, %v527
  %v1483 = vadd.f32 %v1330, %v528
  %v1484 = vadd.f32 %v1333, %v529
  %v1485 = vadd.f32 %v1336, %v530
  %v1486 = vadd.f32 %v1339, %v531
  %v1487 = vadd.f32 %v1342, %v532
  %v1488 = vadd.f32 %v1345, %v533
  %v1489 = vadd.f32 %v1348, %v534
  %v1490 = vadd.f32 %v1351, %v535
  %v1491 = vadd.f32 %v1354, %v536
  %v1492 = vadd.f32 %v1357, %v537
  %v1493 = vadd.f32 %v1360, %v538
  %v1494 = vadd.f32 %v1363, %v539
  %v1495 = vadd.f32 %v1366, %v540
  %v1496 = vadd.f32 %v1369, %v541
  %v1497 = vadd.f32 %v1372, %v542
  %v1498 = vadd.f32 %v1375, %v543
  %v1499 = vadd.f32 %v1378, %v544
  %v1500 = vadd.f32 %v1381, %v545
  %v1501 = vadd.f32 %v1384, %v546
  %v1502 = vadd.f32 %v1387, %v547
  %v1503 = vadd.f32 %v1390, %v548
  %v1504 = vadd.f32 %v1393, %v549
  %v1505 = vadd.f32 %v1396, %v550
  %v1506 = vadd.f32 %v1399, %v551
  %v1507 = vadd.f32 %v1402, %v552
  %v1508 = vadd.f32 %v1405, %v553
  %v1509 = vadd.f32 %v1408, %v554
  %v1510 = vadd.f32 %v1411, %v555
  %v1511 = vadd.f32 %v1414, %v556
  %v1512 = vadd.f32 %v1417, %v557
  %v1513 = vadd.f32 %v1420, %v558
  %v1514 = vadd.f32 %v1423, %v559
  %v1515 = vadd.f32 %v1426, %v560
  %v1516 = vadd.f32 %v1429, %v561
  %v1517 = vadd.f32 %v1432, %v562
  %v1518 = vadd.f32 %v1435, %v563
  %v1519 = vadd.f32 %v1438, %v564
  %v1520 = vadd.f32 %v1441, %v565
  %v1521 = vadd.f32 %v1444, %v566
  %v1522 = vadd.f32 %v1447, %v567
  %v1523 = vadd.f32 %v1450, %v568
  %v1524 = vadd.f32 %v1453, %v569
  %v1525 = vadd.f32 %v1456, %v570
  %v1526 = vadd.f32 %v1459, %v571
  %v1527 = vadd.f32 %v1462, %v572
  %v1528 = vmax.f32 %v1464, 0.0
  %v1529 = vmax.f32 %v1465, 0.0
  %v1530 = vmax.f32 %v1466, 0.0
  %v1531 = vmax.f32 %v1467, 0.0
  %v1532 = vmax.f32 %v1468, 0.0
  %v1533 = vmax.f32 %v1469, 0.0
  %v1534 = vmax.f32 %v1470, 0.0
  %v1535 = vmax.f32 %v1471, 0.0
  %v1536 = vmax.f32 %v1472, 0.0
  %v1537 = vmax.f32 %v1473, 0.0
  %v1538 = vmax.f32 %v1474, 0.0
  %v1539 = vmax.f32 %v1475, 0.0
  %v1540 = vmax.f32 %v1476, 0.0
  %v1541 = vmax.f32 %v1477, 0.0
  %v1542 = vmax.f32 %v1478, 0.0
  %v1543 = vmax.f32 %v1479, 0.0
  %v1544 = vmax.f32 %v1480, 0.0
  %v1545 = vmax.f32 %v1481, 0.0
  %v1546 = vmax.f32 %v1482, 0.0
  %v1547 = vmax.f32 %v1483, 0.0
  %v1548 = vmax.f32 %v1484, 0.0
  %v1549 = vmax.f32 %v1485, 0.0
  %v1550 = vmax.f32 %v1486, 0.0
  %v1551 = vmax.f32 %v1487, 0.0
  %v1552 = vmax.f32 %v1488, 0.0
  %v1553 = vmax.f32 %v1489, 0.0
  %v1554 = vmax.f32 %v1490, 0.0
  %v1555 = vmax.f32 %v1491, 0.0
  %v1556 = vmax.f32 %v1492, 0.0
  %v1557 = vmax.f32 %v1493, 0.0
  %v1558 = vmax.f32 %v1494, 0.0
  %v1559 = vmax.f32 %v1495, 0.0
  %v1560 = vmax.f32 %v1496, 0.0
  %v1561 = vmax.f32 %v1497, 0.0
  %v1562 = vmax.f32 %v1498, 0.0
  %v1563 = vmax.f32 %v1499, 0.0
  %v1564 = vmax.f32 %v1500, 0.0
  %v1565 = vmax.f32 %v1501, 0.0
  %v1566 = vmax.f32 %v1502, 0.0
  %v1567 = vmax.f32 %v1503, 0.0
  %v1568 = vmax.f32 %v1504, 0.0
  %v1569 = vmax.f32 %v1505, 0.0
  %v1570 = vmax.f32 %v1506, 0.0
  %v1571 = vmax.f32 %v1507, 0.0
  %v1572 = vmax.f32 %v1508, 0.0
  %v1573 = vmax.f32 %v1509, 0.0
  %v1574 = vmax.f32 %v1510, 0.0
  %v1575 = vmax.f32 %v1511, 0.0
  %v1576 = vmax.f32 %v1512, 0.0
  %v1577 = vmax.f32 %v1513, 0.0
  %v1578 = vmax.f32 %v1514, 0.0
  %v1579 = vmax.f32 %v1515, 0.0
  %v1580 = vmax.f32 %v1516, 0.0
  %v1581 = vmax.f32 %v1517, 0.0
  %v1582 = vmax.f32 %v1518, 0.0
  %v1583 = vmax.f32 %v1519, 0.0
  %v1584 = vmax.f32 %v1520, 0.0
  %v1585 = vmax.f32 %v1521, 0.0
  %v1586 = vmax.f32 %v1522, 0.0
  %v1587 = vmax.f32 %v1523, 0.0
  %v1588 = vmax.f32 %v1524, 0.0
  %v1589 = vmax.f32 %v1525, 0.0
  %v1590 = vmax.f32 %v1526, 0.0
  %v1591 = vmax.f32 %v1527, 0.0
  %v1592 = vsel %vm585, %v1528, -inf
  %v1593 = vrot.slane %v1592, 4
  %v1594 = vmax.f32 %v1592, %v1593
  %v1595 = vrot.slane %v1594, 2
  %v1596 = vmax.f32 %v1594, %v1595
  %v1597 = vrot.slane %v1596, 1
  %v1598 = vmax.f32 %v1596, %v1597
  %v1599 = vsel %vm585, %v1529, -inf
  %v1600 = vrot.slane %v1599, 4
  %v1601 = vmax.f32 %v1599, %v1600
  %v1602 = vrot.slane %v1601, 2
  %v1603 = vmax.f32 %v1601, %v1602
  %v1604 = vrot.slane %v1603, 1
  %v1605 = vmax.f32 %v1603, %v1604
  %v1606 = vsel %vm585, %v1530, -inf
  %v1607 = vrot.slane %v1606, 4
  %v1608 = vmax.f32 %v1606, %v1607
  %v1609 = vrot.slane %v1608, 2
  %v1610 = vmax.f32 %v1608, %v1609
  %v1611 = vrot.slane %v1610, 1
  %v1612 = vmax.f32 %v1610, %v1611
  %v1613 = vsel %vm585, %v1531, -inf
  %v1614 = vrot.slane %v1613, 4
  %v1615 = vmax.f32 %v1613, %v1614
  %v1616 = vrot.slane %v1615, 2
  %v1617 = vmax.f32 %v1615, %v1616
  %v1618 = vrot.slane %v1617, 1
  %v1619 = vmax.f32 %v1617, %v1618
  %v1620 = vsel %vm585, %v1532, -inf
  %v1621 = vrot.slane %v1620, 4
  %v1622 = vmax.f32 %v1620, %v1621
  %v1623 = vrot.slane %v1622, 2
  %v1624 = vmax.f32 %v1622, %v1623
  %v1625 = vrot.slane %v1624, 1
  %v1626 = vmax.f32 %v1624, %v1625
  %v1627 = vsel %vm585, %v1533, -inf
  %v1628 = vrot.slane %v1627, 4
  %v1629 = vmax.f32 %v1627, %v1628
  %v1630 = vrot.slane %v1629, 2
  %v1631 = vmax.f32 %v1629, %v1630
  %v1632 = vrot.slane %v1631, 1
  %v1633 = vmax.f32 %v1631, %v1632
  %v1634 = vsel %vm585, %v1534, -inf
  %v1635 = vrot.slane %v1634, 4
  %v1636 = vmax.f32 %v1634, %v1635
  %v1637 = vrot.slane %v1636, 2
  %v1638 = vmax.f32 %v1636, %v1637
  %v1639 = vrot.slane %v1638, 1
  %v1640 = vmax.f32 %v1638, %v1639
  %v1641 = vsel %vm585, %v1535, -inf
  %v1642 = vrot.slane %v1641, 4
  %v1643 = vmax.f32 %v1641, %v1642
  %v1644 = vrot.slane %v1643, 2
  %v1645 = vmax.f32 %v1643, %v1644
  %v1646 = vrot.slane %v1645, 1
  %v1647 = vmax.f32 %v1645, %v1646
  %v1648 = vsel %vm585, %v1536, -inf
  %v1649 = vrot.slane %v1648, 4
  %v1650 = vmax.f32 %v1648, %v1649
  %v1651 = vrot.slane %v1650, 2
  %v1652 = vmax.f32 %v1650, %v1651
  %v1653 = vrot.slane %v1652, 1
  %v1654 = vmax.f32 %v1652, %v1653
  %v1655 = vsel %vm585, %v1537, -inf
  %v1656 = vrot.slane %v1655, 4
  %v1657 = vmax.f32 %v1655, %v1656
  %v1658 = vrot.slane %v1657, 2
  %v1659 = vmax.f32 %v1657, %v1658
  %v1660 = vrot.slane %v1659, 1
  %v1661 = vmax.f32 %v1659, %v1660
  %v1662 = vsel %vm585, %v1538, -inf
  %v1663 = vrot.slane %v1662, 4
  %v1664 = vmax.f32 %v1662, %v1663
  %v1665 = vrot.slane %v1664, 2
  %v1666 = vmax.f32 %v1664, %v1665
  %v1667 = vrot.slane %v1666, 1
  %v1668 = vmax.f32 %v1666, %v1667
  %v1669 = vsel %vm585, %v1539, -inf
  %v1670 = vrot.slane %v1669, 4
  %v1671 = vmax.f32 %v1669, %v1670
  %v1672 = vrot.slane %v1671, 2
  %v1673 = vmax.f32 %v1671, %v1672
  %v1674 = vrot.slane %v1673, 1
  %v1675 = vmax.f32 %v1673, %v1674
  %v1676 = vsel %vm585, %v1540, -inf
  %v1677 = vrot.slane %v1676, 4
  %v1678 = vmax.f32 %v1676, %v1677
  %v1679 = vrot.slane %v1678, 2
  %v1680 = vmax.f32 %v1678, %v1679
  %v1681 = vrot.slane %v1680, 1
  %v1682 = vmax.f32 %v1680, %v1681
  %v1683 = vsel %vm585, %v1541, -inf
  %v1684 = vrot.slane %v1683, 4
  %v1685 = vmax.f32 %v1683, %v1684
  %v1686 = vrot.slane %v1685, 2
  %v1687 = vmax.f32 %v1685, %v1686
  %v1688 = vrot.slane %v1687, 1
  %v1689 = vmax.f32 %v1687, %v1688
  %v1690 = vsel %vm585, %v1542, -inf
  %v1691 = vrot.slane %v1690, 4
  %v1692 = vmax.f32 %v1690, %v1691
  %v1693 = vrot.slane %v1692, 2
  %v1694 = vmax.f32 %v1692, %v1693
  %v1695 = vrot.slane %v1694, 1
  %v1696 = vmax.f32 %v1694, %v1695
  %v1697 = vsel %vm585, %v1543, -inf
  %v1698 = vrot.slane %v1697, 4
  %v1699 = vmax.f32 %v1697, %v1698
  %v1700 = vrot.slane %v1699, 2
  %v1701 = vmax.f32 %v1699, %v1700
  %v1702 = vrot.slane %v1701, 1
  %v1703 = vmax.f32 %v1701, %v1702
  %v1704 = vsel %vm585, %v1544, -inf
  %v1705 = vrot.slane %v1704, 4
  %v1706 = vmax.f32 %v1704, %v1705
  %v1707 = vrot.slane %v1706, 2
  %v1708 = vmax.f32 %v1706, %v1707
  %v1709 = vrot.slane %v1708, 1
  %v1710 = vmax.f32 %v1708, %v1709
  %v1711 = vsel %vm585, %v1545, -inf
  %v1712 = vrot.slane %v1711, 4
  %v1713 = vmax.f32 %v1711, %v1712
  %v1714 = vrot.slane %v1713, 2
  %v1715 = vmax.f32 %v1713, %v1714
  %v1716 = vrot.slane %v1715, 1
  %v1717 = vmax.f32 %v1715, %v1716
  %v1718 = vsel %vm585, %v1546, -inf
  %v1719 = vrot.slane %v1718, 4
  %v1720 = vmax.f32 %v1718, %v1719
  %v1721 = vrot.slane %v1720, 2
  %v1722 = vmax.f32 %v1720, %v1721
  %v1723 = vrot.slane %v1722, 1
  %v1724 = vmax.f32 %v1722, %v1723
  %v1725 = vsel %vm585, %v1547, -inf
  %v1726 = vrot.slane %v1725, 4
  %v1727 = vmax.f32 %v1725, %v1726
  %v1728 = vrot.slane %v1727, 2
  %v1729 = vmax.f32 %v1727, %v1728
  %v1730 = vrot.slane %v1729, 1
  %v1731 = vmax.f32 %v1729, %v1730
  %v1732 = vsel %vm585, %v1548, -inf
  %v1733 = vrot.slane %v1732, 4
  %v1734 = vmax.f32 %v1732, %v1733
  %v1735 = vrot.slane %v1734, 2
  %v1736 = vmax.f32 %v1734, %v1735
  %v1737 = vrot.slane %v1736, 1
  %v1738 = vmax.f32 %v1736, %v1737
  %v1739 = vsel %vm585, %v1549, -inf
  %v1740 = vrot.slane %v1739, 4
  %v1741 = vmax.f32 %v1739, %v1740
  %v1742 = vrot.slane %v1741, 2
  %v1743 = vmax.f32 %v1741, %v1742
  %v1744 = vrot.slane %v1743, 1
  %v1745 = vmax.f32 %v1743, %v1744
  %v1746 = vsel %vm585, %v1550, -inf
  %v1747 = vrot.slane %v1746, 4
  %v1748 = vmax.f32 %v1746, %v1747
  %v1749 = vrot.slane %v1748, 2
  %v1750 = vmax.f32 %v1748, %v1749
  %v1751 = vrot.slane %v1750, 1
  %v1752 = vmax.f32 %v1750, %v1751
  %v1753 = vsel %vm585, %v1551, -inf
  %v1754 = vrot.slane %v1753, 4
  %v1755 = vmax.f32 %v1753, %v1754
  %v1756 = vrot.slane %v1755, 2
  %v1757 = vmax.f32 %v1755, %v1756
  %v1758 = vrot.slane %v1757, 1
  %v1759 = vmax.f32 %v1757, %v1758
  %v1760 = vsel %vm585, %v1552, -inf
  %v1761 = vrot.slane %v1760, 4
  %v1762 = vmax.f32 %v1760, %v1761
  %v1763 = vrot.slane %v1762, 2
  %v1764 = vmax.f32 %v1762, %v1763
  %v1765 = vrot.slane %v1764, 1
  %v1766 = vmax.f32 %v1764, %v1765
  %v1767 = vsel %vm585, %v1553, -inf
  %v1768 = vrot.slane %v1767, 4
  %v1769 = vmax.f32 %v1767, %v1768
  %v1770 = vrot.slane %v1769, 2
  %v1771 = vmax.f32 %v1769, %v1770
  %v1772 = vrot.slane %v1771, 1
  %v1773 = vmax.f32 %v1771, %v1772
  %v1774 = vsel %vm585, %v1554, -inf
  %v1775 = vrot.slane %v1774, 4
  %v1776 = vmax.f32 %v1774, %v1775
  %v1777 = vrot.slane %v1776, 2
  %v1778 = vmax.f32 %v1776, %v1777
  %v1779 = vrot.slane %v1778, 1
  %v1780 = vmax.f32 %v1778, %v1779
  %v1781 = vsel %vm585, %v1555, -inf
  %v1782 = vrot.slane %v1781, 4
  %v1783 = vmax.f32 %v1781, %v1782
  %v1784 = vrot.slane %v1783, 2
  %v1785 = vmax.f32 %v1783, %v1784
  %v1786 = vrot.slane %v1785, 1
  %v1787 = vmax.f32 %v1785, %v1786
  %v1788 = vsel %vm585, %v1556, -inf
  %v1789 = vrot.slane %v1788, 4
  %v1790 = vmax.f32 %v1788, %v1789
  %v1791 = vrot.slane %v1790, 2
  %v1792 = vmax.f32 %v1790, %v1791
  %v1793 = vrot.slane %v1792, 1
  %v1794 = vmax.f32 %v1792, %v1793
  %v1795 = vsel %vm585, %v1557, -inf
  %v1796 = vrot.slane %v1795, 4
  %v1797 = vmax.f32 %v1795, %v1796
  %v1798 = vrot.slane %v1797, 2
  %v1799 = vmax.f32 %v1797, %v1798
  %v1800 = vrot.slane %v1799, 1
  %v1801 = vmax.f32 %v1799, %v1800
  %v1802 = vsel %vm585, %v1558, -inf
  %v1803 = vrot.slane %v1802, 4
  %v1804 = vmax.f32 %v1802, %v1803
  %v1805 = vrot.slane %v1804, 2
  %v1806 = vmax.f32 %v1804, %v1805
  %v1807 = vrot.slane %v1806, 1
  %v1808 = vmax.f32 %v1806, %v1807
  %v1809 = vsel %vm585, %v1559, -inf
  %v1810 = vrot.slane %v1809, 4
  %v1811 = vmax.f32 %v1809, %v1810
  %v1812 = vrot.slane %v1811, 2
  %v1813 = vmax.f32 %v1811, %v1812
  %v1814 = vrot.slane %v1813, 1
  %v1815 = vmax.f32 %v1813, %v1814
  %v1816 = vsel %vm585, %v1560, -inf
  %v1817 = vrot.slane %v1816, 4
  %v1818 = vmax.f32 %v1816, %v1817
  %v1819 = vrot.slane %v1818, 2
  %v1820 = vmax.f32 %v1818, %v1819
  %v1821 = vrot.slane %v1820, 1
  %v1822 = vmax.f32 %v1820, %v1821
  %v1823 = vsel %vm585, %v1561, -inf
  %v1824 = vrot.slane %v1823, 4
  %v1825 = vmax.f32 %v1823, %v1824
  %v1826 = vrot.slane %v1825, 2
  %v1827 = vmax.f32 %v1825, %v1826
  %v1828 = vrot.slane %v1827, 1
  %v1829 = vmax.f32 %v1827, %v1828
  %v1830 = vsel %vm585, %v1562, -inf
  %v1831 = vrot.slane %v1830, 4
  %v1832 = vmax.f32 %v1830, %v1831
  %v1833 = vrot.slane %v1832, 2
  %v1834 = vmax.f32 %v1832, %v1833
  %v1835 = vrot.slane %v1834, 1
  %v1836 = vmax.f32 %v1834, %v1835
  %v1837 = vsel %vm585, %v1563, -inf
  %v1838 = vrot.slane %v1837, 4
  %v1839 = vmax.f32 %v1837, %v1838
  %v1840 = vrot.slane %v1839, 2
  %v1841 = vmax.f32 %v1839, %v1840
  %v1842 = vrot.slane %v1841, 1
  %v1843 = vmax.f32 %v1841, %v1842
  %v1844 = vsel %vm585, %v1564, -inf
  %v1845 = vrot.slane %v1844, 4
  %v1846 = vmax.f32 %v1844, %v1845
  %v1847 = vrot.slane %v1846, 2
  %v1848 = vmax.f32 %v1846, %v1847
  %v1849 = vrot.slane %v1848, 1
  %v1850 = vmax.f32 %v1848, %v1849
  %v1851 = vsel %vm585, %v1565, -inf
  %v1852 = vrot.slane %v1851, 4
  %v1853 = vmax.f32 %v1851, %v1852
  %v1854 = vrot.slane %v1853, 2
  %v1855 = vmax.f32 %v1853, %v1854
  %v1856 = vrot.slane %v1855, 1
  %v1857 = vmax.f32 %v1855, %v1856
  %v1858 = vsel %vm585, %v1566, -inf
  %v1859 = vrot.slane %v1858, 4
  %v1860 = vmax.f32 %v1858, %v1859
  %v1861 = vrot.slane %v1860, 2
  %v1862 = vmax.f32 %v1860, %v1861
  %v1863 = vrot.slane %v1862, 1
  %v1864 = vmax.f32 %v1862, %v1863
  %v1865 = vsel %vm585, %v1567, -inf
  %v1866 = vrot.slane %v1865, 4
  %v1867 = vmax.f32 %v1865, %v1866
  %v1868 = vrot.slane %v1867, 2
  %v1869 = vmax.f32 %v1867, %v1868
  %v1870 = vrot.slane %v1869, 1
  %v1871 = vmax.f32 %v1869, %v1870
  %v1872 = vsel %vm585, %v1568, -inf
  %v1873 = vrot.slane %v1872, 4
  %v1874 = vmax.f32 %v1872, %v1873
  %v1875 = vrot.slane %v1874, 2
  %v1876 = vmax.f32 %v1874, %v1875
  %v1877 = vrot.slane %v1876, 1
  %v1878 = vmax.f32 %v1876, %v1877
  %v1879 = vsel %vm585, %v1569, -inf
  %v1880 = vrot.slane %v1879, 4
  %v1881 = vmax.f32 %v1879, %v1880
  %v1882 = vrot.slane %v1881, 2
  %v1883 = vmax.f32 %v1881, %v1882
  %v1884 = vrot.slane %v1883, 1
  %v1885 = vmax.f32 %v1883, %v1884
  %v1886 = vsel %vm585, %v1570, -inf
  %v1887 = vrot.slane %v1886, 4
  %v1888 = vmax.f32 %v1886, %v1887
  %v1889 = vrot.slane %v1888, 2
  %v1890 = vmax.f32 %v1888, %v1889
  %v1891 = vrot.slane %v1890, 1
  %v1892 = vmax.f32 %v1890, %v1891
  %v1893 = vsel %vm585, %v1571, -inf
  %v1894 = vrot.slane %v1893, 4
  %v1895 = vmax.f32 %v1893, %v1894
  %v1896 = vrot.slane %v1895, 2
  %v1897 = vmax.f32 %v1895, %v1896
  %v1898 = vrot.slane %v1897, 1
  %v1899 = vmax.f32 %v1897, %v1898
  %v1900 = vsel %vm585, %v1572, -inf
  %v1901 = vrot.slane %v1900, 4
  %v1902 = vmax.f32 %v1900, %v1901
  %v1903 = vrot.slane %v1902, 2
  %v1904 = vmax.f32 %v1902, %v1903
  %v1905 = vrot.slane %v1904, 1
  %v1906 = vmax.f32 %v1904, %v1905
  %v1907 = vsel %vm585, %v1573, -inf
  %v1908 = vrot.slane %v1907, 4
  %v1909 = vmax.f32 %v1907, %v1908
  %v1910 = vrot.slane %v1909, 2
  %v1911 = vmax.f32 %v1909, %v1910
  %v1912 = vrot.slane %v1911, 1
  %v1913 = vmax.f32 %v1911, %v1912
  %v1914 = vsel %vm585, %v1574, -inf
  %v1915 = vrot.slane %v1914, 4
  %v1916 = vmax.f32 %v1914, %v1915
  %v1917 = vrot.slane %v1916, 2
  %v1918 = vmax.f32 %v1916, %v1917
  %v1919 = vrot.slane %v1918, 1
  %v1920 = vmax.f32 %v1918, %v1919
  %v1921 = vsel %vm585, %v1575, -inf
  %v1922 = vrot.slane %v1921, 4
  %v1923 = vmax.f32 %v1921, %v1922
  %v1924 = vrot.slane %v1923, 2
  %v1925 = vmax.f32 %v1923, %v1924
  %v1926 = vrot.slane %v1925, 1
  %v1927 = vmax.f32 %v1925, %v1926
  %v1928 = vsel %vm585, %v1576, -inf
  %v1929 = vrot.slane %v1928, 4
  %v1930 = vmax.f32 %v1928, %v1929
  %v1931 = vrot.slane %v1930, 2
  %v1932 = vmax.f32 %v1930, %v1931
  %v1933 = vrot.slane %v1932, 1
  %v1934 = vmax.f32 %v1932, %v1933
  %v1935 = vsel %vm585, %v1577, -inf
  %v1936 = vrot.slane %v1935, 4
  %v1937 = vmax.f32 %v1935, %v1936
  %v1938 = vrot.slane %v1937, 2
  %v1939 = vmax.f32 %v1937, %v1938
  %v1940 = vrot.slane %v1939, 1
  %v1941 = vmax.f32 %v1939, %v1940
  %v1942 = vsel %vm585, %v1578, -inf
  %v1943 = vrot.slane %v1942, 4
  %v1944 = vmax.f32 %v1942, %v1943
  %v1945 = vrot.slane %v1944, 2
  %v1946 = vmax.f32 %v1944, %v1945
  %v1947 = vrot.slane %v1946, 1
  %v1948 = vmax.f32 %v1946, %v1947
  %v1949 = vsel %vm585, %v1579, -inf
  %v1950 = vrot.slane %v1949, 4
  %v1951 = vmax.f32 %v1949, %v1950
  %v1952 = vrot.slane %v1951, 2
  %v1953 = vmax.f32 %v1951, %v1952
  %v1954 = vrot.slane %v1953, 1
  %v1955 = vmax.f32 %v1953, %v1954
  %v1956 = vsel %vm585, %v1580, -inf
  %v1957 = vrot.slane %v1956, 4
  %v1958 = vmax.f32 %v1956, %v1957
  %v1959 = vrot.slane %v1958, 2
  %v1960 = vmax.f32 %v1958, %v1959
  %v1961 = vrot.slane %v1960, 1
  %v1962 = vmax.f32 %v1960, %v1961
  %v1963 = vsel %vm585, %v1581, -inf
  %v1964 = vrot.slane %v1963, 4
  %v1965 = vmax.f32 %v1963, %v1964
  %v1966 = vrot.slane %v1965, 2
  %v1967 = vmax.f32 %v1965, %v1966
  %v1968 = vrot.slane %v1967, 1
  %v1969 = vmax.f32 %v1967, %v1968
  %v1970 = vsel %vm585, %v1582, -inf
  %v1971 = vrot.slane %v1970, 4
  %v1972 = vmax.f32 %v1970, %v1971
  %v1973 = vrot.slane %v1972, 2
  %v1974 = vmax.f32 %v1972, %v1973
  %v1975 = vrot.slane %v1974, 1
  %v1976 = vmax.f32 %v1974, %v1975
  %v1977 = vsel %vm585, %v1583, -inf
  %v1978 = vrot.slane %v1977, 4
  %v1979 = vmax.f32 %v1977, %v1978
  %v1980 = vrot.slane %v1979, 2
  %v1981 = vmax.f32 %v1979, %v1980
  %v1982 = vrot.slane %v1981, 1
  %v1983 = vmax.f32 %v1981, %v1982
  %v1984 = vsel %vm585, %v1584, -inf
  %v1985 = vrot.slane %v1984, 4
  %v1986 = vmax.f32 %v1984, %v1985
  %v1987 = vrot.slane %v1986, 2
  %v1988 = vmax.f32 %v1986, %v1987
  %v1989 = vrot.slane %v1988, 1
  %v1990 = vmax.f32 %v1988, %v1989
  %v1991 = vsel %vm585, %v1585, -inf
  %v1992 = vrot.slane %v1991, 4
  %v1993 = vmax.f32 %v1991, %v1992
  %v1994 = vrot.slane %v1993, 2
  %v1995 = vmax.f32 %v1993, %v1994
  %v1996 = vrot.slane %v1995, 1
  %v1997 = vmax.f32 %v1995, %v1996
  %v1998 = vsel %vm585, %v1586, -inf
  %v1999 = vrot.slane %v1998, 4
  %v2000 = vmax.f32 %v1998, %v1999
  %v2001 = vrot.slane %v2000, 2
  %v2002 = vmax.f32 %v2000, %v2001
  %v2003 = vrot.slane %v2002, 1
  %v2004 = vmax.f32 %v2002, %v2003
  %v2005 = vsel %vm585, %v1587, -inf
  %v2006 = vrot.slane %v2005, 4
  %v2007 = vmax.f32 %v2005, %v2006
  %v2008 = vrot.slane %v2007, 2
  %v2009 = vmax.f32 %v2007, %v2008
  %v2010 = vrot.slane %v2009, 1
  %v2011 = vmax.f32 %v2009, %v2010
  %v2012 = vsel %vm585, %v1588, -inf
  %v2013 = vrot.slane %v2012, 4
  %v2014 = vmax.f32 %v2012, %v2013
  %v2015 = vrot.slane %v2014, 2
  %v2016 = vmax.f32 %v2014, %v2015
  %v2017 = vrot.slane %v2016, 1
  %v2018 = vmax.f32 %v2016, %v2017
  %v2019 = vsel %vm585, %v1589, -inf
  %v2020 = vrot.slane %v2019, 4
  %v2021 = vmax.f32 %v2019, %v2020
  %v2022 = vrot.slane %v2021, 2
  %v2023 = vmax.f32 %v2021, %v2022
  %v2024 = vrot.slane %v2023, 1
  %v2025 = vmax.f32 %v2023, %v2024
  %v2026 = vsel %vm585, %v1590, -inf
  %v2027 = vrot.slane %v2026, 4
  %v2028 = vmax.f32 %v2026, %v2027
  %v2029 = vrot.slane %v2028, 2
  %v2030 = vmax.f32 %v2028, %v2029
  %v2031 = vrot.slane %v2030, 1
  %v2032 = vmax.f32 %v2030, %v2031
  %v2033 = vsel %vm585, %v1591, -inf
  %v2034 = vrot.slane %v2033, 4
  %v2035 = vmax.f32 %v2033, %v2034
  %v2036 = vrot.slane %v2035, 2
  %v2037 = vmax.f32 %v2035, %v2036
  %v2038 = vrot.slane %v2037, 1
  %v2039 = vmax.f32 %v2037, %v2038
  %vm2104 = vcmask 1041409
  %v2105 = vsel %vm2104, %v1605, %v1598
  %vm2106 = vcmask 1042434
  %v2107 = vsel %vm2106, %v1612, %v2105
  %vm2108 = vcmask 1043459
  %v2109 = vsel %vm2108, %v1619, %v2107
  %vm2110 = vcmask 1044484
  %v2111 = vsel %vm2110, %v1626, %v2109
  %vm2112 = vcmask 1045509
  %v2113 = vsel %vm2112, %v1633, %v2111
  %vm2114 = vcmask 1046534
  %v2115 = vsel %vm2114, %v1640, %v2113
  %vm2116 = vcmask 1047559
  %v2117 = vsel %vm2116, %v1647, %v2115
  %v2118 = vsel %vm2104, %v1661, %v1654
  %v2119 = vsel %vm2106, %v1668, %v2118
  %v2120 = vsel %vm2108, %v1675, %v2119
  %v2121 = vsel %vm2110, %v1682, %v2120
  %v2122 = vsel %vm2112, %v1689, %v2121
  %v2123 = vsel %vm2114, %v1696, %v2122
  %v2124 = vsel %vm2116, %v1703, %v2123
  %v2125 = vsel %vm2104, %v1717, %v1710
  %v2126 = vsel %vm2106, %v1724, %v2125
  %v2127 = vsel %vm2108, %v1731, %v2126
  %v2128 = vsel %vm2110, %v1738, %v2127
  %v2129 = vsel %vm2112, %v1745, %v2128
  %v2130 = vsel %vm2114, %v1752, %v2129
  %v2131 = vsel %vm2116, %v1759, %v2130
  %v2132 = vsel %vm2104, %v1773, %v1766
  %v2133 = vsel %vm2106, %v1780, %v2132
  %v2134 = vsel %vm2108, %v1787, %v2133
  %v2135 = vsel %vm2110, %v1794, %v2134
  %v2136 = vsel %vm2112, %v1801, %v2135
  %v2137 = vsel %vm2114, %v1808, %v2136
  %v2138 = vsel %vm2116, %v1815, %v2137
  %v2139 = vsel %vm2104, %v1829, %v1822
  %v2140 = vsel %vm2106, %v1836, %v2139
  %v2141 = vsel %vm2108, %v1843, %v2140
  %v2142 = vsel %vm2110, %v1850, %v2141
  %v2143 = vsel %vm2112, %v1857, %v2142
  %v2144 = vsel %vm2114, %v1864, %v2143
  %v2145 = vsel %vm2116, %v1871, %v2144
  %v2146 = vsel %vm2104, %v1885, %v1878
  %v2147 = vsel %vm2106, %v1892, %v2146
  %v2148 = vsel %vm2108, %v1899, %v2147
  %v2149 = vsel %vm2110, %v1906, %v2148
  %v2150 = vsel %vm2112, %v1913, %v2149
  %v2151 = vsel %vm2114, %v1920, %v2150
  %v2152 = vsel %vm2116, %v1927, %v2151
  %v2153 = vsel %vm2104, %v1941, %v1934
  %v2154 = vsel %vm2106, %v1948, %v2153
  %v2155 = vsel %vm2108, %v1955, %v2154
  %v2156 = vsel %vm2110, %v1962, %v2155
  %v2157 = vsel %vm2112, %v1969, %v2156
  %v2158 = vsel %vm2114, %v1976, %v2157
  %v2159 = vsel %vm2116, %v1983, %v2158
  %v2160 = vsel %vm2104, %v1997, %v1990
  %v2161 = vsel %vm2106, %v2004, %v2160
  %v2162 = vsel %vm2108, %v2011, %v2161
  %v2163 = vsel %vm2110, %v2018, %v2162
  %v2164 = vsel %vm2112, %v2025, %v2163
  %v2165 = vsel %vm2114, %v2032, %v2164
  %v2166 = vsel %vm2116, %v2039, %v2165
  %2175 = vst.msk [vmem:[%s7] sm:$0xff] %vm585, %v2117
  %2176 = vst.msk [vmem:[%s7 + $0x8] sm:$0xff] %vm585, %v2124
  %2177 = vst.msk [vmem:[%s7 + $0x10] sm:$0xff] %vm585, %v2131
  %2178 = vst.msk [vmem:[%s7 + $0x18] sm:$0xff] %vm585, %v2138
  %2179 = vst.msk [vmem:[%s7 + $0x20] sm:$0xff] %vm585, %v2145
  %2180 = vst.msk [vmem:[%s7 + $0x28] sm:$0xff] %vm585, %v2152
  %2181 = vst.msk [vmem:[%s7 + $0x30] sm:$0xff] %vm585, %v2159
  %2182 = vst.msk [vmem:[%s7 + $0x38] sm:$0xff] %vm585, %v2166
  // Predicated region
  $region30: #{model_forward.10} parent=0 // pred_check
    _
  $region31: #{model_forward.10} parent=0 // pred_check_branch
    %2184 = sbr.rel (0) target = $region33
  $region32: #{model_forward.10} parent=0 // pred_region
    _
  $region33: #{model_forward.10} parent=0 // pred_fallthru
    _
  // Predicated region
  $region34: #{model_forward.10} parent=0 // pred_check
    _
  $region35: #{model_forward.10} parent=0 // pred_check_branch
    %2186 = sbr.rel (0) target = $region37
  $region36: #{model_forward.10} parent=0 // pred_region
    _
  $region37: #{model_forward.10} parent=0 // pred_fallthru
    _

// kernel: model_forward.14
$region0: #{model_forward.14}
  #allocation0 [shape = 'u32[]', space=smem, size = 0x4, offset = 0x4, fixed_abs, tag = 'smem constant byte address 0x4 - core index']
  #allocation1 [shape = 'u32[72,128]{1,0:T(1,128)}', space=vmem, size = 0x9000, scoped, tag = 'internal scratch']
  %s0 = inlined_call_operand.vmem [shape: f32[128,128], index: 0, kind: input, shape index: {}]
  %s1 = inlined_call_operand.vmem [shape: f32[1,128], index: 1, kind: input, shape index: {}]
  %s2 = inlined_call_operand.vmem [shape: f32[128,128], index: 2, kind: input, shape index: {}]
  %s3 = inlined_call_operand.vmem [shape: f32[1,128], index: 3, kind: input, shape index: {}]
  %s4 = inlined_call_operand.vmem [shape: f32[32,128], index: 4, kind: input, shape index: {}]
  %s5 = inlined_call_operand.vmem [shape: f32[32,128], index: 5, kind: output, shape index: {}]
  %s6 = sld [smem:[#allocation0]]
  $region30: #{model_forward.14} parent=0
    _
  %s8 = ssub.s32 1, %s6
  %s9 = scalar_select 0, %s8, %s6
  // Predicated region
  $region2: #{model_forward.14} parent=0 // pred_check
    _
  $region3: #{model_forward.14} parent=0 // pred_check_branch
    %11 = sbr.rel (0) target = $region5
  $region4: #{model_forward.14} parent=0 // pred_region
    _
  $region5: #{model_forward.14} parent=0 // pred_fallthru
    _
  // Predicated region
  $region6: #{model_forward.14} parent=0 // pred_check
    _
  $region7: #{model_forward.14} parent=0 // pred_check_branch
    %13 = sbr.rel (0) target = $region9
  $region8: #{model_forward.14} parent=0 // pred_region
    _
  $region9: #{model_forward.14} parent=0 // pred_fallthru
    _
  // Predicated region
  $region10: #{model_forward.14} parent=0 // pred_check
    _
  $region11: #{model_forward.14} parent=0 // pred_check_branch
    %15 = sbr.rel (0) target = $region13
  $region12: #{model_forward.14} parent=0 // pred_region
    _
  $region13: #{model_forward.14} parent=0 // pred_fallthru
    _
  // Predicated region
  $region14: #{model_forward.14} parent=0 // pred_check
    _
  $region15: #{model_forward.14} parent=0 // pred_check_branch
    %17 = sbr.rel (0) target = $region17
  $region16: #{model_forward.14} parent=0 // pred_region
    _
  $region17: #{model_forward.14} parent=0 // pred_fallthru
    _
  // Predicated region
  $region18: #{model_forward.14} parent=0 // pred_check
    _
  $region19: #{model_forward.14} parent=0 // pred_check_branch
    %19 = sbr.rel (0) target = $region21
  $region20: #{model_forward.14} parent=0 // pred_region
    _
  $region21: #{model_forward.14} parent=0 // pred_fallthru
    _
  %v20 = vld [vmem:[%s4] sm:$0xff]
  %v21 = vld [vmem:[%s4 + $0x8] sm:$0xff]
  %v22 = vld [vmem:[%s4 + $0x10] sm:$0xff]
  %v23 = vld [vmem:[%s4 + $0x18] sm:$0xff]
  %v24 = vld [vmem:[%s0] sm:$0xff]
  %v25 = vld [vmem:[%s0 + $0x8] sm:$0xff]
  %v26 = vld [vmem:[%s0 + $0x10] sm:$0xff]
  %v27 = vld [vmem:[%s0 + $0x18] sm:$0xff]
  %v28 = vld [vmem:[%s0 + $0x20] sm:$0xff]
  %v29 = vld [vmem:[%s0 + $0x28] sm:$0xff]
  %v30 = vld [vmem:[%s0 + $0x30] sm:$0xff]
  %v31 = vld [vmem:[%s0 + $0x38] sm:$0xff]
  %v32 = vld [vmem:[%s0 + $0x40] sm:$0xff]
  %v33 = vld [vmem:[%s0 + $0x48] sm:$0xff]
  %v34 = vld [vmem:[%s0 + $0x50] sm:$0xff]
  %v35 = vld [vmem:[%s0 + $0x58] sm:$0xff]
  %v36 = vld [vmem:[%s0 + $0x60] sm:$0xff]
  %v37 = vld [vmem:[%s0 + $0x68] sm:$0xff]
  %v38 = vld [vmem:[%s0 + $0x70] sm:$0xff]
  %v39 = vld [vmem:[%s0 + $0x78] sm:$0xff]
  %v40 = vld [vmem:[%s1] sm:$0x1]
  %v42 = vperm.slane %v40, 0
  %44 = vmatpush.msra.mxu0 %v39
  %45 = vmatpush.msra.mxu0 %v38
  %46 = vmatpush.msra.mxu0 %v37
  %47 = vmatpush.msra.mxu0 %v36
  %48 = vmatpush.msra.mxu0 %v35
  %49 = vmatpush.msra.mxu0 %v34
  %50 = vmatpush.msra.mxu0 %v33
  %51 = vmatpush.msra.mxu0 %v32
  %52 = vmatpush.msra.mxu0 %v31
  %53 = vmatpush.msra.mxu0 %v30
  %54 = vmatpush.msra.mxu0 %v29
  %55 = vmatpush.msra.mxu0 %v28
  %56 = vmatpush.msra.mxu0 %v27
  %57 = vmatpush.msra.mxu0 %v26
  %58 = vmatpush.msra.mxu0 %v25
  %59 = vmatpush.msra.mxu0 %v24
  %60 = vmatmul.f32.gmra.mxu0 %v20
  %v61 = vpop.f32.mrf.mxu0
  %v62 = vadd.f32 %v42, %v61
  %63 = vmatmul.f32.gmra.mxu0 %v21
  %v64 = vpop.f32.mrf.mxu0
  %v65 = vadd.f32 %v42, %v64
  %66 = vmatmul.f32.gmra.mxu0 %v22
  %v67 = vpop.f32.mrf.mxu0
  %v68 = vadd.f32 %v42, %v67
  %69 = vmatmul.f32.gmra.mxu0 %v23
  %v70 = vpop.f32.mrf.mxu0
  %v71 = vadd.f32 %v42, %v70
  %72 = vdwg.mxu0
  %v73 = vmax.f32 %v62, 0.0
  %v74 = vmax.f32 %v65, 0.0
  %v75 = vmax.f32 %v68, 0.0
  %v76 = vmax.f32 %v71, 0.0
  %v77 = vld [vmem:[%s2] sm:$0xff]
  %v78 = vld [vmem:[%s2 + $0x8] sm:$0xff]
  %v79 = vld [vmem:[%s2 + $0x10] sm:$0xff]
  %v80 = vld [vmem:[%s2 + $0x18] sm:$0xff]
  %v81 = vld [vmem:[%s2 + $0x20] sm:$0xff]
  %v82 = vld [vmem:[%s2 + $0x28] sm:$0xff]
  %v83 = vld [vmem:[%s2 + $0x30] sm:$0xff]
  %v84 = vld [vmem:[%s2 + $0x38] sm:$0xff]
  %v85 = vld [vmem:[%s2 + $0x40] sm:$0xff]
  %v86 = vld [vmem:[%s2 + $0x48] sm:$0xff]
  %v87 = vld [vmem:[%s2 + $0x50] sm:$0xff]
  %v88 = vld [vmem:[%s2 + $0x58] sm:$0xff]
  %v89 = vld [vmem:[%s2 + $0x60] sm:$0xff]
  %v90 = vld [vmem:[%s2 + $0x68] sm:$0xff]
  %v91 = vld [vmem:[%s2 + $0x70] sm:$0xff]
  %v92 = vld [vmem:[%s2 + $0x78] sm:$0xff]
  %v93 = vld [vmem:[%s3] sm:$0x1]
  %v95 = vperm.slane %v93, 0
  %97 = vmatpush.msra.mxu0 %v92
  %98 = vmatpush.msra.mxu0 %v91
  %99 = vmatpush.msra.mxu0 %v90
  %100 = vmatpush.msra.mxu0 %v89
  %101 = vmatpush.msra.mxu0 %v88
  %102 = vmatpush.msra.mxu0 %v87
  %103 = vmatpush.msra.mxu0 %v86
  %104 = vmatpush.msra.mxu0 %v85
  %105 = vmatpush.msra.mxu0 %v84
  %106 = vmatpush.msra.mxu0 %v83
  %107 = vmatpush.msra.mxu0 %v82
  %108 = vmatpush.msra.mxu0 %v81
  %109 = vmatpush.msra.mxu0 %v80
  %110 = vmatpush.msra.mxu0 %v79
  %111 = vmatpush.msra.mxu0 %v78
  %112 = vmatpush.msra.mxu0 %v77
  %113 = vmatmul.f32.gmra.mxu0 %v73
  %v114 = vpop.f32.mrf.mxu0
  %v115 = vadd.f32 %v95, %v114
  %116 = vmatmul.f32.gmra.mxu0 %v74
  %v117 = vpop.f32.mrf.mxu0
  %v118 = vadd.f32 %v95, %v117
  %119 = vmatmul.f32.gmra.mxu0 %v75
  %v120 = vpop.f32.mrf.mxu0
  %v121 = vadd.f32 %v95, %v120
  %122 = vmatmul.f32.gmra.mxu0 %v76
  %v123 = vpop.f32.mrf.mxu0
  %v124 = vadd.f32 %v95, %v123
  %125 = vdwg.mxu0
  %v126 = vadd.f32 %v115, %v20
  %v127 = vadd.f32 %v118, %v21
  %v128 = vadd.f32 %v121, %v22
  %v129 = vadd.f32 %v124, %v23
  %v130 = vmax.f32 %v126, 0.0
  %v131 = vmax.f32 %v127, 0.0
  %v132 = vmax.f32 %v128, 0.0
  %v133 = vmax.f32 %v129, 0.0
  %134 = vst [vmem:[%s5] sm:$0xff] %v130
  %135 = vst [vmem:[%s5 + $0x8] sm:$0xff] %v131
  %136 = vst [vmem:[%s5 + $0x10] sm:$0xff] %v132
  %137 = vst [vmem:[%s5 + $0x18] sm:$0xff] %v133
  // Predicated region
  $region22: #{model_forward.14} parent=0 // pred_check
    _
  $region23: #{model_forward.14} parent=0 // pred_check_branch
    %139 = sbr.rel (0) target = $region25
  $region24: #{model_forward.14} parent=0 // pred_region
    _
  $region25: #{model_forward.14} parent=0 // pred_fallthru
    _
  // Predicated region
  $region26: #{model_forward.14} parent=0 // pred_check
    _
  $region27: #{model_forward.14} parent=0 // pred_check_branch
    %141 = sbr.rel (0) target = $region29
  $region28: #{model_forward.14} parent=0 // pred_region
    _
  $region29: #{model_forward.14} parent=0 // pred_fallthru
    _

// kernel: model_forward.13
$region0: #{model_forward.13}
  #allocation0 [shape = 'u32[]', space=smem, size = 0x4, offset = 0x4, fixed_abs, tag = 'smem constant byte address 0x4 - core index']
  #allocation1 [shape = 'u32[72,128]{1,0:T(1,128)}', space=vmem, size = 0x9000, scoped, tag = 'internal scratch']
  %s0 = inlined_call_operand.vmem [shape: f32[131,128], index: 0, kind: input, shape index: {}]
  %s1 = inlined_call_operand.vmem [shape: f32[1,128], index: 1, kind: input, shape index: {}]
  %s2 = inlined_call_operand.vmem [shape: f32[128,128], index: 2, kind: input, shape index: {}]
  %s3 = inlined_call_operand.vmem [shape: f32[1,128], index: 3, kind: input, shape index: {}]
  %s4 = inlined_call_operand.vmem [shape: f32[128,128], index: 4, kind: input, shape index: {}]
  %s5 = inlined_call_operand.vmem [shape: f32[1,128], index: 5, kind: input, shape index: {}]
  %s6 = inlined_call_operand.vmem [shape: f32[256,131], index: 6, kind: input, shape index: {}]
  %s7 = inlined_call_operand.vmem [shape: f32[32,128], index: 7, kind: output, shape index: {}]
  %s8 = sld [smem:[#allocation0]]
  $region38: #{model_forward.13} parent=0
    _
  %s10 = ssub.s32 1, %s8
  %s11 = scalar_select 0, %s10, %s8
  // Predicated region
  $region2: #{model_forward.13} parent=0 // pred_check
    _
  $region3: #{model_forward.13} parent=0 // pred_check_branch
    %13 = sbr.rel (0) target = $region5
  $region4: #{model_forward.13} parent=0 // pred_region
    _
  $region5: #{model_forward.13} parent=0 // pred_fallthru
    _
  // Predicated region
  $region6: #{model_forward.13} parent=0 // pred_check
    _
  $region7: #{model_forward.13} parent=0 // pred_check_branch
    %15 = sbr.rel (0) target = $region9
  $region8: #{model_forward.13} parent=0 // pred_region
    _
  $region9: #{model_forward.13} parent=0 // pred_fallthru
    _
  // Predicated region
  $region10: #{model_forward.13} parent=0 // pred_check
    _
  $region11: #{model_forward.13} parent=0 // pred_check_branch
    %17 = sbr.rel (0) target = $region13
  $region12: #{model_forward.13} parent=0 // pred_region
    _
  $region13: #{model_forward.13} parent=0 // pred_fallthru
    _
  // Predicated region
  $region14: #{model_forward.13} parent=0 // pred_check
    _
  $region15: #{model_forward.13} parent=0 // pred_check_branch
    %19 = sbr.rel (0) target = $region17
  $region16: #{model_forward.13} parent=0 // pred_region
    _
  $region17: #{model_forward.13} parent=0 // pred_fallthru
    _
  // Predicated region
  $region18: #{model_forward.13} parent=0 // pred_check
    _
  $region19: #{model_forward.13} parent=0 // pred_check_branch
    %21 = sbr.rel (0) target = $region21
  $region20: #{model_forward.13} parent=0 // pred_region
    _
  $region21: #{model_forward.13} parent=0 // pred_fallthru
    _
  // Predicated region
  $region22: #{model_forward.13} parent=0 // pred_check
    _
  $region23: #{model_forward.13} parent=0 // pred_check_branch
    %23 = sbr.rel (0) target = $region25
  $region24: #{model_forward.13} parent=0 // pred_region
    _
  $region25: #{model_forward.13} parent=0 // pred_fallthru
    _
  // Predicated region
  $region26: #{model_forward.13} parent=0 // pred_check
    _
  $region27: #{model_forward.13} parent=0 // pred_check_branch
    %25 = sbr.rel (0) target = $region29
  $region28: #{model_forward.13} parent=0 // pred_region
    _
  $region29: #{model_forward.13} parent=0 // pred_fallthru
    _
  %v26 = vld [vmem:[%s6] sm:$0xff]
  %v27 = vld [vmem:[%s6 + $0x8] sm:$0xff]
  %v28 = vld [vmem:[%s6 + $0x10] sm:$0xff]
  %v29 = vld [vmem:[%s6 + $0x18] sm:$0xff]
  %v30 = vld [vmem:[%s6 + $0x20] sm:$0xff]
  %v31 = vld [vmem:[%s6 + $0x28] sm:$0xff]
  %v32 = vld [vmem:[%s6 + $0x30] sm:$0xff]
  %v33 = vld [vmem:[%s6 + $0x38] sm:$0xff]
  %v34 = vld [vmem:[%s6 + $0x40] sm:$0xff]
  %v35 = vld [vmem:[%s6 + $0x48] sm:$0xff]
  %v36 = vld [vmem:[%s6 + $0x50] sm:$0xff]
  %v37 = vld [vmem:[%s6 + $0x58] sm:$0xff]
  %v38 = vld [vmem:[%s6 + $0x60] sm:$0xff]
  %v39 = vld [vmem:[%s6 + $0x68] sm:$0xff]
  %v40 = vld [vmem:[%s6 + $0x70] sm:$0xff]
  %v41 = vld [vmem:[%s6 + $0x78] sm:$0xff]
  %v42 = vld [vmem:[%s6 + $0x80] sm:$0xff]
  %v43 = vld [vmem:[%s6 + $0x88] sm:$0xff]
  %v44 = vld [vmem:[%s6 + $0x90] sm:$0xff]
  %v45 = vld [vmem:[%s6 + $0x98] sm:$0xff]
  %v46 = vld [vmem:[%s6 + $0xa0] sm:$0xff]
  %v47 = vld [vmem:[%s6 + $0xa8] sm:$0xff]
  %v48 = vld [vmem:[%s6 + $0xb0] sm:$0xff]
  %v49 = vld [vmem:[%s6 + $0xb8] sm:$0xff]
  %v50 = vld [vmem:[%s6 + $0xc0] sm:$0xff]
  %v51 = vld [vmem:[%s6 + $0xc8] sm:$0xff]
  %v52 = vld [vmem:[%s6 + $0xd0] sm:$0xff]
  %v53 = vld [vmem:[%s6 + $0xd8] sm:$0xff]
  %v54 = vld [vmem:[%s6 + $0xe0] sm:$0xff]
  %v55 = vld [vmem:[%s6 + $0xe8] sm:$0xff]
  %v56 = vld [vmem:[%s6 + $0xf0] sm:$0xff]
  %v57 = vld [vmem:[%s6 + $0xf8] sm:$0xff]
  %v58 = vld [vmem:[%s6 + $0x100] sm:$0xff]
  %v59 = vld [vmem:[%s6 + $0x108] sm:$0xff]
  %v60 = vld [vmem:[%s6 + $0x110] sm:$0xff]
  %v61 = vld [vmem:[%s6 + $0x118] sm:$0xff]
  %v62 = vld [vmem:[%s6 + $0x120] sm:$0xff]
  %v63 = vld [vmem:[%s6 + $0x128] sm:$0xff]
  %v64 = vld [vmem:[%s6 + $0x130] sm:$0xff]
  %v65 = vld [vmem:[%s6 + $0x138] sm:$0xff]
  %v66 = vld [vmem:[%s6 + $0x140] sm:$0xff]
  %v67 = vld [vmem:[%s6 + $0x148] sm:$0xff]
  %v68 = vld [vmem:[%s6 + $0x150] sm:$0xff]
  %v69 = vld [vmem:[%s6 + $0x158] sm:$0xff]
  %v70 = vld [vmem:[%s6 + $0x160] sm:$0xff]
  %v71 = vld [vmem:[%s6 + $0x168] sm:$0xff]
  %v72 = vld [vmem:[%s6 + $0x170] sm:$0xff]
  %v73 = vld [vmem:[%s6 + $0x178] sm:$0xff]
  %v74 = vld [vmem:[%s6 + $0x180] sm:$0xff]
  %v75 = vld [vmem:[%s6 + $0x188] sm:$0xff]
  %v76 = vld [vmem:[%s6 + $0x190] sm:$0xff]
  %v77 = vld [vmem:[%s6 + $0x198] sm:$0xff]
  %v78 = vld [vmem:[%s6 + $0x1a0] sm:$0xff]
  %v79 = vld [vmem:[%s6 + $0x1a8] sm:$0xff]
  %v80 = vld [vmem:[%s6 + $0x1b0] sm:$0xff]
  %v81 = vld [vmem:[%s6 + $0x1b8] sm:$0xff]
  %v82 = vld [vmem:[%s6 + $0x1c0] sm:$0xff]
  %v83 = vld [vmem:[%s6 + $0x1c8] sm:$0xff]
  %v84 = vld [vmem:[%s6 + $0x1d0] sm:$0xff]
  %v85 = vld [vmem:[%s6 + $0x1d8] sm:$0xff]
  %v86 = vld [vmem:[%s6 + $0x1e0] sm:$0xff]
  %v87 = vld [vmem:[%s6 + $0x1e8] sm:$0xff]
  %v88 = vld [vmem:[%s6 + $0x1f0] sm:$0xff]
  %v89 = vld [vmem:[%s6 + $0x1f8] sm:$0xff]
  %v90 = vld [vmem:[%s0] sm:$0xff]
  %v91 = vld [vmem:[%s0 + $0x8] sm:$0xff]
  %v92 = vld [vmem:[%s0 + $0x10] sm:$0xff]
  %v93 = vld [vmem:[%s0 + $0x18] sm:$0xff]
  %v94 = vld [vmem:[%s0 + $0x20] sm:$0xff]
  %v95 = vld [vmem:[%s0 + $0x28] sm:$0xff]
  %v96 = vld [vmem:[%s0 + $0x30] sm:$0xff]
  %v97 = vld [vmem:[%s0 + $0x38] sm:$0xff]
  %v98 = vld [vmem:[%s0 + $0x40] sm:$0xff]
  %v99 = vld [vmem:[%s0 + $0x48] sm:$0xff]
  %v100 = vld [vmem:[%s0 + $0x50] sm:$0xff]
  %v101 = vld [vmem:[%s0 + $0x58] sm:$0xff]
  %v102 = vld [vmem:[%s0 + $0x60] sm:$0xff]
  %v103 = vld [vmem:[%s0 + $0x68] sm:$0xff]
  %v104 = vld [vmem:[%s0 + $0x70] sm:$0xff]
  %v105 = vld [vmem:[%s0 + $0x78] sm:$0xff]
  %v106 = vld [vmem:[%s0 + $0x80] sm:$0x7]
  %v107 = vld [vmem:[%s1] sm:$0x1]
  %v109 = vperm.slane %v107, 0
  %vm111 = vcmask 23552
  %v113 = vsel %vm111, %v27, 0
  %v116 = vsel %vm111, %v29, 0
  %v119 = vsel %vm111, %v31, 0
  %v122 = vsel %vm111, %v33, 0
  %v125 = vsel %vm111, %v35, 0
  %v128 = vsel %vm111, %v37, 0
  %v131 = vsel %vm111, %v39, 0
  %v134 = vsel %vm111, %v41, 0
  %v137 = vsel %vm111, %v43, 0
  %v140 = vsel %vm111, %v45, 0
  %v143 = vsel %vm111, %v47, 0
  %v146 = vsel %vm111, %v49, 0
  %v149 = vsel %vm111, %v51, 0
  %v152 = vsel %vm111, %v53, 0
  %v155 = vsel %vm111, %v55, 0
  %v158 = vsel %vm111, %v57, 0
  %v161 = vsel %vm111, %v59, 0
  %v164 = vsel %vm111, %v61, 0
  %v167 = vsel %vm111, %v63, 0
  %v170 = vsel %vm111, %v65, 0
  %v173 = vsel %vm111, %v67, 0
  %v176 = vsel %vm111, %v69, 0
  %v179 = vsel %vm111, %v71, 0
  %v182 = vsel %vm111, %v73, 0
  %v185 = vsel %vm111, %v75, 0
  %v188 = vsel %vm111, %v77, 0
  %v191 = vsel %vm111, %v79, 0
  %v194 = vsel %vm111, %v81, 0
  %v197 = vsel %vm111, %v83, 0
  %v200 = vsel %vm111, %v85, 0
  %v203 = vsel %vm111, %v87, 0
  %v206 = vsel %vm111, %v89, 0
  %vm208 = vcmask 1042432
  %v210 = vsel %vm208, %v106, 0
  %212 = vmatpush.msra.mxu0 %v105
  %213 = vmatpush.msra.mxu0 %v104
  %214 = vmatpush.msra.mxu0 %v103
  %215 = vmatpush.msra.mxu0 %v102
  %216 = vmatpush.msra.mxu0 %v101
  %217 = vmatpush.msra.mxu0 %v100
  %218 = vmatpush.msra.mxu0 %v99
  %219 = vmatpush.msra.mxu0 %v98
  %220 = vmatpush.msra.mxu0 %v97
  %221 = vmatpush.msra.mxu0 %v96
  %222 = vmatpush.msra.mxu0 %v95
  %223 = vmatpush.msra.mxu0 %v94
  %224 = vmatpush.msra.mxu0 %v93
  %225 = vmatpush.msra.mxu0 %v92
  %226 = vmatpush.msra.mxu0 %v91
  %227 = vmatpush.msra.mxu0 %v90
  %228 = vmatmul.f32.gmra.mxu0 %v26
  %v229 = vpop.f32.mrf.mxu0
  %v230 = vadd.f32 %v109, %v229
  %231 = vmatmul.f32.gmra.mxu0 %v28
  %v232 = vpop.f32.mrf.mxu0
  %v233 = vadd.f32 %v109, %v232
  %234 = vmatmul.f32.gmra.mxu0 %v30
  %v235 = vpop.f32.mrf.mxu0
  %v236 = vadd.f32 %v109, %v235
  %237 = vmatmul.f32.gmra.mxu0 %v32
  %v238 = vpop.f32.mrf.mxu0
  %v239 = vadd.f32 %v109, %v238
  %240 = vmatmul.f32.gmra.mxu0 %v34
  %v241 = vpop.f32.mrf.mxu0
  %v242 = vadd.f32 %v109, %v241
  %243 = vmatmul.f32.gmra.mxu0 %v36
  %v244 = vpop.f32.mrf.mxu0
  %v245 = vadd.f32 %v109, %v244
  %246 = vmatmul.f32.gmra.mxu0 %v38
  %v247 = vpop.f32.mrf.mxu0
  %v248 = vadd.f32 %v109, %v247
  %249 = vmatmul.f32.gmra.mxu0 %v40
  %v250 = vpop.f32.mrf.mxu0
  %v251 = vadd.f32 %v109, %v250
  %252 = vmatmul.f32.gmra.mxu0 %v42
  %v253 = vpop.f32.mrf.mxu0
  %v254 = vadd.f32 %v109, %v253
  %255 = vmatmul.f32.gmra.mxu0 %v44
  %v256 = vpop.f32.mrf.mxu0
  %v257 = vadd.f32 %v109, %v256
  %258 = vmatmul.f32.gmra.mxu0 %v46
  %v259 = vpop.f32.mrf.mxu0
  %v260 = vadd.f32 %v109, %v259
  %261 = vmatmul.f32.gmra.mxu0 %v48
  %v262 = vpop.f32.mrf.mxu0
  %v263 = vadd.f32 %v109, %v262
  %264 = vmatmul.f32.gmra.mxu0 %v50
  %v265 = vpop.f32.mrf.mxu0
  %v266 = vadd.f32 %v109, %v265
  %267 = vmatmul.f32.gmra.mxu0 %v52
  %v268 = vpop.f32.mrf.mxu0
  %v269 = vadd.f32 %v109, %v268
  %270 = vmatmul.f32.gmra.mxu0 %v54
  %v271 = vpop.f32.mrf.mxu0
  %v272 = vadd.f32 %v109, %v271
  %273 = vmatmul.f32.gmra.mxu0 %v56
  %v274 = vpop.f32.mrf.mxu0
  %v275 = vadd.f32 %v109, %v274
  %276 = vmatmul.f32.gmra.mxu0 %v58
  %v277 = vpop.f32.mrf.mxu0
  %v278 = vadd.f32 %v109, %v277
  %279 = vmatmul.f32.gmra.mxu0 %v60
  %v280 = vpop.f32.mrf.mxu0
  %v281 = vadd.f32 %v109, %v280
  %282 = vmatmul.f32.gmra.mxu0 %v62
  %v283 = vpop.f32.mrf.mxu0
  %v284 = vadd.f32 %v109, %v283
  %285 = vmatmul.f32.gmra.mxu0 %v64
  %v286 = vpop.f32.mrf.mxu0
  %v287 = vadd.f32 %v109, %v286
  %288 = vmatmul.f32.gmra.mxu0 %v66
  %v289 = vpop.f32.mrf.mxu0
  %v290 = vadd.f32 %v109, %v289
  %291 = vmatmul.f32.gmra.mxu0 %v68
  %v292 = vpop.f32.mrf.mxu0
  %v293 = vadd.f32 %v109, %v292
  %294 = vmatmul.f32.gmra.mxu0 %v70
  %v295 = vpop.f32.mrf.mxu0
  %v296 = vadd.f32 %v109, %v295
  %297 = vmatmul.f32.gmra.mxu0 %v72
  %v298 = vpop.f32.mrf.mxu0
  %v299 = vadd.f32 %v109, %v298
  %300 = vmatmul.f32.gmra.mxu0 %v74
  %v301 = vpop.f32.mrf.mxu0
  %v302 = vadd.f32 %v109, %v301
  %303 = vmatmul.f32.gmra.mxu0 %v76
  %v304 = vpop.f32.mrf.mxu0
  %v305 = vadd.f32 %v109, %v304
  %306 = vmatmul.f32.gmra.mxu0 %v78
  %v307 = vpop.f32.mrf.mxu0
  %v308 = vadd.f32 %v109, %v307
  %309 = vmatmul.f32.gmra.mxu0 %v80
  %v310 = vpop.f32.mrf.mxu0
  %v311 = vadd.f32 %v109, %v310
  %312 = vmatmul.f32.gmra.mxu0 %v82
  %v313 = vpop.f32.mrf.mxu0
  %v314 = vadd.f32 %v109, %v313
  %315 = vmatmul.f32.gmra.mxu0 %v84
  %v316 = vpop.f32.mrf.mxu0
  %v317 = vadd.f32 %v109, %v316
  %318 = vmatmul.f32.gmra.mxu0 %v86
  %v319 = vpop.f32.mrf.mxu0
  %v320 = vadd.f32 %v109, %v319
  %321 = vmatmul.f32.gmra.mxu0 %v88
  %v322 = vpop.f32.mrf.mxu0
  %v323 = vadd.f32 %v109, %v322
  %324 = vdwg.mxu0
  %325 = vmatpush.msra.mxu0 0.0
  %326 = vmatpush.msra.mxu0 0.0
  %327 = vmatpush.msra.mxu0 0.0
  %328 = vmatpush.msra.mxu0 0.0
  %329 = vmatpush.msra.mxu0 0.0
  %330 = vmatpush.msra.mxu0 0.0
  %331 = vmatpush.msra.mxu0 0.0
  %332 = vmatpush.msra.mxu0 0.0
  %333 = vmatpush.msra.mxu0 0.0
  %334 = vmatpush.msra.mxu0 0.0
  %335 = vmatpush.msra.mxu0 0.0
  %336 = vmatpush.msra.mxu0 0.0
  %337 = vmatpush.msra.mxu0 0.0
  %338 = vmatpush.msra.mxu0 0.0
  %339 = vmatpush.msra.mxu0 0.0
  %340 = vmatpush.msra.mxu0 %v210
  %341 = vmatmul.f32.gmra.mxu0 %v113
  %v342 = vpop.f32.mrf.mxu0
  %v343 = vadd.f32 %v230, %v342
  %344 = vmatmul.f32.gmra.mxu0 %v116
  %v345 = vpop.f32.mrf.mxu0
  %v346 = vadd.f32 %v233, %v345
  %347 = vmatmul.f32.gmra.mxu0 %v119
  %v348 = vpop.f32.mrf.mxu0
  %v349 = vadd.f32 %v236, %v348
  %350 = vmatmul.f32.gmra.mxu0 %v122
  %v351 = vpop.f32.mrf.mxu0
  %v352 = vadd.f32 %v239, %v351
  %353 = vmatmul.f32.gmra.mxu0 %v125
  %v354 = vpop.f32.mrf.mxu0
  %v355 = vadd.f32 %v242, %v354
  %356 = vmatmul.f32.gmra.mxu0 %v128
  %v357 = vpop.f32.mrf.mxu0
  %v358 = vadd.f32 %v245, %v357
  %359 = vmatmul.f32.gmra.mxu0 %v131
  %v360 = vpop.f32.mrf.mxu0
  %v361 = vadd.f32 %v248, %v360
  %362 = vmatmul.f32.gmra.mxu0 %v134
  %v363 = vpop.f32.mrf.mxu0
  %v364 = vadd.f32 %v251, %v363
  %365 = vmatmul.f32.gmra.mxu0 %v137
  %v366 = vpop.f32.mrf.mxu0
  %v367 = vadd.f32 %v254, %v366
  %368 = vmatmul.f32.gmra.mxu0 %v140
  %v369 = vpop.f32.mrf.mxu0
  %v370 = vadd.f32 %v257, %v369
  %371 = vmatmul.f32.gmra.mxu0 %v143
  %v372 = vpop.f32.mrf.mxu0
  %v373 = vadd.f32 %v260, %v372
  %374 = vmatmul.f32.gmra.mxu0 %v146
  %v375 = vpop.f32.mrf.mxu0
  %v376 = vadd.f32 %v263, %v375
  %377 = vmatmul.f32.gmra.mxu0 %v149
  %v378 = vpop.f32.mrf.mxu0
  %v379 = vadd.f32 %v266, %v378
  %380 = vmatmul.f32.gmra.mxu0 %v152
  %v381 = vpop.f32.mrf.mxu0
  %v382 = vadd.f32 %v269, %v381
  %383 = vmatmul.f32.gmra.mxu0 %v155
  %v384 = vpop.f32.mrf.mxu0
  %v385 = vadd.f32 %v272, %v384
  %386 = vmatmul.f32.gmra.mxu0 %v158
  %v387 = vpop.f32.mrf.mxu0
  %v388 = vadd.f32 %v275, %v387
  %389 = vmatmul.f32.gmra.mxu0 %v161
  %v390 = vpop.f32.mrf.mxu0
  %v391 = vadd.f32 %v278, %v390
  %392 = vmatmul.f32.gmra.mxu0 %v164
  %v393 = vpop.f32.mrf.mxu0
  %v394 = vadd.f32 %v281, %v393
  %395 = vmatmul.f32.gmra.mxu0 %v167
  %v396 = vpop.f32.mrf.mxu0
  %v397 = vadd.f32 %v284, %v396
  %398 = vmatmul.f32.gmra.mxu0 %v170
  %v399 = vpop.f32.mrf.mxu0
  %v400 = vadd.f32 %v287, %v399
  %401 = vmatmul.f32.gmra.mxu0 %v173
  %v402 = vpop.f32.mrf.mxu0
  %v403 = vadd.f32 %v290, %v402
  %404 = vmatmul.f32.gmra.mxu0 %v176
  %v405 = vpop.f32.mrf.mxu0
  %v406 = vadd.f32 %v293, %v405
  %407 = vmatmul.f32.gmra.mxu0 %v179
  %v408 = vpop.f32.mrf.mxu0
  %v409 = vadd.f32 %v296, %v408
  %410 = vmatmul.f32.gmra.mxu0 %v182
  %v411 = vpop.f32.mrf.mxu0
  %v412 = vadd.f32 %v299, %v411
  %413 = vmatmul.f32.gmra.mxu0 %v185
  %v414 = vpop.f32.mrf.mxu0
  %v415 = vadd.f32 %v302, %v414
  %416 = vmatmul.f32.gmra.mxu0 %v188
  %v417 = vpop.f32.mrf.mxu0
  %v418 = vadd.f32 %v305, %v417
  %419 = vmatmul.f32.gmra.mxu0 %v191
  %v420 = vpop.f32.mrf.mxu0
  %v421 = vadd.f32 %v308, %v420
  %422 = vmatmul.f32.gmra.mxu0 %v194
  %v423 = vpop.f32.mrf.mxu0
  %v424 = vadd.f32 %v311, %v423
  %425 = vmatmul.f32.gmra.mxu0 %v197
  %v426 = vpop.f32.mrf.mxu0
  %v427 = vadd.f32 %v314, %v426
  %428 = vmatmul.f32.gmra.mxu0 %v200
  %v429 = vpop.f32.mrf.mxu0
  %v430 = vadd.f32 %v317, %v429
  %431 = vmatmul.f32.gmra.mxu0 %v203
  %v432 = vpop.f32.mrf.mxu0
  %v433 = vadd.f32 %v320, %v432
  %434 = vmatmul.f32.gmra.mxu0 %v206
  %v435 = vpop.f32.mrf.mxu0
  %v436 = vadd.f32 %v323, %v435
  %437 = vdwg.mxu0
  %v438 = vmax.f32 %v343, 0.0
  %v439 = vmax.f32 %v346, 0.0
  %v440 = vmax.f32 %v349, 0.0
  %v441 = vmax.f32 %v352, 0.0
  %v442 = vmax.f32 %v355, 0.0
  %v443 = vmax.f32 %v358, 0.0
  %v444 = vmax.f32 %v361, 0.0
  %v445 = vmax.f32 %v364, 0.0
  %v446 = vmax.f32 %v367, 0.0
  %v447 = vmax.f32 %v370, 0.0
  %v448 = vmax.f32 %v373, 0.0
  %v449 = vmax.f32 %v376, 0.0
  %v450 = vmax.f32 %v379, 0.0
  %v451 = vmax.f32 %v382, 0.0
  %v452 = vmax.f32 %v385, 0.0
  %v453 = vmax.f32 %v388, 0.0
  %v454 = vmax.f32 %v391, 0.0
  %v455 = vmax.f32 %v394, 0.0
  %v456 = vmax.f32 %v397, 0.0
  %v457 = vmax.f32 %v400, 0.0
  %v458 = vmax.f32 %v403, 0.0
  %v459 = vmax.f32 %v406, 0.0
  %v460 = vmax.f32 %v409, 0.0
  %v461 = vmax.f32 %v412, 0.0
  %v462 = vmax.f32 %v415, 0.0
  %v463 = vmax.f32 %v418, 0.0
  %v464 = vmax.f32 %v421, 0.0
  %v465 = vmax.f32 %v424, 0.0
  %v466 = vmax.f32 %v427, 0.0
  %v467 = vmax.f32 %v430, 0.0
  %v468 = vmax.f32 %v433, 0.0
  %v469 = vmax.f32 %v436, 0.0
  %v470 = vld [vmem:[%s2] sm:$0xff]
  %v471 = vld [vmem:[%s2 + $0x8] sm:$0xff]
  %v472 = vld [vmem:[%s2 + $0x10] sm:$0xff]
  %v473 = vld [vmem:[%s2 + $0x18] sm:$0xff]
  %v474 = vld [vmem:[%s2 + $0x20] sm:$0xff]
  %v475 = vld [vmem:[%s2 + $0x28] sm:$0xff]
  %v476 = vld [vmem:[%s2 + $0x30] sm:$0xff]
  %v477 = vld [vmem:[%s2 + $0x38] sm:$0xff]
  %v478 = vld [vmem:[%s2 + $0x40] sm:$0xff]
  %v479 = vld [vmem:[%s2 + $0x48] sm:$0xff]
  %v480 = vld [vmem:[%s2 + $0x50] sm:$0xff]
  %v481 = vld [vmem:[%s2 + $0x58] sm:$0xff]
  %v482 = vld [vmem:[%s2 + $0x60] sm:$0xff]
  %v483 = vld [vmem:[%s2 + $0x68] sm:$0xff]
  %v484 = vld [vmem:[%s2 + $0x70] sm:$0xff]
  %v485 = vld [vmem:[%s2 + $0x78] sm:$0xff]
  %v486 = vld [vmem:[%s3] sm:$0x1]
  %v488 = vperm.slane %v486, 0
  %490 = vmatpush.msra.mxu0 %v485
  %491 = vmatpush.msra.mxu0 %v484
  %492 = vmatpush.msra.mxu0 %v483
  %493 = vmatpush.msra.mxu0 %v482
  %494 = vmatpush.msra.mxu0 %v481
  %495 = vmatpush.msra.mxu0 %v480
  %496 = vmatpush.msra.mxu0 %v479
  %497 = vmatpush.msra.mxu0 %v478
  %498 = vmatpush.msra.mxu0 %v477
  %499 = vmatpush.msra.mxu0 %v476
  %500 = vmatpush.msra.mxu0 %v475
  %501 = vmatpush.msra.mxu0 %v474
  %502 = vmatpush.msra.mxu0 %v473
  %503 = vmatpush.msra.mxu0 %v472
  %504 = vmatpush.msra.mxu0 %v471
  %505 = vmatpush.msra.mxu0 %v470
  %506 = vmatmul.f32.gmra.mxu0 %v438
  %v507 = vpop.f32.mrf.mxu0
  %v508 = vadd.f32 %v488, %v507
  %509 = vmatmul.f32.gmra.mxu0 %v439
  %v510 = vpop.f32.mrf.mxu0
  %v511 = vadd.f32 %v488, %v510
  %512 = vmatmul.f32.gmra.mxu0 %v440
  %v513 = vpop.f32.mrf.mxu0
  %v514 = vadd.f32 %v488, %v513
  %515 = vmatmul.f32.gmra.mxu0 %v441
  %v516 = vpop.f32.mrf.mxu0
  %v517 = vadd.f32 %v488, %v516
  %518 = vmatmul.f32.gmra.mxu0 %v442
  %v519 = vpop.f32.mrf.mxu0
  %v520 = vadd.f32 %v488, %v519
  %521 = vmatmul.f32.gmra.mxu0 %v443
  %v522 = vpop.f32.mrf.mxu0
  %v523 = vadd.f32 %v488, %v522
  %524 = vmatmul.f32.gmra.mxu0 %v444
  %v525 = vpop.f32.mrf.mxu0
  %v526 = vadd.f32 %v488, %v525
  %527 = vmatmul.f32.gmra.mxu0 %v445
  %v528 = vpop.f32.mrf.mxu0
  %v529 = vadd.f32 %v488, %v528
  %530 = vmatmul.f32.gmra.mxu0 %v446
  %v531 = vpop.f32.mrf.mxu0
  %v532 = vadd.f32 %v488, %v531
  %533 = vmatmul.f32.gmra.mxu0 %v447
  %v534 = vpop.f32.mrf.mxu0
  %v535 = vadd.f32 %v488, %v534
  %536 = vmatmul.f32.gmra.mxu0 %v448
  %v537 = vpop.f32.mrf.mxu0
  %v538 = vadd.f32 %v488, %v537
  %539 = vmatmul.f32.gmra.mxu0 %v449
  %v540 = vpop.f32.mrf.mxu0
  %v541 = vadd.f32 %v488, %v540
  %542 = vmatmul.f32.gmra.mxu0 %v450
  %v543 = vpop.f32.mrf.mxu0
  %v544 = vadd.f32 %v488, %v543
  %545 = vmatmul.f32.gmra.mxu0 %v451
  %v546 = vpop.f32.mrf.mxu0
  %v547 = vadd.f32 %v488, %v546
  %548 = vmatmul.f32.gmra.mxu0 %v452
  %v549 = vpop.f32.mrf.mxu0
  %v550 = vadd.f32 %v488, %v549
  %551 = vmatmul.f32.gmra.mxu0 %v453
  %v552 = vpop.f32.mrf.mxu0
  %v553 = vadd.f32 %v488, %v552
  %554 = vmatmul.f32.gmra.mxu0 %v454
  %v555 = vpop.f32.mrf.mxu0
  %v556 = vadd.f32 %v488, %v555
  %557 = vmatmul.f32.gmra.mxu0 %v455
  %v558 = vpop.f32.mrf.mxu0
  %v559 = vadd.f32 %v488, %v558
  %560 = vmatmul.f32.gmra.mxu0 %v456
  %v561 = vpop.f32.mrf.mxu0
  %v562 = vadd.f32 %v488, %v561
  %563 = vmatmul.f32.gmra.mxu0 %v457
  %v564 = vpop.f32.mrf.mxu0
  %v565 = vadd.f32 %v488, %v564
  %566 = vmatmul.f32.gmra.mxu0 %v458
  %v567 = vpop.f32.mrf.mxu0
  %v568 = vadd.f32 %v488, %v567
  %569 = vmatmul.f32.gmra.mxu0 %v459
  %v570 = vpop.f32.mrf.mxu0
  %v571 = vadd.f32 %v488, %v570
  %572 = vmatmul.f32.gmra.mxu0 %v460
  %v573 = vpop.f32.mrf.mxu0
  %v574 = vadd.f32 %v488, %v573
  %575 = vmatmul.f32.gmra.mxu0 %v461
  %v576 = vpop.f32.mrf.mxu0
  %v577 = vadd.f32 %v488, %v576
  %578 = vmatmul.f32.gmra.mxu0 %v462
  %v579 = vpop.f32.mrf.mxu0
  %v580 = vadd.f32 %v488, %v579
  %581 = vmatmul.f32.gmra.mxu0 %v463
  %v582 = vpop.f32.mrf.mxu0
  %v583 = vadd.f32 %v488, %v582
  %584 = vmatmul.f32.gmra.mxu0 %v464
  %v585 = vpop.f32.mrf.mxu0
  %v586 = vadd.f32 %v488, %v585
  %587 = vmatmul.f32.gmra.mxu0 %v465
  %v588 = vpop.f32.mrf.mxu0
  %v589 = vadd.f32 %v488, %v588
  %590 = vmatmul.f32.gmra.mxu0 %v466
  %v591 = vpop.f32.mrf.mxu0
  %v592 = vadd.f32 %v488, %v591
  %593 = vmatmul.f32.gmra.mxu0 %v467
  %v594 = vpop.f32.mrf.mxu0
  %v595 = vadd.f32 %v488, %v594
  %596 = vmatmul.f32.gmra.mxu0 %v468
  %v597 = vpop.f32.mrf.mxu0
  %v598 = vadd.f32 %v488, %v597
  %599 = vmatmul.f32.gmra.mxu0 %v469
  %v600 = vpop.f32.mrf.mxu0
  %v601 = vadd.f32 %v488, %v600
  %602 = vdwg.mxu0
  %v603 = vmax.f32 %v508, 0.0
  %v604 = vmax.f32 %v511, 0.0
  %v605 = vmax.f32 %v514, 0.0
  %v606 = vmax.f32 %v517, 0.0
  %v607 = vmax.f32 %v520, 0.0
  %v608 = vmax.f32 %v523, 0.0
  %v609 = vmax.f32 %v526, 0.0
  %v610 = vmax.f32 %v529, 0.0
  %v611 = vmax.f32 %v532, 0.0
  %v612 = vmax.f32 %v535, 0.0
  %v613 = vmax.f32 %v538, 0.0
  %v614 = vmax.f32 %v541, 0.0
  %v615 = vmax.f32 %v544, 0.0
  %v616 = vmax.f32 %v547, 0.0
  %v617 = vmax.f32 %v550, 0.0
  %v618 = vmax.f32 %v553, 0.0
  %v619 = vmax.f32 %v556, 0.0
  %v620 = vmax.f32 %v559, 0.0
  %v621 = vmax.f32 %v562, 0.0
  %v622 = vmax.f32 %v565, 0.0
  %v623 = vmax.f32 %v568, 0.0
  %v624 = vmax.f32 %v571, 0.0
  %v625 = vmax.f32 %v574, 0.0
  %v626 = vmax.f32 %v577, 0.0
  %v627 = vmax.f32 %v580, 0.0
  %v628 = vmax.f32 %v583, 0.0
  %v629 = vmax.f32 %v586, 0.0
  %v630 = vmax.f32 %v589, 0.0
  %v631 = vmax.f32 %v592, 0.0
  %v632 = vmax.f32 %v595, 0.0
  %v633 = vmax.f32 %v598, 0.0
  %v634 = vmax.f32 %v601, 0.0
  %v635 = vld [vmem:[%s4] sm:$0xff]
  %v636 = vld [vmem:[%s4 + $0x8] sm:$0xff]
  %v637 = vld [vmem:[%s4 + $0x10] sm:$0xff]
  %v638 = vld [vmem:[%s4 + $0x18] sm:$0xff]
  %v639 = vld [vmem:[%s4 + $0x20] sm:$0xff]
  %v640 = vld [vmem:[%s4 + $0x28] sm:$0xff]
  %v641 = vld [vmem:[%s4 + $0x30] sm:$0xff]
  %v642 = vld [vmem:[%s4 + $0x38] sm:$0xff]
  %v643 = vld [vmem:[%s4 + $0x40] sm:$0xff]
  %v644 = vld [vmem:[%s4 + $0x48] sm:$0xff]
  %v645 = vld [vmem:[%s4 + $0x50] sm:$0xff]
  %v646 = vld [vmem:[%s4 + $0x58] sm:$0xff]
  %v647 = vld [vmem:[%s4 + $0x60] sm:$0xff]
  %v648 = vld [vmem:[%s4 + $0x68] sm:$0xff]
  %v649 = vld [vmem:[%s4 + $0x70] sm:$0xff]
  %v650 = vld [vmem:[%s4 + $0x78] sm:$0xff]
  %v651 = vld [vmem:[%s5] sm:$0x1]
  %v653 = vperm.slane %v651, 0
  %655 = vmatpush.msra.mxu0 %v650
  %656 = vmatpush.msra.mxu0 %v649
  %657 = vmatpush.msra.mxu0 %v648
  %658 = vmatpush.msra.mxu0 %v647
  %659 = vmatpush.msra.mxu0 %v646
  %660 = vmatpush.msra.mxu0 %v645
  %661 = vmatpush.msra.mxu0 %v644
  %662 = vmatpush.msra.mxu0 %v643
  %663 = vmatpush.msra.mxu0 %v642
  %664 = vmatpush.msra.mxu0 %v641
  %665 = vmatpush.msra.mxu0 %v640
  %666 = vmatpush.msra.mxu0 %v639
  %667 = vmatpush.msra.mxu0 %v638
  %668 = vmatpush.msra.mxu0 %v637
  %669 = vmatpush.msra.mxu0 %v636
  %670 = vmatpush.msra.mxu0 %v635
  %671 = vmatmul.f32.gmra.mxu0 %v603
  %v672 = vpop.f32.mrf.mxu0
  %v673 = vadd.f32 %v653, %v672
  %674 = vmatmul.f32.gmra.mxu0 %v604
  %v675 = vpop.f32.mrf.mxu0
  %v676 = vadd.f32 %v653, %v675
  %677 = vmatmul.f32.gmra.mxu0 %v605
  %v678 = vpop.f32.mrf.mxu0
  %v679 = vadd.f32 %v653, %v678
  %680 = vmatmul.f32.gmra.mxu0 %v606
  %v681 = vpop.f32.mrf.mxu0
  %v682 = vadd.f32 %v653, %v681
  %683 = vmatmul.f32.gmra.mxu0 %v607
  %v684 = vpop.f32.mrf.mxu0
  %v685 = vadd.f32 %v653, %v684
  %686 = vmatmul.f32.gmra.mxu0 %v608
  %v687 = vpop.f32.mrf.mxu0
  %v688 = vadd.f32 %v653, %v687
  %689 = vmatmul.f32.gmra.mxu0 %v609
  %v690 = vpop.f32.mrf.mxu0
  %v691 = vadd.f32 %v653, %v690
  %692 = vmatmul.f32.gmra.mxu0 %v610
  %v693 = vpop.f32.mrf.mxu0
  %v694 = vadd.f32 %v653, %v693
  %695 = vmatmul.f32.gmra.mxu0 %v611
  %v696 = vpop.f32.mrf.mxu0
  %v697 = vadd.f32 %v653, %v696
  %698 = vmatmul.f32.gmra.mxu0 %v612
  %v699 = vpop.f32.mrf.mxu0
  %v700 = vadd.f32 %v653, %v699
  %701 = vmatmul.f32.gmra.mxu0 %v613
  %v702 = vpop.f32.mrf.mxu0
  %v703 = vadd.f32 %v653, %v702
  %704 = vmatmul.f32.gmra.mxu0 %v614
  %v705 = vpop.f32.mrf.mxu0
  %v706 = vadd.f32 %v653, %v705
  %707 = vmatmul.f32.gmra.mxu0 %v615
  %v708 = vpop.f32.mrf.mxu0
  %v709 = vadd.f32 %v653, %v708
  %710 = vmatmul.f32.gmra.mxu0 %v616
  %v711 = vpop.f32.mrf.mxu0
  %v712 = vadd.f32 %v653, %v711
  %713 = vmatmul.f32.gmra.mxu0 %v617
  %v714 = vpop.f32.mrf.mxu0
  %v715 = vadd.f32 %v653, %v714
  %716 = vmatmul.f32.gmra.mxu0 %v618
  %v717 = vpop.f32.mrf.mxu0
  %v718 = vadd.f32 %v653, %v717
  %719 = vmatmul.f32.gmra.mxu0 %v619
  %v720 = vpop.f32.mrf.mxu0
  %v721 = vadd.f32 %v653, %v720
  %722 = vmatmul.f32.gmra.mxu0 %v620
  %v723 = vpop.f32.mrf.mxu0
  %v724 = vadd.f32 %v653, %v723
  %725 = vmatmul.f32.gmra.mxu0 %v621
  %v726 = vpop.f32.mrf.mxu0
  %v727 = vadd.f32 %v653, %v726
  %728 = vmatmul.f32.gmra.mxu0 %v622
  %v729 = vpop.f32.mrf.mxu0
  %v730 = vadd.f32 %v653, %v729
  %731 = vmatmul.f32.gmra.mxu0 %v623
  %v732 = vpop.f32.mrf.mxu0
  %v733 = vadd.f32 %v653, %v732
  %734 = vmatmul.f32.gmra.mxu0 %v624
  %v735 = vpop.f32.mrf.mxu0
  %v736 = vadd.f32 %v653, %v735
  %737 = vmatmul.f32.gmra.mxu0 %v625
  %v738 = vpop.f32.mrf.mxu0
  %v739 = vadd.f32 %v653, %v738
  %740 = vmatmul.f32.gmra.mxu0 %v626
  %v741 = vpop.f32.mrf.mxu0
  %v742 = vadd.f32 %v653, %v741
  %743 = vmatmul.f32.gmra.mxu0 %v627
  %v744 = vpop.f32.mrf.mxu0
  %v745 = vadd.f32 %v653, %v744
  %746 = vmatmul.f32.gmra.mxu0 %v628
  %v747 = vpop.f32.mrf.mxu0
  %v748 = vadd.f32 %v653, %v747
  %749 = vmatmul.f32.gmra.mxu0 %v629
  %v750 = vpop.f32.mrf.mxu0
  %v751 = vadd.f32 %v653, %v750
  %752 = vmatmul.f32.gmra.mxu0 %v630
  %v753 = vpop.f32.mrf.mxu0
  %v754 = vadd.f32 %v653, %v753
  %755 = vmatmul.f32.gmra.mxu0 %v631
  %v756 = vpop.f32.mrf.mxu0
  %v757 = vadd.f32 %v653, %v756
  %758 = vmatmul.f32.gmra.mxu0 %v632
  %v759 = vpop.f32.mrf.mxu0
  %v760 = vadd.f32 %v653, %v759
  %761 = vmatmul.f32.gmra.mxu0 %v633
  %v762 = vpop.f32.mrf.mxu0
  %v763 = vadd.f32 %v653, %v762
  %764 = vmatmul.f32.gmra.mxu0 %v634
  %v765 = vpop.f32.mrf.mxu0
  %v766 = vadd.f32 %v653, %v765
  %767 = vdwg.mxu0
  %v768 = vadd.f32 %v673, %v438
  %v769 = vadd.f32 %v676, %v439
  %v770 = vadd.f32 %v679, %v440
  %v771 = vadd.f32 %v682, %v441
  %v772 = vadd.f32 %v685, %v442
  %v773 = vadd.f32 %v688, %v443
  %v774 = vadd.f32 %v691, %v444
  %v775 = vadd.f32 %v694, %v445
  %v776 = vadd.f32 %v697, %v446
  %v777 = vadd.f32 %v700, %v447
  %v778 = vadd.f32 %v703, %v448
  %v779 = vadd.f32 %v706, %v449
  %v780 = vadd.f32 %v709, %v450
  %v781 = vadd.f32 %v712, %v451
  %v782 = vadd.f32 %v715, %v452
  %v783 = vadd.f32 %v718, %v453
  %v784 = vadd.f32 %v721, %v454
  %v785 = vadd.f32 %v724, %v455
  %v786 = vadd.f32 %v727, %v456
  %v787 = vadd.f32 %v730, %v457
  %v788 = vadd.f32 %v733, %v458
  %v789 = vadd.f32 %v736, %v459
  %v790 = vadd.f32 %v739, %v460
  %v791 = vadd.f32 %v742, %v461
  %v792 = vadd.f32 %v745, %v462
  %v793 = vadd.f32 %v748, %v463
  %v794 = vadd.f32 %v751, %v464
  %v795 = vadd.f32 %v754, %v465
  %v796 = vadd.f32 %v757, %v466
  %v797 = vadd.f32 %v760, %v467
  %v798 = vadd.f32 %v763, %v468
  %v799 = vadd.f32 %v766, %v469
  %v800 = vmax.f32 %v768, 0.0
  %v801 = vmax.f32 %v769, 0.0
  %v802 = vmax.f32 %v770, 0.0
  %v803 = vmax.f32 %v771, 0.0
  %v804 = vmax.f32 %v772, 0.0
  %v805 = vmax.f32 %v773, 0.0
  %v806 = vmax.f32 %v774, 0.0
  %v807 = vmax.f32 %v775, 0.0
  %v808 = vmax.f32 %v776, 0.0
  %v809 = vmax.f32 %v777, 0.0
  %v810 = vmax.f32 %v778, 0.0
  %v811 = vmax.f32 %v779, 0.0
  %v812 = vmax.f32 %v780, 0.0
  %v813 = vmax.f32 %v781, 0.0
  %v814 = vmax.f32 %v782, 0.0
  %v815 = vmax.f32 %v783, 0.0
  %v816 = vmax.f32 %v784, 0.0
  %v817 = vmax.f32 %v785, 0.0
  %v818 = vmax.f32 %v786, 0.0
  %v819 = vmax.f32 %v787, 0.0
  %v820 = vmax.f32 %v788, 0.0
  %v821 = vmax.f32 %v789, 0.0
  %v822 = vmax.f32 %v790, 0.0
  %v823 = vmax.f32 %v791, 0.0
  %v824 = vmax.f32 %v792, 0.0
  %v825 = vmax.f32 %v793, 0.0
  %v826 = vmax.f32 %v794, 0.0
  %v827 = vmax.f32 %v795, 0.0
  %v828 = vmax.f32 %v796, 0.0
  %v829 = vmax.f32 %v797, 0.0
  %v830 = vmax.f32 %v798, 0.0
  %v831 = vmax.f32 %v799, 0.0
  %v832 = vrot.slane %v800, 4
  %v833 = vmax.f32 %v800, %v832
  %v834 = vrot.slane %v833, 2
  %v835 = vmax.f32 %v833, %v834
  %v836 = vrot.slane %v835, 1
  %v837 = vmax.f32 %v835, %v836
  %v838 = vrot.slane %v801, 4
  %v839 = vmax.f32 %v801, %v838
  %v840 = vrot.slane %v839, 2
  %v841 = vmax.f32 %v839, %v840
  %v842 = vrot.slane %v841, 1
  %v843 = vmax.f32 %v841, %v842
  %v844 = vrot.slane %v802, 4
  %v845 = vmax.f32 %v802, %v844
  %v846 = vrot.slane %v845, 2
  %v847 = vmax.f32 %v845, %v846
  %v848 = vrot.slane %v847, 1
  %v849 = vmax.f32 %v847, %v848
  %v850 = vrot.slane %v803, 4
  %v851 = vmax.f32 %v803, %v850
  %v852 = vrot.slane %v851, 2
  %v853 = vmax.f32 %v851, %v852
  %v854 = vrot.slane %v853, 1
  %v855 = vmax.f32 %v853, %v854
  %v856 = vrot.slane %v804, 4
  %v857 = vmax.f32 %v804, %v856
  %v858 = vrot.slane %v857, 2
  %v859 = vmax.f32 %v857, %v858
  %v860 = vrot.slane %v859, 1
  %v861 = vmax.f32 %v859, %v860
  %v862 = vrot.slane %v805, 4
  %v863 = vmax.f32 %v805, %v862
  %v864 = vrot.slane %v863, 2
  %v865 = vmax.f32 %v863, %v864
  %v866 = vrot.slane %v865, 1
  %v867 = vmax.f32 %v865, %v866
  %v868 = vrot.slane %v806, 4
  %v869 = vmax.f32 %v806, %v868
  %v870 = vrot.slane %v869, 2
  %v871 = vmax.f32 %v869, %v870
  %v872 = vrot.slane %v871, 1
  %v873 = vmax.f32 %v871, %v872
  %v874 = vrot.slane %v807, 4
  %v875 = vmax.f32 %v807, %v874
  %v876 = vrot.slane %v875, 2
  %v877 = vmax.f32 %v875, %v876
  %v878 = vrot.slane %v877, 1
  %v879 = vmax.f32 %v877, %v878
  %v880 = vrot.slane %v808, 4
  %v881 = vmax.f32 %v808, %v880
  %v882 = vrot.slane %v881, 2
  %v883 = vmax.f32 %v881, %v882
  %v884 = vrot.slane %v883, 1
  %v885 = vmax.f32 %v883, %v884
  %v886 = vrot.slane %v809, 4
  %v887 = vmax.f32 %v809, %v886
  %v888 = vrot.slane %v887, 2
  %v889 = vmax.f32 %v887, %v888
  %v890 = vrot.slane %v889, 1
  %v891 = vmax.f32 %v889, %v890
  %v892 = vrot.slane %v810, 4
  %v893 = vmax.f32 %v810, %v892
  %v894 = vrot.slane %v893, 2
  %v895 = vmax.f32 %v893, %v894
  %v896 = vrot.slane %v895, 1
  %v897 = vmax.f32 %v895, %v896
  %v898 = vrot.slane %v811, 4
  %v899 = vmax.f32 %v811, %v898
  %v900 = vrot.slane %v899, 2
  %v901 = vmax.f32 %v899, %v900
  %v902 = vrot.slane %v901, 1
  %v903 = vmax.f32 %v901, %v902
  %v904 = vrot.slane %v812, 4
  %v905 = vmax.f32 %v812, %v904
  %v906 = vrot.slane %v905, 2
  %v907 = vmax.f32 %v905, %v906
  %v908 = vrot.slane %v907, 1
  %v909 = vmax.f32 %v907, %v908
  %v910 = vrot.slane %v813, 4
  %v911 = vmax.f32 %v813, %v910
  %v912 = vrot.slane %v911, 2
  %v913 = vmax.f32 %v911, %v912
  %v914 = vrot.slane %v913, 1
  %v915 = vmax.f32 %v913, %v914
  %v916 = vrot.slane %v814, 4
  %v917 = vmax.f32 %v814, %v916
  %v918 = vrot.slane %v917, 2
  %v919 = vmax.f32 %v917, %v918
  %v920 = vrot.slane %v919, 1
  %v921 = vmax.f32 %v919, %v920
  %v922 = vrot.slane %v815, 4
  %v923 = vmax.f32 %v815, %v922
  %v924 = vrot.slane %v923, 2
  %v925 = vmax.f32 %v923, %v924
  %v926 = vrot.slane %v925, 1
  %v927 = vmax.f32 %v925, %v926
  %v928 = vrot.slane %v816, 4
  %v929 = vmax.f32 %v816, %v928
  %v930 = vrot.slane %v929, 2
  %v931 = vmax.f32 %v929, %v930
  %v932 = vrot.slane %v931, 1
  %v933 = vmax.f32 %v931, %v932
  %v934 = vrot.slane %v817, 4
  %v935 = vmax.f32 %v817, %v934
  %v936 = vrot.slane %v935, 2
  %v937 = vmax.f32 %v935, %v936
  %v938 = vrot.slane %v937, 1
  %v939 = vmax.f32 %v937, %v938
  %v940 = vrot.slane %v818, 4
  %v941 = vmax.f32 %v818, %v940
  %v942 = vrot.slane %v941, 2
  %v943 = vmax.f32 %v941, %v942
  %v944 = vrot.slane %v943, 1
  %v945 = vmax.f32 %v943, %v944
  %v946 = vrot.slane %v819, 4
  %v947 = vmax.f32 %v819, %v946
  %v948 = vrot.slane %v947, 2
  %v949 = vmax.f32 %v947, %v948
  %v950 = vrot.slane %v949, 1
  %v951 = vmax.f32 %v949, %v950
  %v952 = vrot.slane %v820, 4
  %v953 = vmax.f32 %v820, %v952
  %v954 = vrot.slane %v953, 2
  %v955 = vmax.f32 %v953, %v954
  %v956 = vrot.slane %v955, 1
  %v957 = vmax.f32 %v955, %v956
  %v958 = vrot.slane %v821, 4
  %v959 = vmax.f32 %v821, %v958
  %v960 = vrot.slane %v959, 2
  %v961 = vmax.f32 %v959, %v960
  %v962 = vrot.slane %v961, 1
  %v963 = vmax.f32 %v961, %v962
  %v964 = vrot.slane %v822, 4
  %v965 = vmax.f32 %v822, %v964
  %v966 = vrot.slane %v965, 2
  %v967 = vmax.f32 %v965, %v966
  %v968 = vrot.slane %v967, 1
  %v969 = vmax.f32 %v967, %v968
  %v970 = vrot.slane %v823, 4
  %v971 = vmax.f32 %v823, %v970
  %v972 = vrot.slane %v971, 2
  %v973 = vmax.f32 %v971, %v972
  %v974 = vrot.slane %v973, 1
  %v975 = vmax.f32 %v973, %v974
  %v976 = vrot.slane %v824, 4
  %v977 = vmax.f32 %v824, %v976
  %v978 = vrot.slane %v977, 2
  %v979 = vmax.f32 %v977, %v978
  %v980 = vrot.slane %v979, 1
  %v981 = vmax.f32 %v979, %v980
  %v982 = vrot.slane %v825, 4
  %v983 = vmax.f32 %v825, %v982
  %v984 = vrot.slane %v983, 2
  %v985 = vmax.f32 %v983, %v984
  %v986 = vrot.slane %v985, 1
  %v987 = vmax.f32 %v985, %v986
  %v988 = vrot.slane %v826, 4
  %v989 = vmax.f32 %v826, %v988
  %v990 = vrot.slane %v989, 2
  %v991 = vmax.f32 %v989, %v990
  %v992 = vrot.slane %v991, 1
  %v993 = vmax.f32 %v991, %v992
  %v994 = vrot.slane %v827, 4
  %v995 = vmax.f32 %v827, %v994
  %v996 = vrot.slane %v995, 2
  %v997 = vmax.f32 %v995, %v996
  %v998 = vrot.slane %v997, 1
  %v999 = vmax.f32 %v997, %v998
  %v1000 = vrot.slane %v828, 4
  %v1001 = vmax.f32 %v828, %v1000
  %v1002 = vrot.slane %v1001, 2
  %v1003 = vmax.f32 %v1001, %v1002
  %v1004 = vrot.slane %v1003, 1
  %v1005 = vmax.f32 %v1003, %v1004
  %v1006 = vrot.slane %v829, 4
  %v1007 = vmax.f32 %v829, %v1006
  %v1008 = vrot.slane %v1007, 2
  %v1009 = vmax.f32 %v1007, %v1008
  %v1010 = vrot.slane %v1009, 1
  %v1011 = vmax.f32 %v1009, %v1010
  %v1012 = vrot.slane %v830, 4
  %v1013 = vmax.f32 %v830, %v1012
  %v1014 = vrot.slane %v1013, 2
  %v1015 = vmax.f32 %v1013, %v1014
  %v1016 = vrot.slane %v1015, 1
  %v1017 = vmax.f32 %v1015, %v1016
  %v1018 = vrot.slane %v831, 4
  %v1019 = vmax.f32 %v831, %v1018
  %v1020 = vrot.slane %v1019, 2
  %v1021 = vmax.f32 %v1019, %v1020
  %v1022 = vrot.slane %v1021, 1
  %v1023 = vmax.f32 %v1021, %v1022
  %vm1056 = vcmask 1041409
  %v1057 = vsel %vm1056, %v843, %v837
  %vm1058 = vcmask 1042434
  %v1059 = vsel %vm1058, %v849, %v1057
  %vm1060 = vcmask 1043459
  %v1061 = vsel %vm1060, %v855, %v1059
  %vm1062 = vcmask 1044484
  %v1063 = vsel %vm1062, %v861, %v1061
  %vm1064 = vcmask 1045509
  %v1065 = vsel %vm1064, %v867, %v1063
  %vm1066 = vcmask 1046534
  %v1067 = vsel %vm1066, %v873, %v1065
  %vm1068 = vcmask 1047559
  %v1069 = vsel %vm1068, %v879, %v1067
  %v1070 = vsel %vm1056, %v891, %v885
  %v1071 = vsel %vm1058, %v897, %v1070
  %v1072 = vsel %vm1060, %v903, %v1071
  %v1073 = vsel %vm1062, %v909, %v1072
  %v1074 = vsel %vm1064, %v915, %v1073
  %v1075 = vsel %vm1066, %v921, %v1074
  %v1076 = vsel %vm1068, %v927, %v1075
  %v1077 = vsel %vm1056, %v939, %v933
  %v1078 = vsel %vm1058, %v945, %v1077
  %v1079 = vsel %vm1060, %v951, %v1078
  %v1080 = vsel %vm1062, %v957, %v1079
  %v1081 = vsel %vm1064, %v963, %v1080
  %v1082 = vsel %vm1066, %v969, %v1081
  %v1083 = vsel %vm1068, %v975, %v1082
  %v1084 = vsel %vm1056, %v987, %v981
  %v1085 = vsel %vm1058, %v993, %v1084
  %v1086 = vsel %vm1060, %v999, %v1085
  %v1087 = vsel %vm1062, %v1005, %v1086
  %v1088 = vsel %vm1064, %v1011, %v1087
  %v1089 = vsel %vm1066, %v1017, %v1088
  %v1090 = vsel %vm1068, %v1023, %v1089
  %1095 = vst [vmem:[%s7] sm:$0xff] %v1069
  %1096 = vst [vmem:[%s7 + $0x8] sm:$0xff] %v1076
  %1097 = vst [vmem:[%s7 + $0x10] sm:$0xff] %v1083
  %1098 = vst [vmem:[%s7 + $0x18] sm:$0xff] %v1090
  // Predicated region
  $region30: #{model_forward.13} parent=0 // pred_check
    _
  $region31: #{model_forward.13} parent=0 // pred_check_branch
    %1100 = sbr.rel (0) target = $region33
  $region32: #{model_forward.13} parent=0 // pred_region
    _
  $region33: #{model_forward.13} parent=0 // pred_fallthru
    _
  // Predicated region
  $region34: #{model_forward.13} parent=0 // pred_check
    _
  $region35: #{model_forward.13} parent=0 // pred_check_branch
    %1102 = sbr.rel (0) target = $region37
  $region36: #{model_forward.13} parent=0 // pred_region
    _
  $region37: #{model_forward.13} parent=0 // pred_fallthru
    _

// kernel: model_forward.15
$region0: #{model_forward.15}
  #allocation0 [shape = 'u32[]', space=smem, size = 0x4, offset = 0x4, fixed_abs, tag = 'smem constant byte address 0x4 - core index']
  #allocation1 [shape = 'u32[72,128]{1,0:T(1,128)}', space=vmem, size = 0x9000, scoped, tag = 'internal scratch']
  %s0 = inlined_call_operand.vmem [shape: f32[128,512], index: 0, kind: input, shape index: {}]
  %s1 = inlined_call_operand.vmem [shape: f32[1,512], index: 1, kind: input, shape index: {}]
  %s2 = inlined_call_operand.vmem [shape: f32[512,256], index: 2, kind: input, shape index: {}]
  %s3 = inlined_call_operand.vmem [shape: f32[1,256], index: 3, kind: input, shape index: {}]
  %s4 = inlined_call_operand.vmem [shape: f32[256,40], index: 4, kind: input, shape index: {}]
  %s5 = inlined_call_operand.vmem [shape: f32[1,40], index: 5, kind: input, shape index: {}]
  %s6 = inlined_call_operand.vmem [shape: f32[8,128], index: 6, kind: input, shape index: {}]
  %s7 = inlined_call_operand.vmem [shape: f32[8,40], index: 7, kind: output, shape index: {}]
  %s8 = sld [smem:[#allocation0]]
  $region38: #{model_forward.15} parent=0
    _
  %s10 = ssub.s32 1, %s8
  %s11 = scalar_select 0, %s10, %s8
  // Predicated region
  $region2: #{model_forward.15} parent=0 // pred_check
    _
  $region3: #{model_forward.15} parent=0 // pred_check_branch
    %13 = sbr.rel (0) target = $region5
  $region4: #{model_forward.15} parent=0 // pred_region
    _
  $region5: #{model_forward.15} parent=0 // pred_fallthru
    _
  // Predicated region
  $region6: #{model_forward.15} parent=0 // pred_check
    _
  $region7: #{model_forward.15} parent=0 // pred_check_branch
    %15 = sbr.rel (0) target = $region9
  $region8: #{model_forward.15} parent=0 // pred_region
    _
  $region9: #{model_forward.15} parent=0 // pred_fallthru
    _
  // Predicated region
  $region10: #{model_forward.15} parent=0 // pred_check
    _
  $region11: #{model_forward.15} parent=0 // pred_check_branch
    %17 = sbr.rel (0) target = $region13
  $region12: #{model_forward.15} parent=0 // pred_region
    _
  $region13: #{model_forward.15} parent=0 // pred_fallthru
    _
  // Predicated region
  $region14: #{model_forward.15} parent=0 // pred_check
    _
  $region15: #{model_forward.15} parent=0 // pred_check_branch
    %19 = sbr.rel (0) target = $region17
  $region16: #{model_forward.15} parent=0 // pred_region
    _
  $region17: #{model_forward.15} parent=0 // pred_fallthru
    _
  // Predicated region
  $region18: #{model_forward.15} parent=0 // pred_check
    _
  $region19: #{model_forward.15} parent=0 // pred_check_branch
    %21 = sbr.rel (0) target = $region21
  $region20: #{model_forward.15} parent=0 // pred_region
    _
  $region21: #{model_forward.15} parent=0 // pred_fallthru
    _
  // Predicated region
  $region22: #{model_forward.15} parent=0 // pred_check
    _
  $region23: #{model_forward.15} parent=0 // pred_check_branch
    %23 = sbr.rel (0) target = $region25
  $region24: #{model_forward.15} parent=0 // pred_region
    _
  $region25: #{model_forward.15} parent=0 // pred_fallthru
    _
  // Predicated region
  $region26: #{model_forward.15} parent=0 // pred_check
    _
  $region27: #{model_forward.15} parent=0 // pred_check_branch
    %25 = sbr.rel (0) target = $region29
  $region28: #{model_forward.15} parent=0 // pred_region
    _
  $region29: #{model_forward.15} parent=0 // pred_fallthru
    _
  %v26 = vld [vmem:[%s6] sm:$0xff]
  %v27 = vld [vmem:[%s0] sm:$0xff]
  %v28 = vld [vmem:[%s0 + $0x8] sm:$0xff]
  %v29 = vld [vmem:[%s0 + $0x10] sm:$0xff]
  %v30 = vld [vmem:[%s0 + $0x18] sm:$0xff]
  %v31 = vld [vmem:[%s0 + $0x20] sm:$0xff]
  %v32 = vld [vmem:[%s0 + $0x28] sm:$0xff]
  %v33 = vld [vmem:[%s0 + $0x30] sm:$0xff]
  %v34 = vld [vmem:[%s0 + $0x38] sm:$0xff]
  %v35 = vld [vmem:[%s0 + $0x40] sm:$0xff]
  %v36 = vld [vmem:[%s0 + $0x48] sm:$0xff]
  %v37 = vld [vmem:[%s0 + $0x50] sm:$0xff]
  %v38 = vld [vmem:[%s0 + $0x58] sm:$0xff]
  %v39 = vld [vmem:[%s0 + $0x60] sm:$0xff]
  %v40 = vld [vmem:[%s0 + $0x68] sm:$0xff]
  %v41 = vld [vmem:[%s0 + $0x70] sm:$0xff]
  %v42 = vld [vmem:[%s0 + $0x78] sm:$0xff]
  %v43 = vld [vmem:[%s0 + $0x80] sm:$0xff]
  %v44 = vld [vmem:[%s0 + $0x88] sm:$0xff]
  %v45 = vld [vmem:[%s0 + $0x90] sm:$0xff]
  %v46 = vld [vmem:[%s0 + $0x98] sm:$0xff]
  %v47 = vld [vmem:[%s0 + $0xa0] sm:$0xff]
  %v48 = vld [vmem:[%s0 + $0xa8] sm:$0xff]
  %v49 = vld [vmem:[%s0 + $0xb0] sm:$0xff]
  %v50 = vld [vmem:[%s0 + $0xb8] sm:$0xff]
  %v51 = vld [vmem:[%s0 + $0xc0] sm:$0xff]
  %v52 = vld [vmem:[%s0 + $0xc8] sm:$0xff]
  %v53 = vld [vmem:[%s0 + $0xd0] sm:$0xff]
  %v54 = vld [vmem:[%s0 + $0xd8] sm:$0xff]
  %v55 = vld [vmem:[%s0 + $0xe0] sm:$0xff]
  %v56 = vld [vmem:[%s0 + $0xe8] sm:$0xff]
  %v57 = vld [vmem:[%s0 + $0xf0] sm:$0xff]
  %v58 = vld [vmem:[%s0 + $0xf8] sm:$0xff]
  %v59 = vld [vmem:[%s0 + $0x100] sm:$0xff]
  %v60 = vld [vmem:[%s0 + $0x108] sm:$0xff]
  %v61 = vld [vmem:[%s0 + $0x110] sm:$0xff]
  %v62 = vld [vmem:[%s0 + $0x118] sm:$0xff]
  %v63 = vld [vmem:[%s0 + $0x120] sm:$0xff]
  %v64 = vld [vmem:[%s0 + $0x128] sm:$0xff]
  %v65 = vld [vmem:[%s0 + $0x130] sm:$0xff]
  %v66 = vld [vmem:[%s0 + $0x138] sm:$0xff]
  %v67 = vld [vmem:[%s0 + $0x140] sm:$0xff]
  %v68 = vld [vmem:[%s0 + $0x148] sm:$0xff]
  %v69 = vld [vmem:[%s0 + $0x150] sm:$0xff]
  %v70 = vld [vmem:[%s0 + $0x158] sm:$0xff]
  %v71 = vld [vmem:[%s0 + $0x160] sm:$0xff]
  %v72 = vld [vmem:[%s0 + $0x168] sm:$0xff]
  %v73 = vld [vmem:[%s0 + $0x170] sm:$0xff]
  %v74 = vld [vmem:[%s0 + $0x178] sm:$0xff]
  %v75 = vld [vmem:[%s0 + $0x180] sm:$0xff]
  %v76 = vld [vmem:[%s0 + $0x188] sm:$0xff]
  %v77 = vld [vmem:[%s0 + $0x190] sm:$0xff]
  %v78 = vld [vmem:[%s0 + $0x198] sm:$0xff]
  %v79 = vld [vmem:[%s0 + $0x1a0] sm:$0xff]
  %v80 = vld [vmem:[%s0 + $0x1a8] sm:$0xff]
  %v81 = vld [vmem:[%s0 + $0x1b0] sm:$0xff]
  %v82 = vld [vmem:[%s0 + $0x1b8] sm:$0xff]
  %v83 = vld [vmem:[%s0 + $0x1c0] sm:$0xff]
  %v84 = vld [vmem:[%s0 + $0x1c8] sm:$0xff]
  %v85 = vld [vmem:[%s0 + $0x1d0] sm:$0xff]
  %v86 = vld [vmem:[%s0 + $0x1d8] sm:$0xff]
  %v87 = vld [vmem:[%s0 + $0x1e0] sm:$0xff]
  %v88 = vld [vmem:[%s0 + $0x1e8] sm:$0xff]
  %v89 = vld [vmem:[%s0 + $0x1f0] sm:$0xff]
  %v90 = vld [vmem:[%s0 + $0x1f8] sm:$0xff]
  %v91 = vld [vmem:[%s1] sm:$0xf]
  %v93 = vperm.slane %v91, 0
  %v94 = vperm.slane %v91, 1
  %v95 = vperm.slane %v91, 2
  %v96 = vperm.slane %v91, 3
  %101 = vmatpush.msra.mxu0 %v87
  %102 = vmatpush.msra.mxu0 %v83
  %103 = vmatpush.msra.mxu0 %v79
  %104 = vmatpush.msra.mxu0 %v75
  %105 = vmatpush.msra.mxu0 %v71
  %106 = vmatpush.msra.mxu0 %v67
  %107 = vmatpush.msra.mxu0 %v63
  %108 = vmatpush.msra.mxu0 %v59
  %109 = vmatpush.msra.mxu0 %v55
  %110 = vmatpush.msra.mxu0 %v51
  %111 = vmatpush.msra.mxu0 %v47
  %112 = vmatpush.msra.mxu0 %v43
  %113 = vmatpush.msra.mxu0 %v39
  %114 = vmatpush.msra.mxu0 %v35
  %115 = vmatpush.msra.mxu0 %v31
  %116 = vmatpush.msra.mxu0 %v27
  %117 = vmatmul.f32.gmra.mxu0 %v26
  %v118 = vpop.f32.mrf.mxu0
  %v119 = vadd.f32 %v93, %v118
  %120 = vdwg.mxu0
  %121 = vmatpush.msra.mxu0 %v88
  %122 = vmatpush.msra.mxu0 %v84
  %123 = vmatpush.msra.mxu0 %v80
  %124 = vmatpush.msra.mxu0 %v76
  %125 = vmatpush.msra.mxu0 %v72
  %126 = vmatpush.msra.mxu0 %v68
  %127 = vmatpush.msra.mxu0 %v64
  %128 = vmatpush.msra.mxu0 %v60
  %129 = vmatpush.msra.mxu0 %v56
  %130 = vmatpush.msra.mxu0 %v52
  %131 = vmatpush.msra.mxu0 %v48
  %132 = vmatpush.msra.mxu0 %v44
  %133 = vmatpush.msra.mxu0 %v40
  %134 = vmatpush.msra.mxu0 %v36
  %135 = vmatpush.msra.mxu0 %v32
  %136 = vmatpush.msra.mxu0 %v28
  %137 = vmatmul.f32.gmra.mxu0 %v26
  %v138 = vpop.f32.mrf.mxu0
  %v139 = vadd.f32 %v94, %v138
  %140 = vdwg.mxu0
  %141 = vmatpush.msra.mxu0 %v89
  %142 = vmatpush.msra.mxu0 %v85
  %143 = vmatpush.msra.mxu0 %v81
  %144 = vmatpush.msra.mxu0 %v77
  %145 = vmatpush.msra.mxu0 %v73
  %146 = vmatpush.msra.mxu0 %v69
  %147 = vmatpush.msra.mxu0 %v65
  %148 = vmatpush.msra.mxu0 %v61
  %149 = vmatpush.msra.mxu0 %v57
  %150 = vmatpush.msra.mxu0 %v53
  %151 = vmatpush.msra.mxu0 %v49
  %152 = vmatpush.msra.mxu0 %v45
  %153 = vmatpush.msra.mxu0 %v41
  %154 = vmatpush.msra.mxu0 %v37
  %155 = vmatpush.msra.mxu0 %v33
  %156 = vmatpush.msra.mxu0 %v29
  %157 = vmatmul.f32.gmra.mxu0 %v26
  %v158 = vpop.f32.mrf.mxu0
  %v159 = vadd.f32 %v95, %v158
  %160 = vdwg.mxu0
  %161 = vmatpush.msra.mxu0 %v90
  %162 = vmatpush.msra.mxu0 %v86
  %163 = vmatpush.msra.mxu0 %v82
  %164 = vmatpush.msra.mxu0 %v78
  %165 = vmatpush.msra.mxu0 %v74
  %166 = vmatpush.msra.mxu0 %v70
  %167 = vmatpush.msra.mxu0 %v66
  %168 = vmatpush.msra.mxu0 %v62
  %169 = vmatpush.msra.mxu0 %v58
  %170 = vmatpush.msra.mxu0 %v54
  %171 = vmatpush.msra.mxu0 %v50
  %172 = vmatpush.msra.mxu0 %v46
  %173 = vmatpush.msra.mxu0 %v42
  %174 = vmatpush.msra.mxu0 %v38
  %175 = vmatpush.msra.mxu0 %v34
  %176 = vmatpush.msra.mxu0 %v30
  %177 = vmatmul.f32.gmra.mxu0 %v26
  %v178 = vpop.f32.mrf.mxu0
  %v179 = vadd.f32 %v96, %v178
  %180 = vdwg.mxu0
  %v181 = vmax.f32 %v119, 0.0
  %v182 = vmax.f32 %v139, 0.0
  %v183 = vmax.f32 %v159, 0.0
  %v184 = vmax.f32 %v179, 0.0
  %v185 = vld [vmem:[%s2] sm:$0xff]
  %v186 = vld [vmem:[%s2 + $0x8] sm:$0xff]
  %v187 = vld [vmem:[%s2 + $0x10] sm:$0xff]
  %v188 = vld [vmem:[%s2 + $0x18] sm:$0xff]
  %v189 = vld [vmem:[%s2 + $0x20] sm:$0xff]
  %v190 = vld [vmem:[%s2 + $0x28] sm:$0xff]
  %v191 = vld [vmem:[%s2 + $0x30] sm:$0xff]
  %v192 = vld [vmem:[%s2 + $0x38] sm:$0xff]
  %v193 = vld [vmem:[%s2 + $0x40] sm:$0xff]
  %v194 = vld [vmem:[%s2 + $0x48] sm:$0xff]
  %v195 = vld [vmem:[%s2 + $0x50] sm:$0xff]
  %v196 = vld [vmem:[%s2 + $0x58] sm:$0xff]
  %v197 = vld [vmem:[%s2 + $0x60] sm:$0xff]
  %v198 = vld [vmem:[%s2 + $0x68] sm:$0xff]
  %v199 = vld [vmem:[%s2 + $0x70] sm:$0xff]
  %v200 = vld [vmem:[%s2 + $0x78] sm:$0xff]
  %v201 = vld [vmem:[%s2 + $0x80] sm:$0xff]
  %v202 = vld [vmem:[%s2 + $0x88] sm:$0xff]
  %v203 = vld [vmem:[%s2 + $0x90] sm:$0xff]
  %v204 = vld [vmem:[%s2 + $0x98] sm:$0xff]
  %v205 = vld [vmem:[%s2 + $0xa0] sm:$0xff]
  %v206 = vld [vmem:[%s2 + $0xa8] sm:$0xff]
  %v207 = vld [vmem:[%s2 + $0xb0] sm:$0xff]
  %v208 = vld [vmem:[%s2 + $0xb8] sm:$0xff]
  %v209 = vld [vmem:[%s2 + $0xc0] sm:$0xff]
  %v210 = vld [vmem:[%s2 + $0xc8] sm:$0xff]
  %v211 = vld [vmem:[%s2 + $0xd0] sm:$0xff]
  %v212 = vld [vmem:[%s2 + $0xd8] sm:$0xff]
  %v213 = vld [vmem:[%s2 + $0xe0] sm:$0xff]
  %v214 = vld [vmem:[%s2 + $0xe8] sm:$0xff]
  %v215 = vld [vmem:[%s2 + $0xf0] sm:$0xff]
  %v216 = vld [vmem:[%s2 + $0xf8] sm:$0xff]
  %v217 = vld [vmem:[%s2 + $0x100] sm:$0xff]
  %v218 = vld [vmem:[%s2 + $0x108] sm:$0xff]
  %v219 = vld [vmem:[%s2 + $0x110] sm:$0xff]
  %v220 = vld [vmem:[%s2 + $0x118] sm:$0xff]
  %v221 = vld [vmem:[%s2 + $0x120] sm:$0xff]
  %v222 = vld [vmem:[%s2 + $0x128] sm:$0xff]
  %v223 = vld [vmem:[%s2 + $0x130] sm:$0xff]
  %v224 = vld [vmem:[%s2 + $0x138] sm:$0xff]
  %v225 = vld [vmem:[%s2 + $0x140] sm:$0xff]
  %v226 = vld [vmem:[%s2 + $0x148] sm:$0xff]
  %v227 = vld [vmem:[%s2 + $0x150] sm:$0xff]
  %v228 = vld [vmem:[%s2 + $0x158] sm:$0xff]
  %v229 = vld [vmem:[%s2 + $0x160] sm:$0xff]
  %v230 = vld [vmem:[%s2 + $0x168] sm:$0xff]
  %v231 = vld [vmem:[%s2 + $0x170] sm:$0xff]
  %v232 = vld [vmem:[%s2 + $0x178] sm:$0xff]
  %v233 = vld [vmem:[%s2 + $0x180] sm:$0xff]
  %v234 = vld [vmem:[%s2 + $0x188] sm:$0xff]
  %v235 = vld [vmem:[%s2 + $0x190] sm:$0xff]
  %v236 = vld [vmem:[%s2 + $0x198] sm:$0xff]
  %v237 = vld [vmem:[%s2 + $0x1a0] sm:$0xff]
  %v238 = vld [vmem:[%s2 + $0x1a8] sm:$0xff]
  %v239 = vld [vmem:[%s2 + $0x1b0] sm:$0xff]
  %v240 = vld [vmem:[%s2 + $0x1b8] sm:$0xff]
  %v241 = vld [vmem:[%s2 + $0x1c0] sm:$0xff]
  %v242 = vld [vmem:[%s2 + $0x1c8] sm:$0xff]
  %v243 = vld [vmem:[%s2 + $0x1d0] sm:$0xff]
  %v244 = vld [vmem:[%s2 + $0x1d8] sm:$0xff]
  %v245 = vld [vmem:[%s2 + $0x1e0] sm:$0xff]
  %v246 = vld [vmem:[%s2 + $0x1e8] sm:$0xff]
  %v247 = vld [vmem:[%s2 + $0x1f0] sm:$0xff]
  %v248 = vld [vmem:[%s2 + $0x1f8] sm:$0xff]
  %v249 = vld [vmem:[%s2 + $0x200] sm:$0xff]
  %v250 = vld [vmem:[%s2 + $0x208] sm:$0xff]
  %v251 = vld [vmem:[%s2 + $0x210] sm:$0xff]
  %v252 = vld [vmem:[%s2 + $0x218] sm:$0xff]
  %v253 = vld [vmem:[%s2 + $0x220] sm:$0xff]
  %v254 = vld [vmem:[%s2 + $0x228] sm:$0xff]
  %v255 = vld [vmem:[%s2 + $0x230] sm:$0xff]
  %v256 = vld [vmem:[%s2 + $0x238] sm:$0xff]
  %v257 = vld [vmem:[%s2 + $0x240] sm:$0xff]
  %v258 = vld [vmem:[%s2 + $0x248] sm:$0xff]
  %v259 = vld [vmem:[%s2 + $0x250] sm:$0xff]
  %v260 = vld [vmem:[%s2 + $0x258] sm:$0xff]
  %v261 = vld [vmem:[%s2 + $0x260] sm:$0xff]
  %v262 = vld [vmem:[%s2 + $0x268] sm:$0xff]
  %v263 = vld [vmem:[%s2 + $0x270] sm:$0xff]
  %v264 = vld [vmem:[%s2 + $0x278] sm:$0xff]
  %v265 = vld [vmem:[%s2 + $0x280] sm:$0xff]
  %v266 = vld [vmem:[%s2 + $0x288] sm:$0xff]
  %v267 = vld [vmem:[%s2 + $0x290] sm:$0xff]
  %v268 = vld [vmem:[%s2 + $0x298] sm:$0xff]
  %v269 = vld [vmem:[%s2 + $0x2a0] sm:$0xff]
  %v270 = vld [vmem:[%s2 + $0x2a8] sm:$0xff]
  %v271 = vld [vmem:[%s2 + $0x2b0] sm:$0xff]
  %v272 = vld [vmem:[%s2 + $0x2b8] sm:$0xff]
  %v273 = vld [vmem:[%s2 + $0x2c0] sm:$0xff]
  %v274 = vld [vmem:[%s2 + $0x2c8] sm:$0xff]
  %v275 = vld [vmem:[%s2 + $0x2d0] sm:$0xff]
  %v276 = vld [vmem:[%s2 + $0x2d8] sm:$0xff]
  %v277 = vld [vmem:[%s2 + $0x2e0] sm:$0xff]
  %v278 = vld [vmem:[%s2 + $0x2e8] sm:$0xff]
  %v279 = vld [vmem:[%s2 + $0x2f0] sm:$0xff]
  %v280 = vld [vmem:[%s2 + $0x2f8] sm:$0xff]
  %v281 = vld [vmem:[%s2 + $0x300] sm:$0xff]
  %v282 = vld [vmem:[%s2 + $0x308] sm:$0xff]
  %v283 = vld [vmem:[%s2 + $0x310] sm:$0xff]
  %v284 = vld [vmem:[%s2 + $0x318] sm:$0xff]
  %v285 = vld [vmem:[%s2 + $0x320] sm:$0xff]
  %v286 = vld [vmem:[%s2 + $0x328] sm:$0xff]
  %v287 = vld [vmem:[%s2 + $0x330] sm:$0xff]
  %v288 = vld [vmem:[%s2 + $0x338] sm:$0xff]
  %v289 = vld [vmem:[%s2 + $0x340] sm:$0xff]
  %v290 = vld [vmem:[%s2 + $0x348] sm:$0xff]
  %v291 = vld [vmem:[%s2 + $0x350] sm:$0xff]
  %v292 = vld [vmem:[%s2 + $0x358] sm:$0xff]
  %v293 = vld [vmem:[%s2 + $0x360] sm:$0xff]
  %v294 = vld [vmem:[%s2 + $0x368] sm:$0xff]
  %v295 = vld [vmem:[%s2 + $0x370] sm:$0xff]
  %v296 = vld [vmem:[%s2 + $0x378] sm:$0xff]
  %v297 = vld [vmem:[%s2 + $0x380] sm:$0xff]
  %v298 = vld [vmem:[%s2 + $0x388] sm:$0xff]
  %v299 = vld [vmem:[%s2 + $0x390] sm:$0xff]
  %v300 = vld [vmem:[%s2 + $0x398] sm:$0xff]
  %v301 = vld [vmem:[%s2 + $0x3a0] sm:$0xff]
  %v302 = vld [vmem:[%s2 + $0x3a8] sm:$0xff]
  %v303 = vld [vmem:[%s2 + $0x3b0] sm:$0xff]
  %v304 = vld [vmem:[%s2 + $0x3b8] sm:$0xff]
  %v305 = vld [vmem:[%s2 + $0x3c0] sm:$0xff]
  %v306 = vld [vmem:[%s2 + $0x3c8] sm:$0xff]
  %v307 = vld [vmem:[%s2 + $0x3d0] sm:$0xff]
  %v308 = vld [vmem:[%s2 + $0x3d8] sm:$0xff]
  %v309 = vld [vmem:[%s2 + $0x3e0] sm:$0xff]
  %v310 = vld [vmem:[%s2 + $0x3e8] sm:$0xff]
  %v311 = vld [vmem:[%s2 + $0x3f0] sm:$0xff]
  %v312 = vld [vmem:[%s2 + $0x3f8] sm:$0xff]
  %v313 = vld [vmem:[%s3] sm:$0x3]
  %v315 = vperm.slane %v313, 0
  %v316 = vperm.slane %v313, 1
  %319 = vmatpush.msra.mxu0 %v215
  %320 = vmatpush.msra.mxu0 %v213
  %321 = vmatpush.msra.mxu0 %v211
  %322 = vmatpush.msra.mxu0 %v209
  %323 = vmatpush.msra.mxu0 %v207
  %324 = vmatpush.msra.mxu0 %v205
  %325 = vmatpush.msra.mxu0 %v203
  %326 = vmatpush.msra.mxu0 %v201
  %327 = vmatpush.msra.mxu0 %v199
  %328 = vmatpush.msra.mxu0 %v197
  %329 = vmatpush.msra.mxu0 %v195
  %330 = vmatpush.msra.mxu0 %v193
  %331 = vmatpush.msra.mxu0 %v191
  %332 = vmatpush.msra.mxu0 %v189
  %333 = vmatpush.msra.mxu0 %v187
  %334 = vmatpush.msra.mxu0 %v185
  %335 = vmatmul.f32.gmra.mxu0 %v181
  %v336 = vpop.f32.mrf.mxu0
  %v337 = vadd.f32 %v315, %v336
  %338 = vdwg.mxu0
  %339 = vmatpush.msra.mxu0 %v247
  %340 = vmatpush.msra.mxu0 %v245
  %341 = vmatpush.msra.mxu0 %v243
  %342 = vmatpush.msra.mxu0 %v241
  %343 = vmatpush.msra.mxu0 %v239
  %344 = vmatpush.msra.mxu0 %v237
  %345 = vmatpush.msra.mxu0 %v235
  %346 = vmatpush.msra.mxu0 %v233
  %347 = vmatpush.msra.mxu0 %v231
  %348 = vmatpush.msra.mxu0 %v229
  %349 = vmatpush.msra.mxu0 %v227
  %350 = vmatpush.msra.mxu0 %v225
  %351 = vmatpush.msra.mxu0 %v223
  %352 = vmatpush.msra.mxu0 %v221
  %353 = vmatpush.msra.mxu0 %v219
  %354 = vmatpush.msra.mxu0 %v217
  %355 = vmatmul.f32.gmra.mxu0 %v182
  %v356 = vpop.f32.mrf.mxu0
  %v357 = vadd.f32 %v337, %v356
  %358 = vdwg.mxu0
  %359 = vmatpush.msra.mxu0 %v279
  %360 = vmatpush.msra.mxu0 %v277
  %361 = vmatpush.msra.mxu0 %v275
  %362 = vmatpush.msra.mxu0 %v273
  %363 = vmatpush.msra.mxu0 %v271
  %364 = vmatpush.msra.mxu0 %v269
  %365 = vmatpush.msra.mxu0 %v267
  %366 = vmatpush.msra.mxu0 %v265
  %367 = vmatpush.msra.mxu0 %v263
  %368 = vmatpush.msra.mxu0 %v261
  %369 = vmatpush.msra.mxu0 %v259
  %370 = vmatpush.msra.mxu0 %v257
  %371 = vmatpush.msra.mxu0 %v255
  %372 = vmatpush.msra.mxu0 %v253
  %373 = vmatpush.msra.mxu0 %v251
  %374 = vmatpush.msra.mxu0 %v249
  %375 = vmatmul.f32.gmra.mxu0 %v183
  %v376 = vpop.f32.mrf.mxu0
  %v377 = vadd.f32 %v357, %v376
  %378 = vdwg.mxu0
  %379 = vmatpush.msra.mxu0 %v311
  %380 = vmatpush.msra.mxu0 %v309
  %381 = vmatpush.msra.mxu0 %v307
  %382 = vmatpush.msra.mxu0 %v305
  %383 = vmatpush.msra.mxu0 %v303
  %384 = vmatpush.msra.mxu0 %v301
  %385 = vmatpush.msra.mxu0 %v299
  %386 = vmatpush.msra.mxu0 %v297
  %387 = vmatpush.msra.mxu0 %v295
  %388 = vmatpush.msra.mxu0 %v293
  %389 = vmatpush.msra.mxu0 %v291
  %390 = vmatpush.msra.mxu0 %v289
  %391 = vmatpush.msra.mxu0 %v287
  %392 = vmatpush.msra.mxu0 %v285
  %393 = vmatpush.msra.mxu0 %v283
  %394 = vmatpush.msra.mxu0 %v281
  %395 = vmatmul.f32.gmra.mxu0 %v184
  %v396 = vpop.f32.mrf.mxu0
  %v397 = vadd.f32 %v377, %v396
  %398 = vdwg.mxu0
  %399 = vmatpush.msra.mxu0 %v216
  %400 = vmatpush.msra.mxu0 %v214
  %401 = vmatpush.msra.mxu0 %v212
  %402 = vmatpush.msra.mxu0 %v210
  %403 = vmatpush.msra.mxu0 %v208
  %404 = vmatpush.msra.mxu0 %v206
  %405 = vmatpush.msra.mxu0 %v204
  %406 = vmatpush.msra.mxu0 %v202
  %407 = vmatpush.msra.mxu0 %v200
  %408 = vmatpush.msra.mxu0 %v198
  %409 = vmatpush.msra.mxu0 %v196
  %410 = vmatpush.msra.mxu0 %v194
  %411 = vmatpush.msra.mxu0 %v192
  %412 = vmatpush.msra.mxu0 %v190
  %413 = vmatpush.msra.mxu0 %v188
  %414 = vmatpush.msra.mxu0 %v186
  %415 = vmatmul.f32.gmra.mxu0 %v181
  %v416 = vpop.f32.mrf.mxu0
  %v417 = vadd.f32 %v316, %v416
  %418 = vdwg.mxu0
  %419 = vmatpush.msra.mxu0 %v248
  %420 = vmatpush.msra.mxu0 %v246
  %421 = vmatpush.msra.mxu0 %v244
  %422 = vmatpush.msra.mxu0 %v242
  %423 = vmatpush.msra.mxu0 %v240
  %424 = vmatpush.msra.mxu0 %v238
  %425 = vmatpush.msra.mxu0 %v236
  %426 = vmatpush.msra.mxu0 %v234
  %427 = vmatpush.msra.mxu0 %v232
  %428 = vmatpush.msra.mxu0 %v230
  %429 = vmatpush.msra.mxu0 %v228
  %430 = vmatpush.msra.mxu0 %v226
  %431 = vmatpush.msra.mxu0 %v224
  %432 = vmatpush.msra.mxu0 %v222
  %433 = vmatpush.msra.mxu0 %v220
  %434 = vmatpush.msra.mxu0 %v218
  %435 = vmatmul.f32.gmra.mxu0 %v182
  %v436 = vpop.f32.mrf.mxu0
  %v437 = vadd.f32 %v417, %v436
  %438 = vdwg.mxu0
  %439 = vmatpush.msra.mxu0 %v280
  %440 = vmatpush.msra.mxu0 %v278
  %441 = vmatpush.msra.mxu0 %v276
  %442 = vmatpush.msra.mxu0 %v274
  %443 = vmatpush.msra.mxu0 %v272
  %444 = vmatpush.msra.mxu0 %v270
  %445 = vmatpush.msra.mxu0 %v268
  %446 = vmatpush.msra.mxu0 %v266
  %447 = vmatpush.msra.mxu0 %v264
  %448 = vmatpush.msra.mxu0 %v262
  %449 = vmatpush.msra.mxu0 %v260
  %450 = vmatpush.msra.mxu0 %v258
  %451 = vmatpush.msra.mxu0 %v256
  %452 = vmatpush.msra.mxu0 %v254
  %453 = vmatpush.msra.mxu0 %v252
  %454 = vmatpush.msra.mxu0 %v250
  %455 = vmatmul.f32.gmra.mxu0 %v183
  %v456 = vpop.f32.mrf.mxu0
  %v457 = vadd.f32 %v437, %v456
  %458 = vdwg.mxu0
  %459 = vmatpush.msra.mxu0 %v312
  %460 = vmatpush.msra.mxu0 %v310
  %461 = vmatpush.msra.mxu0 %v308
  %462 = vmatpush.msra.mxu0 %v306
  %463 = vmatpush.msra.mxu0 %v304
  %464 = vmatpush.msra.mxu0 %v302
  %465 = vmatpush.msra.mxu0 %v300
  %466 = vmatpush.msra.mxu0 %v298
  %467 = vmatpush.msra.mxu0 %v296
  %468 = vmatpush.msra.mxu0 %v294
  %469 = vmatpush.msra.mxu0 %v292
  %470 = vmatpush.msra.mxu0 %v290
  %471 = vmatpush.msra.mxu0 %v288
  %472 = vmatpush.msra.mxu0 %v286
  %473 = vmatpush.msra.mxu0 %v284
  %474 = vmatpush.msra.mxu0 %v282
  %475 = vmatmul.f32.gmra.mxu0 %v184
  %v476 = vpop.f32.mrf.mxu0
  %v477 = vadd.f32 %v457, %v476
  %478 = vdwg.mxu0
  %v479 = vmax.f32 %v397, 0.0
  %v480 = vmax.f32 %v477, 0.0
  %v481 = vld [vmem:[%s4] sm:$0xff]
  %v482 = vld [vmem:[%s4 + $0x8] sm:$0xff]
  %v483 = vld [vmem:[%s4 + $0x10] sm:$0xff]
  %v484 = vld [vmem:[%s4 + $0x18] sm:$0xff]
  %v485 = vld [vmem:[%s4 + $0x20] sm:$0xff]
  %v486 = vld [vmem:[%s4 + $0x28] sm:$0xff]
  %v487 = vld [vmem:[%s4 + $0x30] sm:$0xff]
  %v488 = vld [vmem:[%s4 + $0x38] sm:$0xff]
  %v489 = vld [vmem:[%s4 + $0x40] sm:$0xff]
  %v490 = vld [vmem:[%s4 + $0x48] sm:$0xff]
  %v491 = vld [vmem:[%s4 + $0x50] sm:$0xff]
  %v492 = vld [vmem:[%s4 + $0x58] sm:$0xff]
  %v493 = vld [vmem:[%s4 + $0x60] sm:$0xff]
  %v494 = vld [vmem:[%s4 + $0x68] sm:$0xff]
  %v495 = vld [vmem:[%s4 + $0x70] sm:$0xff]
  %v496 = vld [vmem:[%s4 + $0x78] sm:$0xff]
  %v497 = vld [vmem:[%s4 + $0x80] sm:$0xff]
  %v498 = vld [vmem:[%s4 + $0x88] sm:$0xff]
  %v499 = vld [vmem:[%s4 + $0x90] sm:$0xff]
  %v500 = vld [vmem:[%s4 + $0x98] sm:$0xff]
  %v501 = vld [vmem:[%s4 + $0xa0] sm:$0xff]
  %v502 = vld [vmem:[%s4 + $0xa8] sm:$0xff]
  %v503 = vld [vmem:[%s4 + $0xb0] sm:$0xff]
  %v504 = vld [vmem:[%s4 + $0xb8] sm:$0xff]
  %v505 = vld [vmem:[%s4 + $0xc0] sm:$0xff]
  %v506 = vld [vmem:[%s4 + $0xc8] sm:$0xff]
  %v507 = vld [vmem:[%s4 + $0xd0] sm:$0xff]
  %v508 = vld [vmem:[%s4 + $0xd8] sm:$0xff]
  %v509 = vld [vmem:[%s4 + $0xe0] sm:$0xff]
  %v510 = vld [vmem:[%s4 + $0xe8] sm:$0xff]
  %v511 = vld [vmem:[%s4 + $0xf0] sm:$0xff]
  %v512 = vld [vmem:[%s4 + $0xf8] sm:$0xff]
  %v513 = vld [vmem:[%s5] sm:$0x1]
  %v515 = vperm.slane %v513, 0
  %517 = vmatpush.msra.mxu0 %v496
  %518 = vmatpush.msra.mxu0 %v495
  %519 = vmatpush.msra.mxu0 %v494
  %520 = vmatpush.msra.mxu0 %v493
  %521 = vmatpush.msra.mxu0 %v492
  %522 = vmatpush.msra.mxu0 %v491
  %523 = vmatpush.msra.mxu0 %v490
  %524 = vmatpush.msra.mxu0 %v489
  %525 = vmatpush.msra.mxu0 %v488
  %526 = vmatpush.msra.mxu0 %v487
  %527 = vmatpush.msra.mxu0 %v486
  %528 = vmatpush.msra.mxu0 %v485
  %529 = vmatpush.msra.mxu0 %v484
  %530 = vmatpush.msra.mxu0 %v483
  %531 = vmatpush.msra.mxu0 %v482
  %532 = vmatpush.msra.mxu0 %v481
  %533 = vmatmul.f32.gmra.mxu0 %v479
  %v534 = vpop.f32.mrf.mxu0
  %v535 = vadd.f32 %v515, %v534
  %536 = vdwg.mxu0
  %537 = vmatpush.msra.mxu0 %v512
  %538 = vmatpush.msra.mxu0 %v511
  %539 = vmatpush.msra.mxu0 %v510
  %540 = vmatpush.msra.mxu0 %v509
  %541 = vmatpush.msra.mxu0 %v508
  %542 = vmatpush.msra.mxu0 %v507
  %543 = vmatpush.msra.mxu0 %v506
  %544 = vmatpush.msra.mxu0 %v505
  %545 = vmatpush.msra.mxu0 %v504
  %546 = vmatpush.msra.mxu0 %v503
  %547 = vmatpush.msra.mxu0 %v502
  %548 = vmatpush.msra.mxu0 %v501
  %549 = vmatpush.msra.mxu0 %v500
  %550 = vmatpush.msra.mxu0 %v499
  %551 = vmatpush.msra.mxu0 %v498
  %552 = vmatpush.msra.mxu0 %v497
  %553 = vmatmul.f32.gmra.mxu0 %v480
  %v554 = vpop.f32.mrf.mxu0
  %v555 = vadd.f32 %v535, %v554
  %556 = vdwg.mxu0
  %vm557 = vcmask 326656
  %558 = vst.msk [vmem:[%s7] sm:$0xff] %vm557, %v555
  // Predicated region
  $region30: #{model_forward.15} parent=0 // pred_check
    _
  $region31: #{model_forward.15} parent=0 // pred_check_branch
    %560 = sbr.rel (0) target = $region33
  $region32: #{model_forward.15} parent=0 // pred_region
    _
  $region33: #{model_forward.15} parent=0 // pred_fallthru
    _
  // Predicated region
  $region34: #{model_forward.15} parent=0 // pred_check
    _
  $region35: #{model_forward.15} parent=0 // pred_check_branch
    %562 = sbr.rel (0) target = $region37
  $region36: #{model_forward.15} parent=0 // pred_region
    _
  $region37: #{model_forward.15} parent=0 // pred_fallthru
    _

</llo_original>
